<compile_context>
chip_gen: v6e
topology: v6e:2x2x1
jax: 0.10.0
libtpu: 0.0.40
codegen_flags: <defaults>
</compile_context>

<pallas_src>
import functools

import jax
import jax.numpy as jnp
from jax import lax
from jax.experimental import pallas as pl
from jax.experimental.pallas import tpu as pltpu

# ----------------- small synthetic BERT config -----------------
VOCAB = 100
TYPE_VOCAB = 2
MAX_POS = 16
HIDDEN = 32
N_HEADS = 4
HEAD_DIM = HIDDEN // N_HEADS
INTERMEDIATE = 64
N_LAYERS = 2
N_CLASSES = 3
LN_EPS = 1e-12


# ----------------- fused Pallas kernel -----------------
def _fused_bert_kernel(h_ref, bias_ref, emb_g_ref, emb_b_ref,
                       wq_ref, bq_ref, wk_ref, bk_ref, wv_ref, bv_ref,
                       wo_ref, bo_ref, ln1_g_ref, ln1_b_ref,
                       w1_ref, b1_ref, w2_ref, b2_ref,
                       ln2_g_ref, ln2_b_ref,
                       pool_w_ref, pool_b_ref, cls_w_ref, cls_b_ref,
                       logits_ref, pred_ref, *, B, S):
    f32, bf16 = jnp.float32, jnp.bfloat16

    def ln(x, g, b):
        mu = jnp.mean(x, axis=-1, keepdims=True)
        var = jnp.mean(jnp.square(x - mu), axis=-1, keepdims=True)
        return (x - mu) * lax.rsqrt(var + LN_EPS) * g + b

    bias = bias_ref[...]                               # (B, 1, S) precomputed
    scale = 1.0 / (HEAD_DIM ** 0.5)

    # ---- embedding layernorm ----
    x = ln(h_ref[...], emb_g_ref[...], emb_b_ref[...])            # (B*S, H) f32

    # ---- encoder layers, fully unrolled (single grid step) ----
    for l in range(N_LAYERS):
        xb = x.astype(bf16)
        q = (jnp.dot(xb, wq_ref[l], preferred_element_type=f32)
             + bq_ref[l]).reshape(B, S, HIDDEN)
        k = (jnp.dot(xb, wk_ref[l], preferred_element_type=f32)
             + bk_ref[l]).reshape(B, S, HIDDEN)
        v = (jnp.dot(xb, wv_ref[l], preferred_element_type=f32)
             + bv_ref[l]).reshape(B, S, HIDDEN)

        # attention: per-head context kept in registers, concatenated at the end
        ctx_heads = []
        for hh in range(N_HEADS):
            sl = slice(hh * HEAD_DIM, (hh + 1) * HEAD_DIM)
            qh = q[:, :, sl].astype(bf16)
            kh = k[:, :, sl].astype(bf16)
            vh = v[:, :, sl].astype(bf16)
            s = jnp.einsum("bqd,bkd->bqk", qh, kh,
                           preferred_element_type=f32) * scale + bias
            s = s - jnp.max(s, axis=-1, keepdims=True)
            p = jnp.exp(s)
            p = p * pl.reciprocal(jnp.sum(p, axis=-1, keepdims=True), approx=True)
            ctx_heads.append(jnp.einsum("bqk,bkd->bqd", p.astype(bf16), vh,
                                        preferred_element_type=f32))
        ctx = jnp.concatenate(ctx_heads, axis=-1).reshape(B * S, HIDDEN)

        attn = jnp.dot(ctx.astype(bf16), wo_ref[l],
                       preferred_element_type=f32) + bo_ref[l]
        x1 = ln(attn + x, ln1_g_ref[l], ln1_b_ref[l])   # residual fused into LN

        # FFN (exact erf GELU, as in BERT)
        ff = jnp.dot(x1.astype(bf16), w1_ref[l],
                     preferred_element_type=f32) + b1_ref[l]
        ff = 0.5 * ff * (1.0 + lax.erf(ff * 0.7071067811865476))
        ff = jnp.dot(ff.astype(bf16), w2_ref[l],
                     preferred_element_type=f32) + b2_ref[l]
        x = ln(ff + x1, ln2_g_ref[l], ln2_b_ref[l])

    # ---- pooler on CLS rows only + (eval-mode dropout) + classifier ----
    cls_tok = x.reshape(B, S, HIDDEN)[:, 0, :]                     # (B, H)
    pooled = jnp.tanh(jnp.dot(cls_tok.astype(bf16), pool_w_ref[...],
                              preferred_element_type=f32) + pool_b_ref[...])
    logits = jnp.dot(pooled.astype(bf16), cls_w_ref[...],
                     preferred_element_type=f32) + cls_b_ref[...]
    logits_ref[...] = logits
    # argmax directly on logits (softmax monotone; lowest-index tie break,
    # matching torch.max of softmax(logits, dim=1))
    idx = lax.broadcasted_iota(jnp.int32, logits.shape, 1)
    is_max = logits >= jnp.max(logits, axis=1, keepdims=True)
    pred_ref[...] = jnp.min(jnp.where(is_max, idx, jnp.int32(2147483647)),
                            axis=1, keepdims=True)


# ----------------- parameters (stacked per-layer, bf16 matmul weights) -----------------
def init_params(key):
    def nrm(k, shape, dtype=jnp.bfloat16):
        return (0.02 * jax.random.normal(k, shape, jnp.float32)).astype(dtype)

    keys = iter(jax.random.split(key, 64))
    L, H, I = N_LAYERS, HIDDEN, INTERMEDIATE
    return {
        # embeddings stay f32 (feed f32 layernorm in the wrapper/kernel)
        "word_emb": nrm(next(keys), (VOCAB, H), jnp.float32),
        "pos_emb": nrm(next(keys), (MAX_POS, H), jnp.float32),
        "type_emb": nrm(next(keys), (TYPE_VOCAB, H), jnp.float32),
        "emb_ln_g": jnp.ones((1, H), jnp.float32),
        "emb_ln_b": jnp.zeros((1, H), jnp.float32),
        # per-layer stacked weights (bf16) / biases & LN params (f32)
        "wq": nrm(next(keys), (L, H, H)), "bq": jnp.zeros((L, 1, H), jnp.float32),
        "wk": nrm(next(keys), (L, H, H)), "bk": jnp.zeros((L, 1, H), jnp.float32),
        "wv": nrm(next(keys), (L, H, H)), "bv": jnp.zeros((L, 1, H), jnp.float32),
        "wo": nrm(next(keys), (L, H, H)), "bo": jnp.zeros((L, 1, H), jnp.float32),
        "ln1_g": jnp.ones((L, 1, H), jnp.float32),
        "ln1_b": jnp.zeros((L, 1, H), jnp.float32),
        "w1": nrm(next(keys), (L, H, I)), "b1": jnp.zeros((L, 1, I), jnp.float32),
        "w2": nrm(next(keys), (L, I, H)), "b2": jnp.zeros((L, 1, H), jnp.float32),
        "ln2_g": jnp.ones((L, 1, H), jnp.float32),
        "ln2_b": jnp.zeros((L, 1, H), jnp.float32),
        "pool_w": nrm(next(keys), (H, H)),
        "pool_b": jnp.zeros((1, H), jnp.float32),
        "cls_w": nrm(next(keys), (H, N_CLASSES)),
        "cls_b": jnp.zeros((1, N_CLASSES), jnp.float32),
    }


# ----------------- forward pass -----------------
def bert_classifier_forward(params, input_ids, attention_mask, token_type_ids):
    B, S = input_ids.shape

    # --- embeddings (table gathers are plain-JAX glue) ---
    pos = jnp.arange(S, dtype=jnp.int32)
    h = (jnp.take(params["word_emb"], input_ids, axis=0)
         + jnp.take(params["pos_emb"], pos, axis=0)[None, :, :]
         + jnp.take(params["type_emb"], token_type_ids, axis=0)
         ).reshape(B * S, HIDDEN).astype(jnp.float32)
    # additive attention bias precomputed once (hoisted out of the kernel body)
    bias = (1.0 - attention_mask.astype(jnp.float32)).reshape(B, 1, S) * -10000.0

    in_arrays = [h, bias, params["emb_ln_g"], params["emb_ln_b"],
                 params["wq"], params["bq"], params["wk"], params["bk"],
                 params["wv"], params["bv"], params["wo"], params["bo"],
                 params["ln1_g"], params["ln1_b"],
                 params["w1"], params["b1"], params["w2"], params["b2"],
                 params["ln2_g"], params["ln2_b"],
                 params["pool_w"], params["pool_b"],
                 params["cls_w"], params["cls_b"]]

    def full(a):
        nd = a.ndim
        return pl.BlockSpec(a.shape, lambda i, _nd=nd: (0,) * _nd)

    in_specs = [full(a) for a in in_arrays]
    out_specs = (pl.BlockSpec((B, N_CLASSES), lambda i: (0, 0)),
                 pl.BlockSpec((B, 1), lambda i: (0, 0)))

    logits, pred = pl.pallas_call(
        functools.partial(_fused_bert_kernel, B=B, S=S),
        out_shape=(jax.ShapeDtypeStruct((B, N_CLASSES), jnp.float32),
                   jax.ShapeDtypeStruct((B, 1), jnp.int32)),
        grid_spec=pltpu.PrefetchScalarGridSpec(
            num_scalar_prefetch=0,
            grid=(1,),                     # single step: whole forward fused
            in_specs=in_specs,
            out_specs=out_specs),
        compiler_params=pltpu.CompilerParams(
            dimension_semantics=("arbitrary",)),
    )(*in_arrays)
    return logits, pred[:, 0]


# ----------------- main -----------------
if __name__ == "__main__":
    key = jax.random.PRNGKey(0)
    k_par, k_ids = jax.random.split(key)

    params = init_params(k_par)

    B, S = 2, 8
    input_ids = jax.random.randint(k_ids, (B, S), 0, VOCAB, dtype=jnp.int32)
    attention_mask = jnp.array([[1, 1, 1, 1, 1, 1, 1, 1],
                                [1, 1, 1, 1, 1, 0, 0, 0]], dtype=jnp.int32)
    token_type_ids = jnp.zeros((B, S), dtype=jnp.int32)

    logits, pred = bert_classifier_forward(
        params, input_ids, attention_mask, token_type_ids)
    jax.block_until_ready((logits, pred))

    assert logits.shape == (B, N_CLASSES) and logits.dtype == jnp.float32
    assert pred.shape == (B,) and pred.dtype == jnp.int32
    print("KERNEL_OK")
</pallas_src>

<mosaic_0001>
module attributes {stable_mosaic.version = 11 : i64} {
  func.func @_fused_bert_kernel(%arg0: i32, %arg1: memref<16x32xf32, #tpu.memory_space<vmem>>, %arg2: memref<2x1x8xf32, #tpu.memory_space<vmem>>, %arg3: memref<1x32xf32, #tpu.memory_space<vmem>>, %arg4: memref<1x32xf32, #tpu.memory_space<vmem>>, %arg5: memref<2x32x32xbf16, #tpu.memory_space<vmem>>, %arg6: memref<2x1x32xf32, #tpu.memory_space<vmem>>, %arg7: memref<2x32x32xbf16, #tpu.memory_space<vmem>>, %arg8: memref<2x1x32xf32, #tpu.memory_space<vmem>>, %arg9: memref<2x32x32xbf16, #tpu.memory_space<vmem>>, %arg10: memref<2x1x32xf32, #tpu.memory_space<vmem>>, %arg11: memref<2x32x32xbf16, #tpu.memory_space<vmem>>, %arg12: memref<2x1x32xf32, #tpu.memory_space<vmem>>, %arg13: memref<2x1x32xf32, #tpu.memory_space<vmem>>, %arg14: memref<2x1x32xf32, #tpu.memory_space<vmem>>, %arg15: memref<2x32x64xbf16, #tpu.memory_space<vmem>>, %arg16: memref<2x1x64xf32, #tpu.memory_space<vmem>>, %arg17: memref<2x64x32xbf16, #tpu.memory_space<vmem>>, %arg18: memref<2x1x32xf32, #tpu.memory_space<vmem>>, %arg19: memref<2x1x32xf32, #tpu.memory_space<vmem>>, %arg20: memref<2x1x32xf32, #tpu.memory_space<vmem>>, %arg21: memref<32x32xbf16, #tpu.memory_space<vmem>>, %arg22: memref<1x32xf32, #tpu.memory_space<vmem>>, %arg23: memref<32x3xbf16, #tpu.memory_space<vmem>>, %arg24: memref<1x3xf32, #tpu.memory_space<vmem>>, %arg25: memref<2x3xf32, #tpu.memory_space<vmem>>, %arg26: memref<2x1xi32, #tpu.memory_space<vmem>>) attributes {dimension_semantics = [#tpu.dimension_semantics<arbitrary>], iteration_bounds = array<i64: 1>, scalar_prefetch = 0 : i64, scratch_operands = 0 : i64, tpu.core_type = #tpu.core_type<tc>, window_params = [{pipeline_mode = #tpu.pipeline_mode<synchronous>, transform_indices = @transform_0, window_bounds = array<i64: 16, 32>}, {pipeline_mode = #tpu.pipeline_mode<synchronous>, transform_indices = @transform_1, window_bounds = array<i64: 2, 1, 8>}, {pipeline_mode = #tpu.pipeline_mode<synchronous>, transform_indices = @transform_2, window_bounds = array<i64: 1, 32>}, {pipeline_mode = #tpu.pipeline_mode<synchronous>, transform_indices = @transform_3, window_bounds = array<i64: 1, 32>}, {pipeline_mode = #tpu.pipeline_mode<synchronous>, transform_indices = @transform_4, window_bounds = array<i64: 2, 32, 32>}, {pipeline_mode = #tpu.pipeline_mode<synchronous>, transform_indices = @transform_5, window_bounds = array<i64: 2, 1, 32>}, {pipeline_mode = #tpu.pipeline_mode<synchronous>, transform_indices = @transform_6, window_bounds = array<i64: 2, 32, 32>}, {pipeline_mode = #tpu.pipeline_mode<synchronous>, transform_indices = @transform_7, window_bounds = array<i64: 2, 1, 32>}, {pipeline_mode = #tpu.pipeline_mode<synchronous>, transform_indices = @transform_8, window_bounds = array<i64: 2, 32, 32>}, {pipeline_mode = #tpu.pipeline_mode<synchronous>, transform_indices = @transform_9, window_bounds = array<i64: 2, 1, 32>}, {pipeline_mode = #tpu.pipeline_mode<synchronous>, transform_indices = @transform_10, window_bounds = array<i64: 2, 32, 32>}, {pipeline_mode = #tpu.pipeline_mode<synchronous>, transform_indices = @transform_11, window_bounds = array<i64: 2, 1, 32>}, {pipeline_mode = #tpu.pipeline_mode<synchronous>, transform_indices = @transform_12, window_bounds = array<i64: 2, 1, 32>}, {pipeline_mode = #tpu.pipeline_mode<synchronous>, transform_indices = @transform_13, window_bounds = array<i64: 2, 1, 32>}, {pipeline_mode = #tpu.pipeline_mode<synchronous>, transform_indices = @transform_14, window_bounds = array<i64: 2, 32, 64>}, {pipeline_mode = #tpu.pipeline_mode<synchronous>, transform_indices = @transform_15, window_bounds = array<i64: 2, 1, 64>}, {pipeline_mode = #tpu.pipeline_mode<synchronous>, transform_indices = @transform_16, window_bounds = array<i64: 2, 64, 32>}, {pipeline_mode = #tpu.pipeline_mode<synchronous>, transform_indices = @transform_17, window_bounds = array<i64: 2, 1, 32>}, {pipeline_mode = #tpu.pipeline_mode<synchronous>, transform_indices = @transform_18, window_bounds = array<i64: 2, 1, 32>}, {pipeline_mode = #tpu.pipeline_mode<synchronous>, transform_indices = @transform_19, window_bounds = array<i64: 2, 1, 32>}, {pipeline_mode = #tpu.pipeline_mode<synchronous>, transform_indices = @transform_20, window_bounds = array<i64: 32, 32>}, {pipeline_mode = #tpu.pipeline_mode<synchronous>, transform_indices = @transform_21, window_bounds = array<i64: 1, 32>}, {pipeline_mode = #tpu.pipeline_mode<synchronous>, transform_indices = @transform_22, window_bounds = array<i64: 32, 3>}, {pipeline_mode = #tpu.pipeline_mode<synchronous>, transform_indices = @transform_23, window_bounds = array<i64: 1, 3>}, {pipeline_mode = #tpu.pipeline_mode<synchronous>, transform_indices = @transform_24, window_bounds = array<i64: 2, 3>}, {pipeline_mode = #tpu.pipeline_mode<synchronous>, transform_indices = @transform_25, window_bounds = array<i64: 2, 1>}]} {
    %c0 = arith.constant 0 : index
    %c0_0 = arith.constant 0 : index
    %c0_1 = arith.constant 0 : index
    %0 = vector.load %arg2[%c0, %c0_0, %c0_1] : memref<2x1x8xf32, #tpu.memory_space<vmem>>, vector<2x1x8xf32>
    %c0_2 = arith.constant 0 : index
    %c0_3 = arith.constant 0 : index
    %1 = vector.load %arg1[%c0_2, %c0_3] : memref<16x32xf32, #tpu.memory_space<vmem>>, vector<16x32xf32>
    %c0_4 = arith.constant 0 : index
    %c0_5 = arith.constant 0 : index
    %2 = vector.load %arg3[%c0_4, %c0_5] : memref<1x32xf32, #tpu.memory_space<vmem>>, vector<1x32xf32>
    %c0_6 = arith.constant 0 : index
    %c0_7 = arith.constant 0 : index
    %3 = vector.load %arg4[%c0_6, %c0_7] : memref<1x32xf32, #tpu.memory_space<vmem>>, vector<1x32xf32>
    %cst = arith.constant dense<0.000000e+00> : vector<16xf32>
    %4 = vector.multi_reduction <add>, %1, %cst [1] : vector<16x32xf32> to vector<16xf32>
    %5 = vector.shape_cast %4 : vector<16xf32> to vector<16x1xf32>
    %cst_8 = arith.constant 3.200000e+01 : f32
    %6 = vector.broadcast %cst_8 : f32 to vector<16x1xf32>
    %7 = arith.divf %5, %6 : vector<16x1xf32>
    %8 = vector.broadcast %7 : vector<16x1xf32> to vector<16x32xf32>
    %9 = arith.subf %1, %8 : vector<16x32xf32>
    %10 = arith.mulf %9, %9 : vector<16x32xf32>
    %cst_9 = arith.constant dense<0.000000e+00> : vector<16xf32>
    %11 = vector.multi_reduction <add>, %10, %cst_9 [1] : vector<16x32xf32> to vector<16xf32>
    %12 = vector.shape_cast %11 : vector<16xf32> to vector<16x1xf32>
    %cst_10 = arith.constant 3.200000e+01 : f32
    %13 = vector.broadcast %cst_10 : f32 to vector<16x1xf32>
    %14 = arith.divf %12, %13 : vector<16x1xf32>
    %15 = vector.broadcast %7 : vector<16x1xf32> to vector<16x32xf32>
    %16 = arith.subf %1, %15 : vector<16x32xf32>
    %cst_11 = arith.constant 9.99999996E-13 : f32
    %17 = vector.broadcast %cst_11 : f32 to vector<16x1xf32>
    %18 = arith.addf %14, %17 : vector<16x1xf32>
    %19 = math.rsqrt %18 : vector<16x1xf32>
    %20 = vector.broadcast %19 : vector<16x1xf32> to vector<16x32xf32>
    %21 = arith.mulf %16, %20 : vector<16x32xf32>
    %22 = vector.broadcast %2 : vector<1x32xf32> to vector<16x32xf32>
    %23 = arith.mulf %21, %22 : vector<16x32xf32>
    %24 = vector.broadcast %3 : vector<1x32xf32> to vector<16x32xf32>
    %25 = arith.addf %23, %24 : vector<16x32xf32>
    %26 = arith.truncf %25 : vector<16x32xf32> to vector<16x32xbf16>
    %c0_12 = arith.constant 0 : index
    %c0_13 = arith.constant 0 : index
    %c0_14 = arith.constant 0 : index
    %27 = vector.load %arg5[%c0_12, %c0_13, %c0_14] : memref<2x32x32xbf16, #tpu.memory_space<vmem>>, vector<1x32x32xbf16>
    %28 = vector.shape_cast %27 : vector<1x32x32xbf16> to vector<32x32xbf16>
    %cst_15 = arith.constant dense<0.000000e+00> : vector<16x32xf32>
    %29 = tpu.matmul %26, %28, %cst_15 {dimension_numbers = #tpu.dot_dimension_numbers<[1], [0], [0], [1], [0, 0, 1, 1], [], []>} : vector<16x32xbf16>, vector<32x32xbf16>, vector<16x32xf32> -> vector<16x32xf32>
    %c0_16 = arith.constant 0 : index
    %c0_17 = arith.constant 0 : index
    %c0_18 = arith.constant 0 : index
    %30 = vector.load %arg6[%c0_16, %c0_17, %c0_18] : memref<2x1x32xf32, #tpu.memory_space<vmem>>, vector<1x1x32xf32>
    %31 = vector.shape_cast %30 : vector<1x1x32xf32> to vector<1x32xf32>
    %32 = vector.broadcast %31 : vector<1x32xf32> to vector<16x32xf32>
    %33 = arith.addf %29, %32 : vector<16x32xf32>
    %34 = vector.shape_cast %33 : vector<16x32xf32> to vector<2x8x32xf32>
    %c0_19 = arith.constant 0 : index
    %c0_20 = arith.constant 0 : index
    %c0_21 = arith.constant 0 : index
    %35 = vector.load %arg7[%c0_19, %c0_20, %c0_21] : memref<2x32x32xbf16, #tpu.memory_space<vmem>>, vector<1x32x32xbf16>
    %36 = vector.shape_cast %35 : vector<1x32x32xbf16> to vector<32x32xbf16>
    %cst_22 = arith.constant dense<0.000000e+00> : vector<16x32xf32>
    %37 = tpu.matmul %26, %36, %cst_22 {dimension_numbers = #tpu.dot_dimension_numbers<[1], [0], [0], [1], [0, 0, 1, 1], [], []>} : vector<16x32xbf16>, vector<32x32xbf16>, vector<16x32xf32> -> vector<16x32xf32>
    %c0_23 = arith.constant 0 : index
    %c0_24 = arith.constant 0 : index
    %c0_25 = arith.constant 0 : index
    %38 = vector.load %arg8[%c0_23, %c0_24, %c0_25] : memref<2x1x32xf32, #tpu.memory_space<vmem>>, vector<1x1x32xf32>
    %39 = vector.shape_cast %38 : vector<1x1x32xf32> to vector<1x32xf32>
    %40 = vector.broadcast %39 : vector<1x32xf32> to vector<16x32xf32>
    %41 = arith.addf %37, %40 : vector<16x32xf32>
    %42 = vector.shape_cast %41 : vector<16x32xf32> to vector<2x8x32xf32>
    %c0_26 = arith.constant 0 : index
    %c0_27 = arith.constant 0 : index
    %c0_28 = arith.constant 0 : index
    %43 = vector.load %arg9[%c0_26, %c0_27, %c0_28] : memref<2x32x32xbf16, #tpu.memory_space<vmem>>, vector<1x32x32xbf16>
    %44 = vector.shape_cast %43 : vector<1x32x32xbf16> to vector<32x32xbf16>
    %cst_29 = arith.constant dense<0.000000e+00> : vector<16x32xf32>
    %45 = tpu.matmul %26, %44, %cst_29 {dimension_numbers = #tpu.dot_dimension_numbers<[1], [0], [0], [1], [0, 0, 1, 1], [], []>} : vector<16x32xbf16>, vector<32x32xbf16>, vector<16x32xf32> -> vector<16x32xf32>
    %c0_30 = arith.constant 0 : index
    %c0_31 = arith.constant 0 : index
    %c0_32 = arith.constant 0 : index
    %46 = vector.load %arg10[%c0_30, %c0_31, %c0_32] : memref<2x1x32xf32, #tpu.memory_space<vmem>>, vector<1x1x32xf32>
    %47 = vector.shape_cast %46 : vector<1x1x32xf32> to vector<1x32xf32>
    %48 = vector.broadcast %47 : vector<1x32xf32> to vector<16x32xf32>
    %49 = arith.addf %45, %48 : vector<16x32xf32>
    %50 = vector.shape_cast %49 : vector<16x32xf32> to vector<2x8x32xf32>
    %51 = vector.extract_strided_slice %34 {offsets = [0, 0, 0], sizes = [2, 8, 8], strides = [1, 1, 1]} : vector<2x8x32xf32> to vector<2x8x8xf32>
    %52 = arith.truncf %51 : vector<2x8x8xf32> to vector<2x8x8xbf16>
    %53 = vector.extract_strided_slice %42 {offsets = [0, 0, 0], sizes = [2, 8, 8], strides = [1, 1, 1]} : vector<2x8x32xf32> to vector<2x8x8xf32>
    %54 = arith.truncf %53 : vector<2x8x8xf32> to vector<2x8x8xbf16>
    %55 = vector.extract_strided_slice %50 {offsets = [0, 0, 0], sizes = [2, 8, 8], strides = [1, 1, 1]} : vector<2x8x32xf32> to vector<2x8x8xf32>
    %56 = arith.truncf %55 : vector<2x8x8xf32> to vector<2x8x8xbf16>
    "tpu.trace_start"() <{level = 10 : i32, message = "bqd,bkd->bqk"}> : () -> ()
    %cst_33 = arith.constant dense<0.000000e+00> : vector<2x8x8xf32>
    %57 = tpu.matmul %52, %54, %cst_33 {dimension_numbers = #tpu.dot_dimension_numbers<[2], [2], [1], [1], [0, 0, 0, 1, 1, 1], [0], [0]>} : vector<2x8x8xbf16>, vector<2x8x8xbf16>, vector<2x8x8xf32> -> vector<2x8x8xf32>
    "tpu.trace_stop"() : () -> ()
    %cst_34 = arith.constant 0.353553385 : f32
    %58 = vector.broadcast %cst_34 : f32 to vector<2x8x8xf32>
    %59 = arith.mulf %57, %58 : vector<2x8x8xf32>
    %60 = vector.broadcast %0 : vector<2x1x8xf32> to vector<2x8x8xf32>
    %61 = arith.addf %59, %60 : vector<2x8x8xf32>
    %cst_35 = arith.constant dense<0xFF800000> : vector<2x8xf32>
    %62 = vector.multi_reduction <maximumf>, %61, %cst_35 [2] : vector<2x8x8xf32> to vector<2x8xf32>
    %63 = vector.shape_cast %62 : vector<2x8xf32> to vector<2x8x1xf32>
    %64 = vector.broadcast %63 : vector<2x8x1xf32> to vector<2x8x8xf32>
    %65 = arith.subf %61, %64 : vector<2x8x8xf32>
    %66 = math.exp %65 : vector<2x8x8xf32>
    %cst_36 = arith.constant dense<0.000000e+00> : vector<2x8xf32>
    %67 = vector.multi_reduction <add>, %66, %cst_36 [2] : vector<2x8x8xf32> to vector<2x8xf32>
    %68 = vector.shape_cast %67 : vector<2x8xf32> to vector<2x8x1xf32>
    %69 = tpu.reciprocal %68 {approx = true} : vector<2x8x1xf32> -> vector<2x8x1xf32>
    %70 = vector.broadcast %69 : vector<2x8x1xf32> to vector<2x8x8xf32>
    %71 = arith.mulf %66, %70 : vector<2x8x8xf32>
    %72 = arith.truncf %71 : vector<2x8x8xf32> to vector<2x8x8xbf16>
    "tpu.trace_start"() <{level = 10 : i32, message = "bqk,bkd->bqd"}> : () -> ()
    %cst_37 = arith.constant dense<0.000000e+00> : vector<2x8x8xf32>
    %73 = tpu.matmul %72, %56, %cst_37 {dimension_numbers = #tpu.dot_dimension_numbers<[2], [1], [1], [2], [0, 0, 0, 1, 1, 2], [0], [0]>} : vector<2x8x8xbf16>, vector<2x8x8xbf16>, vector<2x8x8xf32> -> vector<2x8x8xf32>
    "tpu.trace_stop"() : () -> ()
    %74 = vector.extract_strided_slice %34 {offsets = [0, 0, 8], sizes = [2, 8, 8], strides = [1, 1, 1]} : vector<2x8x32xf32> to vector<2x8x8xf32>
    %75 = arith.truncf %74 : vector<2x8x8xf32> to vector<2x8x8xbf16>
    %76 = vector.extract_strided_slice %42 {offsets = [0, 0, 8], sizes = [2, 8, 8], strides = [1, 1, 1]} : vector<2x8x32xf32> to vector<2x8x8xf32>
    %77 = arith.truncf %76 : vector<2x8x8xf32> to vector<2x8x8xbf16>
    %78 = vector.extract_strided_slice %50 {offsets = [0, 0, 8], sizes = [2, 8, 8], strides = [1, 1, 1]} : vector<2x8x32xf32> to vector<2x8x8xf32>
    %79 = arith.truncf %78 : vector<2x8x8xf32> to vector<2x8x8xbf16>
    "tpu.trace_start"() <{level = 10 : i32, message = "bqd,bkd->bqk"}> : () -> ()
    %cst_38 = arith.constant dense<0.000000e+00> : vector<2x8x8xf32>
    %80 = tpu.matmul %75, %77, %cst_38 {dimension_numbers = #tpu.dot_dimension_numbers<[2], [2], [1], [1], [0, 0, 0, 1, 1, 1], [0], [0]>} : vector<2x8x8xbf16>, vector<2x8x8xbf16>, vector<2x8x8xf32> -> vector<2x8x8xf32>
    "tpu.trace_stop"() : () -> ()
    %cst_39 = arith.constant 0.353553385 : f32
    %81 = vector.broadcast %cst_39 : f32 to vector<2x8x8xf32>
    %82 = arith.mulf %80, %81 : vector<2x8x8xf32>
    %83 = vector.broadcast %0 : vector<2x1x8xf32> to vector<2x8x8xf32>
    %84 = arith.addf %82, %83 : vector<2x8x8xf32>
    %cst_40 = arith.constant dense<0xFF800000> : vector<2x8xf32>
    %85 = vector.multi_reduction <maximumf>, %84, %cst_40 [2] : vector<2x8x8xf32> to vector<2x8xf32>
    %86 = vector.shape_cast %85 : vector<2x8xf32> to vector<2x8x1xf32>
    %87 = vector.broadcast %86 : vector<2x8x1xf32> to vector<2x8x8xf32>
    %88 = arith.subf %84, %87 : vector<2x8x8xf32>
    %89 = math.exp %88 : vector<2x8x8xf32>
    %cst_41 = arith.constant dense<0.000000e+00> : vector<2x8xf32>
    %90 = vector.multi_reduction <add>, %89, %cst_41 [2] : vector<2x8x8xf32> to vector<2x8xf32>
    %91 = vector.shape_cast %90 : vector<2x8xf32> to vector<2x8x1xf32>
    %92 = tpu.reciprocal %91 {approx = true} : vector<2x8x1xf32> -> vector<2x8x1xf32>
    %93 = vector.broadcast %92 : vector<2x8x1xf32> to vector<2x8x8xf32>
    %94 = arith.mulf %89, %93 : vector<2x8x8xf32>
    %95 = arith.truncf %94 : vector<2x8x8xf32> to vector<2x8x8xbf16>
    "tpu.trace_start"() <{level = 10 : i32, message = "bqk,bkd->bqd"}> : () -> ()
    %cst_42 = arith.constant dense<0.000000e+00> : vector<2x8x8xf32>
    %96 = tpu.matmul %95, %79, %cst_42 {dimension_numbers = #tpu.dot_dimension_numbers<[2], [1], [1], [2], [0, 0, 0, 1, 1, 2], [0], [0]>} : vector<2x8x8xbf16>, vector<2x8x8xbf16>, vector<2x8x8xf32> -> vector<2x8x8xf32>
    "tpu.trace_stop"() : () -> ()
    %97 = vector.extract_strided_slice %34 {offsets = [0, 0, 16], sizes = [2, 8, 8], strides = [1, 1, 1]} : vector<2x8x32xf32> to vector<2x8x8xf32>
    %98 = arith.truncf %97 : vector<2x8x8xf32> to vector<2x8x8xbf16>
    %99 = vector.extract_strided_slice %42 {offsets = [0, 0, 16], sizes = [2, 8, 8], strides = [1, 1, 1]} : vector<2x8x32xf32> to vector<2x8x8xf32>
    %100 = arith.truncf %99 : vector<2x8x8xf32> to vector<2x8x8xbf16>
    %101 = vector.extract_strided_slice %50 {offsets = [0, 0, 16], sizes = [2, 8, 8], strides = [1, 1, 1]} : vector<2x8x32xf32> to vector<2x8x8xf32>
    %102 = arith.truncf %101 : vector<2x8x8xf32> to vector<2x8x8xbf16>
    "tpu.trace_start"() <{level = 10 : i32, message = "bqd,bkd->bqk"}> : () -> ()
    %cst_43 = arith.constant dense<0.000000e+00> : vector<2x8x8xf32>
    %103 = tpu.matmul %98, %100, %cst_43 {dimension_numbers = #tpu.dot_dimension_numbers<[2], [2], [1], [1], [0, 0, 0, 1, 1, 1], [0], [0]>} : vector<2x8x8xbf16>, vector<2x8x8xbf16>, vector<2x8x8xf32> -> vector<2x8x8xf32>
    "tpu.trace_stop"() : () -> ()
    %cst_44 = arith.constant 0.353553385 : f32
    %104 = vector.broadcast %cst_44 : f32 to vector<2x8x8xf32>
    %105 = arith.mulf %103, %104 : vector<2x8x8xf32>
    %106 = vector.broadcast %0 : vector<2x1x8xf32> to vector<2x8x8xf32>
    %107 = arith.addf %105, %106 : vector<2x8x8xf32>
    %cst_45 = arith.constant dense<0xFF800000> : vector<2x8xf32>
    %108 = vector.multi_reduction <maximumf>, %107, %cst_45 [2] : vector<2x8x8xf32> to vector<2x8xf32>
    %109 = vector.shape_cast %108 : vector<2x8xf32> to vector<2x8x1xf32>
    %110 = vector.broadcast %109 : vector<2x8x1xf32> to vector<2x8x8xf32>
    %111 = arith.subf %107, %110 : vector<2x8x8xf32>
    %112 = math.exp %111 : vector<2x8x8xf32>
    %cst_46 = arith.constant dense<0.000000e+00> : vector<2x8xf32>
    %113 = vector.multi_reduction <add>, %112, %cst_46 [2] : vector<2x8x8xf32> to vector<2x8xf32>
    %114 = vector.shape_cast %113 : vector<2x8xf32> to vector<2x8x1xf32>
    %115 = tpu.reciprocal %114 {approx = true} : vector<2x8x1xf32> -> vector<2x8x1xf32>
    %116 = vector.broadcast %115 : vector<2x8x1xf32> to vector<2x8x8xf32>
    %117 = arith.mulf %112, %116 : vector<2x8x8xf32>
    %118 = arith.truncf %117 : vector<2x8x8xf32> to vector<2x8x8xbf16>
    "tpu.trace_start"() <{level = 10 : i32, message = "bqk,bkd->bqd"}> : () -> ()
    %cst_47 = arith.constant dense<0.000000e+00> : vector<2x8x8xf32>
    %119 = tpu.matmul %118, %102, %cst_47 {dimension_numbers = #tpu.dot_dimension_numbers<[2], [1], [1], [2], [0, 0, 0, 1, 1, 2], [0], [0]>} : vector<2x8x8xbf16>, vector<2x8x8xbf16>, vector<2x8x8xf32> -> vector<2x8x8xf32>
    "tpu.trace_stop"() : () -> ()
    %120 = vector.extract_strided_slice %34 {offsets = [0, 0, 24], sizes = [2, 8, 8], strides = [1, 1, 1]} : vector<2x8x32xf32> to vector<2x8x8xf32>
    %121 = arith.truncf %120 : vector<2x8x8xf32> to vector<2x8x8xbf16>
    %122 = vector.extract_strided_slice %42 {offsets = [0, 0, 24], sizes = [2, 8, 8], strides = [1, 1, 1]} : vector<2x8x32xf32> to vector<2x8x8xf32>
    %123 = arith.truncf %122 : vector<2x8x8xf32> to vector<2x8x8xbf16>
    %124 = vector.extract_strided_slice %50 {offsets = [0, 0, 24], sizes = [2, 8, 8], strides = [1, 1, 1]} : vector<2x8x32xf32> to vector<2x8x8xf32>
    %125 = arith.truncf %124 : vector<2x8x8xf32> to vector<2x8x8xbf16>
    "tpu.trace_start"() <{level = 10 : i32, message = "bqd,bkd->bqk"}> : () -> ()
    %cst_48 = arith.constant dense<0.000000e+00> : vector<2x8x8xf32>
    %126 = tpu.matmul %121, %123, %cst_48 {dimension_numbers = #tpu.dot_dimension_numbers<[2], [2], [1], [1], [0, 0, 0, 1, 1, 1], [0], [0]>} : vector<2x8x8xbf16>, vector<2x8x8xbf16>, vector<2x8x8xf32> -> vector<2x8x8xf32>
    "tpu.trace_stop"() : () -> ()
    %cst_49 = arith.constant 0.353553385 : f32
    %127 = vector.broadcast %cst_49 : f32 to vector<2x8x8xf32>
    %128 = arith.mulf %126, %127 : vector<2x8x8xf32>
    %129 = vector.broadcast %0 : vector<2x1x8xf32> to vector<2x8x8xf32>
    %130 = arith.addf %128, %129 : vector<2x8x8xf32>
    %cst_50 = arith.constant dense<0xFF800000> : vector<2x8xf32>
    %131 = vector.multi_reduction <maximumf>, %130, %cst_50 [2] : vector<2x8x8xf32> to vector<2x8xf32>
    %132 = vector.shape_cast %131 : vector<2x8xf32> to vector<2x8x1xf32>
    %133 = vector.broadcast %132 : vector<2x8x1xf32> to vector<2x8x8xf32>
    %134 = arith.subf %130, %133 : vector<2x8x8xf32>
    %135 = math.exp %134 : vector<2x8x8xf32>
    %cst_51 = arith.constant dense<0.000000e+00> : vector<2x8xf32>
    %136 = vector.multi_reduction <add>, %135, %cst_51 [2] : vector<2x8x8xf32> to vector<2x8xf32>
    %137 = vector.shape_cast %136 : vector<2x8xf32> to vector<2x8x1xf32>
    %138 = tpu.reciprocal %137 {approx = true} : vector<2x8x1xf32> -> vector<2x8x1xf32>
    %139 = vector.broadcast %138 : vector<2x8x1xf32> to vector<2x8x8xf32>
    %140 = arith.mulf %135, %139 : vector<2x8x8xf32>
    %141 = arith.truncf %140 : vector<2x8x8xf32> to vector<2x8x8xbf16>
    "tpu.trace_start"() <{level = 10 : i32, message = "bqk,bkd->bqd"}> : () -> ()
    %cst_52 = arith.constant dense<0.000000e+00> : vector<2x8x8xf32>
    %142 = tpu.matmul %141, %125, %cst_52 {dimension_numbers = #tpu.dot_dimension_numbers<[2], [1], [1], [2], [0, 0, 0, 1, 1, 2], [0], [0]>} : vector<2x8x8xbf16>, vector<2x8x8xbf16>, vector<2x8x8xf32> -> vector<2x8x8xf32>
    "tpu.trace_stop"() : () -> ()
    %143 = tpu.concatenate %73, %96, %119, %142 in 2 : vector<2x8x8xf32>, vector<2x8x8xf32>, vector<2x8x8xf32>, vector<2x8x8xf32> -> vector<2x8x32xf32>
    %144 = vector.shape_cast %143 : vector<2x8x32xf32> to vector<16x32xf32>
    %145 = arith.truncf %144 : vector<16x32xf32> to vector<16x32xbf16>
    %c0_53 = arith.constant 0 : index
    %c0_54 = arith.constant 0 : index
    %c0_55 = arith.constant 0 : index
    %146 = vector.load %arg11[%c0_53, %c0_54, %c0_55] : memref<2x32x32xbf16, #tpu.memory_space<vmem>>, vector<1x32x32xbf16>
    %147 = vector.shape_cast %146 : vector<1x32x32xbf16> to vector<32x32xbf16>
    %cst_56 = arith.constant dense<0.000000e+00> : vector<16x32xf32>
    %148 = tpu.matmul %145, %147, %cst_56 {dimension_numbers = #tpu.dot_dimension_numbers<[1], [0], [0], [1], [0, 0, 1, 1], [], []>} : vector<16x32xbf16>, vector<32x32xbf16>, vector<16x32xf32> -> vector<16x32xf32>
    %c0_57 = arith.constant 0 : index
    %c0_58 = arith.constant 0 : index
    %c0_59 = arith.constant 0 : index
    %149 = vector.load %arg12[%c0_57, %c0_58, %c0_59] : memref<2x1x32xf32, #tpu.memory_space<vmem>>, vector<1x1x32xf32>
    %150 = vector.shape_cast %149 : vector<1x1x32xf32> to vector<1x32xf32>
    %151 = vector.broadcast %150 : vector<1x32xf32> to vector<16x32xf32>
    %152 = arith.addf %148, %151 : vector<16x32xf32>
    %153 = arith.addf %152, %25 : vector<16x32xf32>
    %c0_60 = arith.constant 0 : index
    %c0_61 = arith.constant 0 : index
    %c0_62 = arith.constant 0 : index
    %154 = vector.load %arg13[%c0_60, %c0_61, %c0_62] : memref<2x1x32xf32, #tpu.memory_space<vmem>>, vector<1x1x32xf32>
    %155 = vector.shape_cast %154 : vector<1x1x32xf32> to vector<1x32xf32>
    %c0_63 = arith.constant 0 : index
    %c0_64 = arith.constant 0 : index
    %c0_65 = arith.constant 0 : index
    %156 = vector.load %arg14[%c0_63, %c0_64, %c0_65] : memref<2x1x32xf32, #tpu.memory_space<vmem>>, vector<1x1x32xf32>
    %157 = vector.shape_cast %156 : vector<1x1x32xf32> to vector<1x32xf32>
    %cst_66 = arith.constant dense<0.000000e+00> : vector<16xf32>
    %158 = vector.multi_reduction <add>, %153, %cst_66 [1] : vector<16x32xf32> to vector<16xf32>
    %159 = vector.shape_cast %158 : vector<16xf32> to vector<16x1xf32>
    %cst_67 = arith.constant 3.200000e+01 : f32
    %160 = vector.broadcast %cst_67 : f32 to vector<16x1xf32>
    %161 = arith.divf %159, %160 : vector<16x1xf32>
    %162 = vector.broadcast %161 : vector<16x1xf32> to vector<16x32xf32>
    %163 = arith.subf %153, %162 : vector<16x32xf32>
    %164 = arith.mulf %163, %163 : vector<16x32xf32>
    %cst_68 = arith.constant dense<0.000000e+00> : vector<16xf32>
    %165 = vector.multi_reduction <add>, %164, %cst_68 [1] : vector<16x32xf32> to vector<16xf32>
    %166 = vector.shape_cast %165 : vector<16xf32> to vector<16x1xf32>
    %cst_69 = arith.constant 3.200000e+01 : f32
    %167 = vector.broadcast %cst_69 : f32 to vector<16x1xf32>
    %168 = arith.divf %166, %167 : vector<16x1xf32>
    %169 = vector.broadcast %161 : vector<16x1xf32> to vector<16x32xf32>
    %170 = arith.subf %153, %169 : vector<16x32xf32>
    %cst_70 = arith.constant 9.99999996E-13 : f32
    %171 = vector.broadcast %cst_70 : f32 to vector<16x1xf32>
    %172 = arith.addf %168, %171 : vector<16x1xf32>
    %173 = math.rsqrt %172 : vector<16x1xf32>
    %174 = vector.broadcast %173 : vector<16x1xf32> to vector<16x32xf32>
    %175 = arith.mulf %170, %174 : vector<16x32xf32>
    %176 = vector.broadcast %155 : vector<1x32xf32> to vector<16x32xf32>
    %177 = arith.mulf %175, %176 : vector<16x32xf32>
    %178 = vector.broadcast %157 : vector<1x32xf32> to vector<16x32xf32>
    %179 = arith.addf %177, %178 : vector<16x32xf32>
    %180 = arith.truncf %179 : vector<16x32xf32> to vector<16x32xbf16>
    %c0_71 = arith.constant 0 : index
    %c0_72 = arith.constant 0 : index
    %c0_73 = arith.constant 0 : index
    %181 = vector.load %arg15[%c0_71, %c0_72, %c0_73] : memref<2x32x64xbf16, #tpu.memory_space<vmem>>, vector<1x32x64xbf16>
    %182 = vector.shape_cast %181 : vector<1x32x64xbf16> to vector<32x64xbf16>
    %cst_74 = arith.constant dense<0.000000e+00> : vector<16x64xf32>
    %183 = tpu.matmul %180, %182, %cst_74 {dimension_numbers = #tpu.dot_dimension_numbers<[1], [0], [0], [1], [0, 0, 1, 1], [], []>} : vector<16x32xbf16>, vector<32x64xbf16>, vector<16x64xf32> -> vector<16x64xf32>
    %c0_75 = arith.constant 0 : index
    %c0_76 = arith.constant 0 : index
    %c0_77 = arith.constant 0 : index
    %184 = vector.load %arg16[%c0_75, %c0_76, %c0_77] : memref<2x1x64xf32, #tpu.memory_space<vmem>>, vector<1x1x64xf32>
    %185 = vector.shape_cast %184 : vector<1x1x64xf32> to vector<1x64xf32>
    %186 = vector.broadcast %185 : vector<1x64xf32> to vector<16x64xf32>
    %187 = arith.addf %183, %186 : vector<16x64xf32>
    %cst_78 = arith.constant 5.000000e-01 : f32
    %188 = vector.broadcast %cst_78 : f32 to vector<16x64xf32>
    %189 = arith.mulf %188, %187 : vector<16x64xf32>
    %cst_79 = arith.constant 0.707106769 : f32
    %190 = vector.broadcast %cst_79 : f32 to vector<16x64xf32>
    %191 = arith.mulf %187, %190 : vector<16x64xf32>
    %192 = math.erf %191 : vector<16x64xf32>
    %cst_80 = arith.constant 1.000000e+00 : f32
    %193 = vector.broadcast %cst_80 : f32 to vector<16x64xf32>
    %194 = arith.addf %193, %192 : vector<16x64xf32>
    %195 = arith.mulf %189, %194 : vector<16x64xf32>
    %196 = arith.truncf %195 : vector<16x64xf32> to vector<16x64xbf16>
    %c0_81 = arith.constant 0 : index
    %c0_82 = arith.constant 0 : index
    %c0_83 = arith.constant 0 : index
    %197 = vector.load %arg17[%c0_81, %c0_82, %c0_83] : memref<2x64x32xbf16, #tpu.memory_space<vmem>>, vector<1x64x32xbf16>
    %198 = vector.shape_cast %197 : vector<1x64x32xbf16> to vector<64x32xbf16>
    %cst_84 = arith.constant dense<0.000000e+00> : vector<16x32xf32>
    %199 = tpu.matmul %196, %198, %cst_84 {dimension_numbers = #tpu.dot_dimension_numbers<[1], [0], [0], [1], [0, 0, 1, 1], [], []>} : vector<16x64xbf16>, vector<64x32xbf16>, vector<16x32xf32> -> vector<16x32xf32>
    %c0_85 = arith.constant 0 : index
    %c0_86 = arith.constant 0 : index
    %c0_87 = arith.constant 0 : index
    %200 = vector.load %arg18[%c0_85, %c0_86, %c0_87] : memref<2x1x32xf32, #tpu.memory_space<vmem>>, vector<1x1x32xf32>
    %201 = vector.shape_cast %200 : vector<1x1x32xf32> to vector<1x32xf32>
    %202 = vector.broadcast %201 : vector<1x32xf32> to vector<16x32xf32>
    %203 = arith.addf %199, %202 : vector<16x32xf32>
    %204 = arith.addf %203, %179 : vector<16x32xf32>
    %c0_88 = arith.constant 0 : index
    %c0_89 = arith.constant 0 : index
    %c0_90 = arith.constant 0 : index
    %205 = vector.load %arg19[%c0_88, %c0_89, %c0_90] : memref<2x1x32xf32, #tpu.memory_space<vmem>>, vector<1x1x32xf32>
    %206 = vector.shape_cast %205 : vector<1x1x32xf32> to vector<1x32xf32>
    %c0_91 = arith.constant 0 : index
    %c0_92 = arith.constant 0 : index
    %c0_93 = arith.constant 0 : index
    %207 = vector.load %arg20[%c0_91, %c0_92, %c0_93] : memref<2x1x32xf32, #tpu.memory_space<vmem>>, vector<1x1x32xf32>
    %208 = vector.shape_cast %207 : vector<1x1x32xf32> to vector<1x32xf32>
    %cst_94 = arith.constant dense<0.000000e+00> : vector<16xf32>
    %209 = vector.multi_reduction <add>, %204, %cst_94 [1] : vector<16x32xf32> to vector<16xf32>
    %210 = vector.shape_cast %209 : vector<16xf32> to vector<16x1xf32>
    %cst_95 = arith.constant 3.200000e+01 : f32
    %211 = vector.broadcast %cst_95 : f32 to vector<16x1xf32>
    %212 = arith.divf %210, %211 : vector<16x1xf32>
    %213 = vector.broadcast %212 : vector<16x1xf32> to vector<16x32xf32>
    %214 = arith.subf %204, %213 : vector<16x32xf32>
    %215 = arith.mulf %214, %214 : vector<16x32xf32>
    %cst_96 = arith.constant dense<0.000000e+00> : vector<16xf32>
    %216 = vector.multi_reduction <add>, %215, %cst_96 [1] : vector<16x32xf32> to vector<16xf32>
    %217 = vector.shape_cast %216 : vector<16xf32> to vector<16x1xf32>
    %cst_97 = arith.constant 3.200000e+01 : f32
    %218 = vector.broadcast %cst_97 : f32 to vector<16x1xf32>
    %219 = arith.divf %217, %218 : vector<16x1xf32>
    %220 = vector.broadcast %212 : vector<16x1xf32> to vector<16x32xf32>
    %221 = arith.subf %204, %220 : vector<16x32xf32>
    %cst_98 = arith.constant 9.99999996E-13 : f32
    %222 = vector.broadcast %cst_98 : f32 to vector<16x1xf32>
    %223 = arith.addf %219, %222 : vector<16x1xf32>
    %224 = math.rsqrt %223 : vector<16x1xf32>
    %225 = vector.broadcast %224 : vector<16x1xf32> to vector<16x32xf32>
    %226 = arith.mulf %221, %225 : vector<16x32xf32>
    %227 = vector.broadcast %206 : vector<1x32xf32> to vector<16x32xf32>
    %228 = arith.mulf %226, %227 : vector<16x32xf32>
    %229 = vector.broadcast %208 : vector<1x32xf32> to vector<16x32xf32>
    %230 = arith.addf %228, %229 : vector<16x32xf32>
    %231 = arith.truncf %230 : vector<16x32xf32> to vector<16x32xbf16>
    %c1 = arith.constant 1 : index
    %c0_99 = arith.constant 0 : index
    %c0_100 = arith.constant 0 : index
    %232 = vector.load %arg5[%c1, %c0_99, %c0_100] : memref<2x32x32xbf16, #tpu.memory_space<vmem>>, vector<1x32x32xbf16>
    %233 = vector.shape_cast %232 : vector<1x32x32xbf16> to vector<32x32xbf16>
    %cst_101 = arith.constant dense<0.000000e+00> : vector<16x32xf32>
    %234 = tpu.matmul %231, %233, %cst_101 {dimension_numbers = #tpu.dot_dimension_numbers<[1], [0], [0], [1], [0, 0, 1, 1], [], []>} : vector<16x32xbf16>, vector<32x32xbf16>, vector<16x32xf32> -> vector<16x32xf32>
    %c1_102 = arith.constant 1 : index
    %c0_103 = arith.constant 0 : index
    %c0_104 = arith.constant 0 : index
    %235 = vector.load %arg6[%c1_102, %c0_103, %c0_104] : memref<2x1x32xf32, #tpu.memory_space<vmem>>, vector<1x1x32xf32>
    %236 = vector.shape_cast %235 : vector<1x1x32xf32> to vector<1x32xf32>
    %237 = vector.broadcast %236 : vector<1x32xf32> to vector<16x32xf32>
    %238 = arith.addf %234, %237 : vector<16x32xf32>
    %239 = vector.shape_cast %238 : vector<16x32xf32> to vector<2x8x32xf32>
    %c1_105 = arith.constant 1 : index
    %c0_106 = arith.constant 0 : index
    %c0_107 = arith.constant 0 : index
    %240 = vector.load %arg7[%c1_105, %c0_106, %c0_107] : memref<2x32x32xbf16, #tpu.memory_space<vmem>>, vector<1x32x32xbf16>
    %241 = vector.shape_cast %240 : vector<1x32x32xbf16> to vector<32x32xbf16>
    %cst_108 = arith.constant dense<0.000000e+00> : vector<16x32xf32>
    %242 = tpu.matmul %231, %241, %cst_108 {dimension_numbers = #tpu.dot_dimension_numbers<[1], [0], [0], [1], [0, 0, 1, 1], [], []>} : vector<16x32xbf16>, vector<32x32xbf16>, vector<16x32xf32> -> vector<16x32xf32>
    %c1_109 = arith.constant 1 : index
    %c0_110 = arith.constant 0 : index
    %c0_111 = arith.constant 0 : index
    %243 = vector.load %arg8[%c1_109, %c0_110, %c0_111] : memref<2x1x32xf32, #tpu.memory_space<vmem>>, vector<1x1x32xf32>
    %244 = vector.shape_cast %243 : vector<1x1x32xf32> to vector<1x32xf32>
    %245 = vector.broadcast %244 : vector<1x32xf32> to vector<16x32xf32>
    %246 = arith.addf %242, %245 : vector<16x32xf32>
    %247 = vector.shape_cast %246 : vector<16x32xf32> to vector<2x8x32xf32>
    %c1_112 = arith.constant 1 : index
    %c0_113 = arith.constant 0 : index
    %c0_114 = arith.constant 0 : index
    %248 = vector.load %arg9[%c1_112, %c0_113, %c0_114] : memref<2x32x32xbf16, #tpu.memory_space<vmem>>, vector<1x32x32xbf16>
    %249 = vector.shape_cast %248 : vector<1x32x32xbf16> to vector<32x32xbf16>
    %cst_115 = arith.constant dense<0.000000e+00> : vector<16x32xf32>
    %250 = tpu.matmul %231, %249, %cst_115 {dimension_numbers = #tpu.dot_dimension_numbers<[1], [0], [0], [1], [0, 0, 1, 1], [], []>} : vector<16x32xbf16>, vector<32x32xbf16>, vector<16x32xf32> -> vector<16x32xf32>
    %c1_116 = arith.constant 1 : index
    %c0_117 = arith.constant 0 : index
    %c0_118 = arith.constant 0 : index
    %251 = vector.load %arg10[%c1_116, %c0_117, %c0_118] : memref<2x1x32xf32, #tpu.memory_space<vmem>>, vector<1x1x32xf32>
    %252 = vector.shape_cast %251 : vector<1x1x32xf32> to vector<1x32xf32>
    %253 = vector.broadcast %252 : vector<1x32xf32> to vector<16x32xf32>
    %254 = arith.addf %250, %253 : vector<16x32xf32>
    %255 = vector.shape_cast %254 : vector<16x32xf32> to vector<2x8x32xf32>
    %256 = vector.extract_strided_slice %239 {offsets = [0, 0, 0], sizes = [2, 8, 8], strides = [1, 1, 1]} : vector<2x8x32xf32> to vector<2x8x8xf32>
    %257 = arith.truncf %256 : vector<2x8x8xf32> to vector<2x8x8xbf16>
    %258 = vector.extract_strided_slice %247 {offsets = [0, 0, 0], sizes = [2, 8, 8], strides = [1, 1, 1]} : vector<2x8x32xf32> to vector<2x8x8xf32>
    %259 = arith.truncf %258 : vector<2x8x8xf32> to vector<2x8x8xbf16>
    %260 = vector.extract_strided_slice %255 {offsets = [0, 0, 0], sizes = [2, 8, 8], strides = [1, 1, 1]} : vector<2x8x32xf32> to vector<2x8x8xf32>
    %261 = arith.truncf %260 : vector<2x8x8xf32> to vector<2x8x8xbf16>
    "tpu.trace_start"() <{level = 10 : i32, message = "bqd,bkd->bqk"}> : () -> ()
    %cst_119 = arith.constant dense<0.000000e+00> : vector<2x8x8xf32>
    %262 = tpu.matmul %257, %259, %cst_119 {dimension_numbers = #tpu.dot_dimension_numbers<[2], [2], [1], [1], [0, 0, 0, 1, 1, 1], [0], [0]>} : vector<2x8x8xbf16>, vector<2x8x8xbf16>, vector<2x8x8xf32> -> vector<2x8x8xf32>
    "tpu.trace_stop"() : () -> ()
    %cst_120 = arith.constant 0.353553385 : f32
    %263 = vector.broadcast %cst_120 : f32 to vector<2x8x8xf32>
    %264 = arith.mulf %262, %263 : vector<2x8x8xf32>
    %265 = vector.broadcast %0 : vector<2x1x8xf32> to vector<2x8x8xf32>
    %266 = arith.addf %264, %265 : vector<2x8x8xf32>
    %cst_121 = arith.constant dense<0xFF800000> : vector<2x8xf32>
    %267 = vector.multi_reduction <maximumf>, %266, %cst_121 [2] : vector<2x8x8xf32> to vector<2x8xf32>
    %268 = vector.shape_cast %267 : vector<2x8xf32> to vector<2x8x1xf32>
    %269 = vector.broadcast %268 : vector<2x8x1xf32> to vector<2x8x8xf32>
    %270 = arith.subf %266, %269 : vector<2x8x8xf32>
    %271 = math.exp %270 : vector<2x8x8xf32>
    %cst_122 = arith.constant dense<0.000000e+00> : vector<2x8xf32>
    %272 = vector.multi_reduction <add>, %271, %cst_122 [2] : vector<2x8x8xf32> to vector<2x8xf32>
    %273 = vector.shape_cast %272 : vector<2x8xf32> to vector<2x8x1xf32>
    %274 = tpu.reciprocal %273 {approx = true} : vector<2x8x1xf32> -> vector<2x8x1xf32>
    %275 = vector.broadcast %274 : vector<2x8x1xf32> to vector<2x8x8xf32>
    %276 = arith.mulf %271, %275 : vector<2x8x8xf32>
    %277 = arith.truncf %276 : vector<2x8x8xf32> to vector<2x8x8xbf16>
    "tpu.trace_start"() <{level = 10 : i32, message = "bqk,bkd->bqd"}> : () -> ()
    %cst_123 = arith.constant dense<0.000000e+00> : vector<2x8x8xf32>
    %278 = tpu.matmul %277, %261, %cst_123 {dimension_numbers = #tpu.dot_dimension_numbers<[2], [1], [1], [2], [0, 0, 0, 1, 1, 2], [0], [0]>} : vector<2x8x8xbf16>, vector<2x8x8xbf16>, vector<2x8x8xf32> -> vector<2x8x8xf32>
    "tpu.trace_stop"() : () -> ()
    %279 = vector.extract_strided_slice %239 {offsets = [0, 0, 8], sizes = [2, 8, 8], strides = [1, 1, 1]} : vector<2x8x32xf32> to vector<2x8x8xf32>
    %280 = arith.truncf %279 : vector<2x8x8xf32> to vector<2x8x8xbf16>
    %281 = vector.extract_strided_slice %247 {offsets = [0, 0, 8], sizes = [2, 8, 8], strides = [1, 1, 1]} : vector<2x8x32xf32> to vector<2x8x8xf32>
    %282 = arith.truncf %281 : vector<2x8x8xf32> to vector<2x8x8xbf16>
    %283 = vector.extract_strided_slice %255 {offsets = [0, 0, 8], sizes = [2, 8, 8], strides = [1, 1, 1]} : vector<2x8x32xf32> to vector<2x8x8xf32>
    %284 = arith.truncf %283 : vector<2x8x8xf32> to vector<2x8x8xbf16>
    "tpu.trace_start"() <{level = 10 : i32, message = "bqd,bkd->bqk"}> : () -> ()
    %cst_124 = arith.constant dense<0.000000e+00> : vector<2x8x8xf32>
    %285 = tpu.matmul %280, %282, %cst_124 {dimension_numbers = #tpu.dot_dimension_numbers<[2], [2], [1], [1], [0, 0, 0, 1, 1, 1], [0], [0]>} : vector<2x8x8xbf16>, vector<2x8x8xbf16>, vector<2x8x8xf32> -> vector<2x8x8xf32>
    "tpu.trace_stop"() : () -> ()
    %cst_125 = arith.constant 0.353553385 : f32
    %286 = vector.broadcast %cst_125 : f32 to vector<2x8x8xf32>
    %287 = arith.mulf %285, %286 : vector<2x8x8xf32>
    %288 = vector.broadcast %0 : vector<2x1x8xf32> to vector<2x8x8xf32>
    %289 = arith.addf %287, %288 : vector<2x8x8xf32>
    %cst_126 = arith.constant dense<0xFF800000> : vector<2x8xf32>
    %290 = vector.multi_reduction <maximumf>, %289, %cst_126 [2] : vector<2x8x8xf32> to vector<2x8xf32>
    %291 = vector.shape_cast %290 : vector<2x8xf32> to vector<2x8x1xf32>
    %292 = vector.broadcast %291 : vector<2x8x1xf32> to vector<2x8x8xf32>
    %293 = arith.subf %289, %292 : vector<2x8x8xf32>
    %294 = math.exp %293 : vector<2x8x8xf32>
    %cst_127 = arith.constant dense<0.000000e+00> : vector<2x8xf32>
    %295 = vector.multi_reduction <add>, %294, %cst_127 [2] : vector<2x8x8xf32> to vector<2x8xf32>
    %296 = vector.shape_cast %295 : vector<2x8xf32> to vector<2x8x1xf32>
    %297 = tpu.reciprocal %296 {approx = true} : vector<2x8x1xf32> -> vector<2x8x1xf32>
    %298 = vector.broadcast %297 : vector<2x8x1xf32> to vector<2x8x8xf32>
    %299 = arith.mulf %294, %298 : vector<2x8x8xf32>
    %300 = arith.truncf %299 : vector<2x8x8xf32> to vector<2x8x8xbf16>
    "tpu.trace_start"() <{level = 10 : i32, message = "bqk,bkd->bqd"}> : () -> ()
    %cst_128 = arith.constant dense<0.000000e+00> : vector<2x8x8xf32>
    %301 = tpu.matmul %300, %284, %cst_128 {dimension_numbers = #tpu.dot_dimension_numbers<[2], [1], [1], [2], [0, 0, 0, 1, 1, 2], [0], [0]>} : vector<2x8x8xbf16>, vector<2x8x8xbf16>, vector<2x8x8xf32> -> vector<2x8x8xf32>
    "tpu.trace_stop"() : () -> ()
    %302 = vector.extract_strided_slice %239 {offsets = [0, 0, 16], sizes = [2, 8, 8], strides = [1, 1, 1]} : vector<2x8x32xf32> to vector<2x8x8xf32>
    %303 = arith.truncf %302 : vector<2x8x8xf32> to vector<2x8x8xbf16>
    %304 = vector.extract_strided_slice %247 {offsets = [0, 0, 16], sizes = [2, 8, 8], strides = [1, 1, 1]} : vector<2x8x32xf32> to vector<2x8x8xf32>
    %305 = arith.truncf %304 : vector<2x8x8xf32> to vector<2x8x8xbf16>
    %306 = vector.extract_strided_slice %255 {offsets = [0, 0, 16], sizes = [2, 8, 8], strides = [1, 1, 1]} : vector<2x8x32xf32> to vector<2x8x8xf32>
    %307 = arith.truncf %306 : vector<2x8x8xf32> to vector<2x8x8xbf16>
    "tpu.trace_start"() <{level = 10 : i32, message = "bqd,bkd->bqk"}> : () -> ()
    %cst_129 = arith.constant dense<0.000000e+00> : vector<2x8x8xf32>
    %308 = tpu.matmul %303, %305, %cst_129 {dimension_numbers = #tpu.dot_dimension_numbers<[2], [2], [1], [1], [0, 0, 0, 1, 1, 1], [0], [0]>} : vector<2x8x8xbf16>, vector<2x8x8xbf16>, vector<2x8x8xf32> -> vector<2x8x8xf32>
    "tpu.trace_stop"() : () -> ()
    %cst_130 = arith.constant 0.353553385 : f32
    %309 = vector.broadcast %cst_130 : f32 to vector<2x8x8xf32>
    %310 = arith.mulf %308, %309 : vector<2x8x8xf32>
    %311 = vector.broadcast %0 : vector<2x1x8xf32> to vector<2x8x8xf32>
    %312 = arith.addf %310, %311 : vector<2x8x8xf32>
    %cst_131 = arith.constant dense<0xFF800000> : vector<2x8xf32>
    %313 = vector.multi_reduction <maximumf>, %312, %cst_131 [2] : vector<2x8x8xf32> to vector<2x8xf32>
    %314 = vector.shape_cast %313 : vector<2x8xf32> to vector<2x8x1xf32>
    %315 = vector.broadcast %314 : vector<2x8x1xf32> to vector<2x8x8xf32>
    %316 = arith.subf %312, %315 : vector<2x8x8xf32>
    %317 = math.exp %316 : vector<2x8x8xf32>
    %cst_132 = arith.constant dense<0.000000e+00> : vector<2x8xf32>
    %318 = vector.multi_reduction <add>, %317, %cst_132 [2] : vector<2x8x8xf32> to vector<2x8xf32>
    %319 = vector.shape_cast %318 : vector<2x8xf32> to vector<2x8x1xf32>
    %320 = tpu.reciprocal %319 {approx = true} : vector<2x8x1xf32> -> vector<2x8x1xf32>
    %321 = vector.broadcast %320 : vector<2x8x1xf32> to vector<2x8x8xf32>
    %322 = arith.mulf %317, %321 : vector<2x8x8xf32>
    %323 = arith.truncf %322 : vector<2x8x8xf32> to vector<2x8x8xbf16>
    "tpu.trace_start"() <{level = 10 : i32, message = "bqk,bkd->bqd"}> : () -> ()
    %cst_133 = arith.constant dense<0.000000e+00> : vector<2x8x8xf32>
    %324 = tpu.matmul %323, %307, %cst_133 {dimension_numbers = #tpu.dot_dimension_numbers<[2], [1], [1], [2], [0, 0, 0, 1, 1, 2], [0], [0]>} : vector<2x8x8xbf16>, vector<2x8x8xbf16>, vector<2x8x8xf32> -> vector<2x8x8xf32>
    "tpu.trace_stop"() : () -> ()
    %325 = vector.extract_strided_slice %239 {offsets = [0, 0, 24], sizes = [2, 8, 8], strides = [1, 1, 1]} : vector<2x8x32xf32> to vector<2x8x8xf32>
    %326 = arith.truncf %325 : vector<2x8x8xf32> to vector<2x8x8xbf16>
    %327 = vector.extract_strided_slice %247 {offsets = [0, 0, 24], sizes = [2, 8, 8], strides = [1, 1, 1]} : vector<2x8x32xf32> to vector<2x8x8xf32>
    %328 = arith.truncf %327 : vector<2x8x8xf32> to vector<2x8x8xbf16>
    %329 = vector.extract_strided_slice %255 {offsets = [0, 0, 24], sizes = [2, 8, 8], strides = [1, 1, 1]} : vector<2x8x32xf32> to vector<2x8x8xf32>
    %330 = arith.truncf %329 : vector<2x8x8xf32> to vector<2x8x8xbf16>
    "tpu.trace_start"() <{level = 10 : i32, message = "bqd,bkd->bqk"}> : () -> ()
    %cst_134 = arith.constant dense<0.000000e+00> : vector<2x8x8xf32>
    %331 = tpu.matmul %326, %328, %cst_134 {dimension_numbers = #tpu.dot_dimension_numbers<[2], [2], [1], [1], [0, 0, 0, 1, 1, 1], [0], [0]>} : vector<2x8x8xbf16>, vector<2x8x8xbf16>, vector<2x8x8xf32> -> vector<2x8x8xf32>
    "tpu.trace_stop"() : () -> ()
    %cst_135 = arith.constant 0.353553385 : f32
    %332 = vector.broadcast %cst_135 : f32 to vector<2x8x8xf32>
    %333 = arith.mulf %331, %332 : vector<2x8x8xf32>
    %334 = vector.broadcast %0 : vector<2x1x8xf32> to vector<2x8x8xf32>
    %335 = arith.addf %333, %334 : vector<2x8x8xf32>
    %cst_136 = arith.constant dense<0xFF800000> : vector<2x8xf32>
    %336 = vector.multi_reduction <maximumf>, %335, %cst_136 [2] : vector<2x8x8xf32> to vector<2x8xf32>
    %337 = vector.shape_cast %336 : vector<2x8xf32> to vector<2x8x1xf32>
    %338 = vector.broadcast %337 : vector<2x8x1xf32> to vector<2x8x8xf32>
    %339 = arith.subf %335, %338 : vector<2x8x8xf32>
    %340 = math.exp %339 : vector<2x8x8xf32>
    %cst_137 = arith.constant dense<0.000000e+00> : vector<2x8xf32>
    %341 = vector.multi_reduction <add>, %340, %cst_137 [2] : vector<2x8x8xf32> to vector<2x8xf32>
    %342 = vector.shape_cast %341 : vector<2x8xf32> to vector<2x8x1xf32>
    %343 = tpu.reciprocal %342 {approx = true} : vector<2x8x1xf32> -> vector<2x8x1xf32>
    %344 = vector.broadcast %343 : vector<2x8x1xf32> to vector<2x8x8xf32>
    %345 = arith.mulf %340, %344 : vector<2x8x8xf32>
    %346 = arith.truncf %345 : vector<2x8x8xf32> to vector<2x8x8xbf16>
    "tpu.trace_start"() <{level = 10 : i32, message = "bqk,bkd->bqd"}> : () -> ()
    %cst_138 = arith.constant dense<0.000000e+00> : vector<2x8x8xf32>
    %347 = tpu.matmul %346, %330, %cst_138 {dimension_numbers = #tpu.dot_dimension_numbers<[2], [1], [1], [2], [0, 0, 0, 1, 1, 2], [0], [0]>} : vector<2x8x8xbf16>, vector<2x8x8xbf16>, vector<2x8x8xf32> -> vector<2x8x8xf32>
    "tpu.trace_stop"() : () -> ()
    %348 = tpu.concatenate %278, %301, %324, %347 in 2 : vector<2x8x8xf32>, vector<2x8x8xf32>, vector<2x8x8xf32>, vector<2x8x8xf32> -> vector<2x8x32xf32>
    %349 = vector.shape_cast %348 : vector<2x8x32xf32> to vector<16x32xf32>
    %350 = arith.truncf %349 : vector<16x32xf32> to vector<16x32xbf16>
    %c1_139 = arith.constant 1 : index
    %c0_140 = arith.constant 0 : index
    %c0_141 = arith.constant 0 : index
    %351 = vector.load %arg11[%c1_139, %c0_140, %c0_141] : memref<2x32x32xbf16, #tpu.memory_space<vmem>>, vector<1x32x32xbf16>
    %352 = vector.shape_cast %351 : vector<1x32x32xbf16> to vector<32x32xbf16>
    %cst_142 = arith.constant dense<0.000000e+00> : vector<16x32xf32>
    %353 = tpu.matmul %350, %352, %cst_142 {dimension_numbers = #tpu.dot_dimension_numbers<[1], [0], [0], [1], [0, 0, 1, 1], [], []>} : vector<16x32xbf16>, vector<32x32xbf16>, vector<16x32xf32> -> vector<16x32xf32>
    %c1_143 = arith.constant 1 : index
    %c0_144 = arith.constant 0 : index
    %c0_145 = arith.constant 0 : index
    %354 = vector.load %arg12[%c1_143, %c0_144, %c0_145] : memref<2x1x32xf32, #tpu.memory_space<vmem>>, vector<1x1x32xf32>
    %355 = vector.shape_cast %354 : vector<1x1x32xf32> to vector<1x32xf32>
    %356 = vector.broadcast %355 : vector<1x32xf32> to vector<16x32xf32>
    %357 = arith.addf %353, %356 : vector<16x32xf32>
    %358 = arith.addf %357, %230 : vector<16x32xf32>
    %c1_146 = arith.constant 1 : index
    %c0_147 = arith.constant 0 : index
    %c0_148 = arith.constant 0 : index
    %359 = vector.load %arg13[%c1_146, %c0_147, %c0_148] : memref<2x1x32xf32, #tpu.memory_space<vmem>>, vector<1x1x32xf32>
    %360 = vector.shape_cast %359 : vector<1x1x32xf32> to vector<1x32xf32>
    %c1_149 = arith.constant 1 : index
    %c0_150 = arith.constant 0 : index
    %c0_151 = arith.constant 0 : index
    %361 = vector.load %arg14[%c1_149, %c0_150, %c0_151] : memref<2x1x32xf32, #tpu.memory_space<vmem>>, vector<1x1x32xf32>
    %362 = vector.shape_cast %361 : vector<1x1x32xf32> to vector<1x32xf32>
    %cst_152 = arith.constant dense<0.000000e+00> : vector<16xf32>
    %363 = vector.multi_reduction <add>, %358, %cst_152 [1] : vector<16x32xf32> to vector<16xf32>
    %364 = vector.shape_cast %363 : vector<16xf32> to vector<16x1xf32>
    %cst_153 = arith.constant 3.200000e+01 : f32
    %365 = vector.broadcast %cst_153 : f32 to vector<16x1xf32>
    %366 = arith.divf %364, %365 : vector<16x1xf32>
    %367 = vector.broadcast %366 : vector<16x1xf32> to vector<16x32xf32>
    %368 = arith.subf %358, %367 : vector<16x32xf32>
    %369 = arith.mulf %368, %368 : vector<16x32xf32>
    %cst_154 = arith.constant dense<0.000000e+00> : vector<16xf32>
    %370 = vector.multi_reduction <add>, %369, %cst_154 [1] : vector<16x32xf32> to vector<16xf32>
    %371 = vector.shape_cast %370 : vector<16xf32> to vector<16x1xf32>
    %cst_155 = arith.constant 3.200000e+01 : f32
    %372 = vector.broadcast %cst_155 : f32 to vector<16x1xf32>
    %373 = arith.divf %371, %372 : vector<16x1xf32>
    %374 = vector.broadcast %366 : vector<16x1xf32> to vector<16x32xf32>
    %375 = arith.subf %358, %374 : vector<16x32xf32>
    %cst_156 = arith.constant 9.99999996E-13 : f32
    %376 = vector.broadcast %cst_156 : f32 to vector<16x1xf32>
    %377 = arith.addf %373, %376 : vector<16x1xf32>
    %378 = math.rsqrt %377 : vector<16x1xf32>
    %379 = vector.broadcast %378 : vector<16x1xf32> to vector<16x32xf32>
    %380 = arith.mulf %375, %379 : vector<16x32xf32>
    %381 = vector.broadcast %360 : vector<1x32xf32> to vector<16x32xf32>
    %382 = arith.mulf %380, %381 : vector<16x32xf32>
    %383 = vector.broadcast %362 : vector<1x32xf32> to vector<16x32xf32>
    %384 = arith.addf %382, %383 : vector<16x32xf32>
    %385 = arith.truncf %384 : vector<16x32xf32> to vector<16x32xbf16>
    %c1_157 = arith.constant 1 : index
    %c0_158 = arith.constant 0 : index
    %c0_159 = arith.constant 0 : index
    %386 = vector.load %arg15[%c1_157, %c0_158, %c0_159] : memref<2x32x64xbf16, #tpu.memory_space<vmem>>, vector<1x32x64xbf16>
    %387 = vector.shape_cast %386 : vector<1x32x64xbf16> to vector<32x64xbf16>
    %cst_160 = arith.constant dense<0.000000e+00> : vector<16x64xf32>
    %388 = tpu.matmul %385, %387, %cst_160 {dimension_numbers = #tpu.dot_dimension_numbers<[1], [0], [0], [1], [0, 0, 1, 1], [], []>} : vector<16x32xbf16>, vector<32x64xbf16>, vector<16x64xf32> -> vector<16x64xf32>
    %c1_161 = arith.constant 1 : index
    %c0_162 = arith.constant 0 : index
    %c0_163 = arith.constant 0 : index
    %389 = vector.load %arg16[%c1_161, %c0_162, %c0_163] : memref<2x1x64xf32, #tpu.memory_space<vmem>>, vector<1x1x64xf32>
    %390 = vector.shape_cast %389 : vector<1x1x64xf32> to vector<1x64xf32>
    %391 = vector.broadcast %390 : vector<1x64xf32> to vector<16x64xf32>
    %392 = arith.addf %388, %391 : vector<16x64xf32>
    %cst_164 = arith.constant 5.000000e-01 : f32
    %393 = vector.broadcast %cst_164 : f32 to vector<16x64xf32>
    %394 = arith.mulf %393, %392 : vector<16x64xf32>
    %cst_165 = arith.constant 0.707106769 : f32
    %395 = vector.broadcast %cst_165 : f32 to vector<16x64xf32>
    %396 = arith.mulf %392, %395 : vector<16x64xf32>
    %397 = math.erf %396 : vector<16x64xf32>
    %cst_166 = arith.constant 1.000000e+00 : f32
    %398 = vector.broadcast %cst_166 : f32 to vector<16x64xf32>
    %399 = arith.addf %398, %397 : vector<16x64xf32>
    %400 = arith.mulf %394, %399 : vector<16x64xf32>
    %401 = arith.truncf %400 : vector<16x64xf32> to vector<16x64xbf16>
    %c1_167 = arith.constant 1 : index
    %c0_168 = arith.constant 0 : index
    %c0_169 = arith.constant 0 : index
    %402 = vector.load %arg17[%c1_167, %c0_168, %c0_169] : memref<2x64x32xbf16, #tpu.memory_space<vmem>>, vector<1x64x32xbf16>
    %403 = vector.shape_cast %402 : vector<1x64x32xbf16> to vector<64x32xbf16>
    %cst_170 = arith.constant dense<0.000000e+00> : vector<16x32xf32>
    %404 = tpu.matmul %401, %403, %cst_170 {dimension_numbers = #tpu.dot_dimension_numbers<[1], [0], [0], [1], [0, 0, 1, 1], [], []>} : vector<16x64xbf16>, vector<64x32xbf16>, vector<16x32xf32> -> vector<16x32xf32>
    %c1_171 = arith.constant 1 : index
    %c0_172 = arith.constant 0 : index
    %c0_173 = arith.constant 0 : index
    %405 = vector.load %arg18[%c1_171, %c0_172, %c0_173] : memref<2x1x32xf32, #tpu.memory_space<vmem>>, vector<1x1x32xf32>
    %406 = vector.shape_cast %405 : vector<1x1x32xf32> to vector<1x32xf32>
    %407 = vector.broadcast %406 : vector<1x32xf32> to vector<16x32xf32>
    %408 = arith.addf %404, %407 : vector<16x32xf32>
    %409 = arith.addf %408, %384 : vector<16x32xf32>
    %c1_174 = arith.constant 1 : index
    %c0_175 = arith.constant 0 : index
    %c0_176 = arith.constant 0 : index
    %410 = vector.load %arg19[%c1_174, %c0_175, %c0_176] : memref<2x1x32xf32, #tpu.memory_space<vmem>>, vector<1x1x32xf32>
    %411 = vector.shape_cast %410 : vector<1x1x32xf32> to vector<1x32xf32>
    %c1_177 = arith.constant 1 : index
    %c0_178 = arith.constant 0 : index
    %c0_179 = arith.constant 0 : index
    %412 = vector.load %arg20[%c1_177, %c0_178, %c0_179] : memref<2x1x32xf32, #tpu.memory_space<vmem>>, vector<1x1x32xf32>
    %413 = vector.shape_cast %412 : vector<1x1x32xf32> to vector<1x32xf32>
    %cst_180 = arith.constant dense<0.000000e+00> : vector<16xf32>
    %414 = vector.multi_reduction <add>, %409, %cst_180 [1] : vector<16x32xf32> to vector<16xf32>
    %415 = vector.shape_cast %414 : vector<16xf32> to vector<16x1xf32>
    %cst_181 = arith.constant 3.200000e+01 : f32
    %416 = vector.broadcast %cst_181 : f32 to vector<16x1xf32>
    %417 = arith.divf %415, %416 : vector<16x1xf32>
    %418 = vector.broadcast %417 : vector<16x1xf32> to vector<16x32xf32>
    %419 = arith.subf %409, %418 : vector<16x32xf32>
    %420 = arith.mulf %419, %419 : vector<16x32xf32>
    %cst_182 = arith.constant dense<0.000000e+00> : vector<16xf32>
    %421 = vector.multi_reduction <add>, %420, %cst_182 [1] : vector<16x32xf32> to vector<16xf32>
    %422 = vector.shape_cast %421 : vector<16xf32> to vector<16x1xf32>
    %cst_183 = arith.constant 3.200000e+01 : f32
    %423 = vector.broadcast %cst_183 : f32 to vector<16x1xf32>
    %424 = arith.divf %422, %423 : vector<16x1xf32>
    %425 = vector.broadcast %417 : vector<16x1xf32> to vector<16x32xf32>
    %426 = arith.subf %409, %425 : vector<16x32xf32>
    %cst_184 = arith.constant 9.99999996E-13 : f32
    %427 = vector.broadcast %cst_184 : f32 to vector<16x1xf32>
    %428 = arith.addf %424, %427 : vector<16x1xf32>
    %429 = math.rsqrt %428 : vector<16x1xf32>
    %430 = vector.broadcast %429 : vector<16x1xf32> to vector<16x32xf32>
    %431 = arith.mulf %426, %430 : vector<16x32xf32>
    %432 = vector.broadcast %411 : vector<1x32xf32> to vector<16x32xf32>
    %433 = arith.mulf %431, %432 : vector<16x32xf32>
    %434 = vector.broadcast %413 : vector<1x32xf32> to vector<16x32xf32>
    %435 = arith.addf %433, %434 : vector<16x32xf32>
    %436 = vector.shape_cast %435 : vector<16x32xf32> to vector<2x8x32xf32>
    %437 = vector.extract_strided_slice %436 {offsets = [0, 0, 0], sizes = [2, 1, 32], strides = [1, 1, 1]} : vector<2x8x32xf32> to vector<2x1x32xf32>
    %438 = vector.shape_cast %437 : vector<2x1x32xf32> to vector<2x32xf32>
    %439 = arith.truncf %438 : vector<2x32xf32> to vector<2x32xbf16>
    %c0_185 = arith.constant 0 : index
    %c0_186 = arith.constant 0 : index
    %440 = vector.load %arg21[%c0_185, %c0_186] : memref<32x32xbf16, #tpu.memory_space<vmem>>, vector<32x32xbf16>
    %cst_187 = arith.constant dense<0.000000e+00> : vector<2x32xf32>
    %441 = tpu.matmul %439, %440, %cst_187 {dimension_numbers = #tpu.dot_dimension_numbers<[1], [0], [0], [1], [0, 0, 1, 1], [], []>} : vector<2x32xbf16>, vector<32x32xbf16>, vector<2x32xf32> -> vector<2x32xf32>
    %c0_188 = arith.constant 0 : index
    %c0_189 = arith.constant 0 : index
    %442 = vector.load %arg22[%c0_188, %c0_189] : memref<1x32xf32, #tpu.memory_space<vmem>>, vector<1x32xf32>
    %443 = vector.broadcast %442 : vector<1x32xf32> to vector<2x32xf32>
    %444 = arith.addf %441, %443 : vector<2x32xf32>
    %445 = math.tanh %444 : vector<2x32xf32>
    %446 = arith.truncf %445 : vector<2x32xf32> to vector<2x32xbf16>
    %c0_190 = arith.constant 0 : index
    %c0_191 = arith.constant 0 : index
    %447 = vector.load %arg23[%c0_190, %c0_191] : memref<32x3xbf16, #tpu.memory_space<vmem>>, vector<32x3xbf16>
    %cst_192 = arith.constant dense<0.000000e+00> : vector<2x3xf32>
    %448 = tpu.matmul %446, %447, %cst_192 {dimension_numbers = #tpu.dot_dimension_numbers<[1], [0], [0], [1], [0, 0, 1, 1], [], []>} : vector<2x32xbf16>, vector<32x3xbf16>, vector<2x3xf32> -> vector<2x3xf32>
    %c0_193 = arith.constant 0 : index
    %c0_194 = arith.constant 0 : index
    %449 = vector.load %arg24[%c0_193, %c0_194] : memref<1x3xf32, #tpu.memory_space<vmem>>, vector<1x3xf32>
    %450 = vector.broadcast %449 : vector<1x3xf32> to vector<2x3xf32>
    %451 = arith.addf %448, %450 : vector<2x3xf32>
    %c0_195 = arith.constant 0 : index
    %c0_196 = arith.constant 0 : index
    %452 = vector.load %arg25[%c0_195, %c0_196] : memref<2x3xf32, #tpu.memory_space<vmem>>, vector<2x3xf32>
    tpu.vector_store %arg25[%c0_195, %c0_196], %451 {strides = array<i32>} : memref<2x3xf32, #tpu.memory_space<vmem>>, vector<2x3xf32>,
    %453 = tpu.iota {dimensions = array<i32: 1>} : vector<2x3xi32>
    %cst_197 = arith.constant dense<0xFF800000> : vector<2xf32>
    %454 = vector.multi_reduction <maximumf>, %451, %cst_197 [1] : vector<2x3xf32> to vector<2xf32>
    %455 = vector.shape_cast %454 : vector<2xf32> to vector<2x1xf32>
    %456 = vector.broadcast %455 : vector<2x1xf32> to vector<2x3xf32>
    %457 = arith.cmpf oge, %451, %456 : vector<2x3xf32>
    %c2147483647_i32 = arith.constant 2147483647 : i32
    %458 = vector.broadcast %c2147483647_i32 : i32 to vector<2x3xi32>
    %459 = arith.select %457, %453, %458 : vector<2x3xi1>, vector<2x3xi32>
    %cst_198 = arith.constant dense<2147483647> : vector<2xi32>
    %460 = vector.multi_reduction <minsi>, %459, %cst_198 [1] : vector<2x3xi32> to vector<2xi32>
    %461 = vector.shape_cast %460 : vector<2xi32> to vector<2x1xi32>
    %c0_199 = arith.constant 0 : index
    %c0_200 = arith.constant 0 : index
    %462 = vector.load %arg26[%c0_199, %c0_200] : memref<2x1xi32, #tpu.memory_space<vmem>>, vector<2x1xi32>
    tpu.vector_store %arg26[%c0_199, %c0_200], %461 {strides = array<i32>} : memref<2x1xi32, #tpu.memory_space<vmem>>, vector<2x1xi32>,
    return
  }
  func.func @transform_0(%arg0: i32) -> (i32, i32) {
    %c0_i32 = arith.constant 0 : i32
    %c0_i32_0 = arith.constant 0 : i32
    %c0_i32_1 = arith.constant 0 : i32
    return %c0_i32, %c0_i32_0 : i32, i32
  }
  func.func @transform_1(%arg0: i32) -> (i32, i32, i32) {
    %c0_i32 = arith.constant 0 : i32
    %c0_i32_0 = arith.constant 0 : i32
    %c0_i32_1 = arith.constant 0 : i32
    %c0_i32_2 = arith.constant 0 : i32
    return %c0_i32, %c0_i32_0, %c0_i32_1 : i32, i32, i32
  }
  func.func @transform_2(%arg0: i32) -> (i32, i32) {
    %c0_i32 = arith.constant 0 : i32
    %c0_i32_0 = arith.constant 0 : i32
    %c0_i32_1 = arith.constant 0 : i32
    return %c0_i32, %c0_i32_0 : i32, i32
  }
  func.func @transform_3(%arg0: i32) -> (i32, i32) {
    %c0_i32 = arith.constant 0 : i32
    %c0_i32_0 = arith.constant 0 : i32
    %c0_i32_1 = arith.constant 0 : i32
    return %c0_i32, %c0_i32_0 : i32, i32
  }
  func.func @transform_4(%arg0: i32) -> (i32, i32, i32) {
    %c0_i32 = arith.constant 0 : i32
    %c0_i32_0 = arith.constant 0 : i32
    %c0_i32_1 = arith.constant 0 : i32
    %c0_i32_2 = arith.constant 0 : i32
    return %c0_i32, %c0_i32_0, %c0_i32_1 : i32, i32, i32
  }
  func.func @transform_5(%arg0: i32) -> (i32, i32, i32) {
    %c0_i32 = arith.constant 0 : i32
    %c0_i32_0 = arith.constant 0 : i32
    %c0_i32_1 = arith.constant 0 : i32
    %c0_i32_2 = arith.constant 0 : i32
    return %c0_i32, %c0_i32_0, %c0_i32_1 : i32, i32, i32
  }
  func.func @transform_6(%arg0: i32) -> (i32, i32, i32) {
    %c0_i32 = arith.constant 0 : i32
    %c0_i32_0 = arith.constant 0 : i32
    %c0_i32_1 = arith.constant 0 : i32
    %c0_i32_2 = arith.constant 0 : i32
    return %c0_i32, %c0_i32_0, %c0_i32_1 : i32, i32, i32
  }
  func.func @transform_7(%arg0: i32) -> (i32, i32, i32) {
    %c0_i32 = arith.constant 0 : i32
    %c0_i32_0 = arith.constant 0 : i32
    %c0_i32_1 = arith.constant 0 : i32
    %c0_i32_2 = arith.constant 0 : i32
    return %c0_i32, %c0_i32_0, %c0_i32_1 : i32, i32, i32
  }
  func.func @transform_8(%arg0: i32) -> (i32, i32, i32) {
    %c0_i32 = arith.constant 0 : i32
    %c0_i32_0 = arith.constant 0 : i32
    %c0_i32_1 = arith.constant 0 : i32
    %c0_i32_2 = arith.constant 0 : i32
    return %c0_i32, %c0_i32_0, %c0_i32_1 : i32, i32, i32
  }
  func.func @transform_9(%arg0: i32) -> (i32, i32, i32) {
    %c0_i32 = arith.constant 0 : i32
    %c0_i32_0 = arith.constant 0 : i32
    %c0_i32_1 = arith.constant 0 : i32
    %c0_i32_2 = arith.constant 0 : i32
    return %c0_i32, %c0_i32_0, %c0_i32_1 : i32, i32, i32
  }
  func.func @transform_10(%arg0: i32) -> (i32, i32, i32) {
    %c0_i32 = arith.constant 0 : i32
    %c0_i32_0 = arith.constant 0 : i32
    %c0_i32_1 = arith.constant 0 : i32
    %c0_i32_2 = arith.constant 0 : i32
    return %c0_i32, %c0_i32_0, %c0_i32_1 : i32, i32, i32
  }
  func.func @transform_11(%arg0: i32) -> (i32, i32, i32) {
    %c0_i32 = arith.constant 0 : i32
    %c0_i32_0 = arith.constant 0 : i32
    %c0_i32_1 = arith.constant 0 : i32
    %c0_i32_2 = arith.constant 0 : i32
    return %c0_i32, %c0_i32_0, %c0_i32_1 : i32, i32, i32
  }
  func.func @transform_12(%arg0: i32) -> (i32, i32, i32) {
    %c0_i32 = arith.constant 0 : i32
    %c0_i32_0 = arith.constant 0 : i32
    %c0_i32_1 = arith.constant 0 : i32
    %c0_i32_2 = arith.constant 0 : i32
    return %c0_i32, %c0_i32_0, %c0_i32_1 : i32, i32, i32
  }
  func.func @transform_13(%arg0: i32) -> (i32, i32, i32) {
    %c0_i32 = arith.constant 0 : i32
    %c0_i32_0 = arith.constant 0 : i32
    %c0_i32_1 = arith.constant 0 : i32
    %c0_i32_2 = arith.constant 0 : i32
    return %c0_i32, %c0_i32_0, %c0_i32_1 : i32, i32, i32
  }
  func.func @transform_14(%arg0: i32) -> (i32, i32, i32) {
    %c0_i32 = arith.constant 0 : i32
    %c0_i32_0 = arith.constant 0 : i32
    %c0_i32_1 = arith.constant 0 : i32
    %c0_i32_2 = arith.constant 0 : i32
    return %c0_i32, %c0_i32_0, %c0_i32_1 : i32, i32, i32
  }
  func.func @transform_15(%arg0: i32) -> (i32, i32, i32) {
    %c0_i32 = arith.constant 0 : i32
    %c0_i32_0 = arith.constant 0 : i32
    %c0_i32_1 = arith.constant 0 : i32
    %c0_i32_2 = arith.constant 0 : i32
    return %c0_i32, %c0_i32_0, %c0_i32_1 : i32, i32, i32
  }
  func.func @transform_16(%arg0: i32) -> (i32, i32, i32) {
    %c0_i32 = arith.constant 0 : i32
    %c0_i32_0 = arith.constant 0 : i32
    %c0_i32_1 = arith.constant 0 : i32
    %c0_i32_2 = arith.constant 0 : i32
    return %c0_i32, %c0_i32_0, %c0_i32_1 : i32, i32, i32
  }
  func.func @transform_17(%arg0: i32) -> (i32, i32, i32) {
    %c0_i32 = arith.constant 0 : i32
    %c0_i32_0 = arith.constant 0 : i32
    %c0_i32_1 = arith.constant 0 : i32
    %c0_i32_2 = arith.constant 0 : i32
    return %c0_i32, %c0_i32_0, %c0_i32_1 : i32, i32, i32
  }
  func.func @transform_18(%arg0: i32) -> (i32, i32, i32) {
    %c0_i32 = arith.constant 0 : i32
    %c0_i32_0 = arith.constant 0 : i32
    %c0_i32_1 = arith.constant 0 : i32
    %c0_i32_2 = arith.constant 0 : i32
    return %c0_i32, %c0_i32_0, %c0_i32_1 : i32, i32, i32
  }
  func.func @transform_19(%arg0: i32) -> (i32, i32, i32) {
    %c0_i32 = arith.constant 0 : i32
    %c0_i32_0 = arith.constant 0 : i32
    %c0_i32_1 = arith.constant 0 : i32
    %c0_i32_2 = arith.constant 0 : i32
    return %c0_i32, %c0_i32_0, %c0_i32_1 : i32, i32, i32
  }
  func.func @transform_20(%arg0: i32) -> (i32, i32) {
    %c0_i32 = arith.constant 0 : i32
    %c0_i32_0 = arith.constant 0 : i32
    %c0_i32_1 = arith.constant 0 : i32
    return %c0_i32, %c0_i32_0 : i32, i32
  }
  func.func @transform_21(%arg0: i32) -> (i32, i32) {
    %c0_i32 = arith.constant 0 : i32
    %c0_i32_0 = arith.constant 0 : i32
    %c0_i32_1 = arith.constant 0 : i32
    return %c0_i32, %c0_i32_0 : i32, i32
  }
  func.func @transform_22(%arg0: i32) -> (i32, i32) {
    %c0_i32 = arith.constant 0 : i32
    %c0_i32_0 = arith.constant 0 : i32
    %c0_i32_1 = arith.constant 0 : i32
    return %c0_i32, %c0_i32_0 : i32, i32
  }
  func.func @transform_23(%arg0: i32) -> (i32, i32) {
    %c0_i32 = arith.constant 0 : i32
    %c0_i32_0 = arith.constant 0 : i32
    %c0_i32_1 = arith.constant 0 : i32
    return %c0_i32, %c0_i32_0 : i32, i32
  }
  func.func @transform_24(%arg0: i32) -> (i32, i32) {
    %c0_i32 = arith.constant 0 : i32
    %c0_i32_0 = arith.constant 0 : i32
    %c0_i32_1 = arith.constant 0 : i32
    return %c0_i32, %c0_i32_0 : i32, i32
  }
  func.func @transform_25(%arg0: i32) -> (i32, i32) {
    %c0_i32 = arith.constant 0 : i32
    %c0_i32_0 = arith.constant 0 : i32
    %c0_i32_1 = arith.constant 0 : i32
    return %c0_i32, %c0_i32_0 : i32, i32
  }
}

</mosaic_0001>

<llo_original>
// kernel: tpu_custom_call.1
$region0: #{tpu_custom_call.1}
  #allocation0 [shape = 'u32[]', space=smem, size = 0x4, offset = 0x4, fixed_abs, tag = 'smem constant byte address 0x4 - core index']
  #allocation1 [shape = 'u32[144,128]{1,0:T(1,128)}', space=vmem, size = 0x12000, scoped, tag = 'internal scratch']
  %s0 = inlined_call_operand.hbm [shape: f32[16,32], index: 0, kind: input, shape index: {}]
  %s1 = inlined_call_operand.hbm [shape: f32[2,1,8], index: 1, kind: input, shape index: {}]
  %s2 = inlined_call_operand.hbm [shape: f32[1,32], index: 2, kind: input, shape index: {}]
  %s3 = inlined_call_operand.hbm [shape: f32[1,32], index: 3, kind: input, shape index: {}]
  %s4 = inlined_call_operand.vmem [shape: bf16[2,32,32], index: 4, kind: input, shape index: {}]
  %s5 = inlined_call_operand.hbm [shape: f32[2,1,32], index: 5, kind: input, shape index: {}]
  %s6 = inlined_call_operand.vmem [shape: bf16[2,32,32], index: 6, kind: input, shape index: {}]
  %s7 = inlined_call_operand.hbm [shape: f32[2,1,32], index: 7, kind: input, shape index: {}]
  %s8 = inlined_call_operand.vmem [shape: bf16[2,32,32], index: 8, kind: input, shape index: {}]
  %s9 = inlined_call_operand.hbm [shape: f32[2,1,32], index: 9, kind: input, shape index: {}]
  %s10 = inlined_call_operand.hbm [shape: bf16[2,32,32], index: 10, kind: input, shape index: {}]
  %s11 = inlined_call_operand.hbm [shape: f32[2,1,32], index: 11, kind: input, shape index: {}]
  %s12 = inlined_call_operand.hbm [shape: f32[2,1,32], index: 12, kind: input, shape index: {}]
  %s13 = inlined_call_operand.hbm [shape: f32[2,1,32], index: 13, kind: input, shape index: {}]
  %s14 = inlined_call_operand.hbm [shape: bf16[2,32,64], index: 14, kind: input, shape index: {}]
  %s15 = inlined_call_operand.hbm [shape: f32[2,1,64], index: 15, kind: input, shape index: {}]
  %s16 = inlined_call_operand.vmem [shape: bf16[2,64,32], index: 16, kind: input, shape index: {}]
  %s17 = inlined_call_operand.hbm [shape: f32[2,1,32], index: 17, kind: input, shape index: {}]
  %s18 = inlined_call_operand.hbm [shape: f32[2,1,32], index: 18, kind: input, shape index: {}]
  %s19 = inlined_call_operand.vmem [shape: f32[2,1,32], index: 19, kind: input, shape index: {}]
  %s20 = inlined_call_operand.vmem [shape: bf16[32,32], index: 20, kind: input, shape index: {}]
  %s21 = inlined_call_operand.vmem [shape: f32[1,32], index: 21, kind: input, shape index: {}]
  %s22 = inlined_call_operand.vmem [shape: bf16[32,3], index: 22, kind: input, shape index: {}]
  %s23 = inlined_call_operand.vmem [shape: f32[1,3], index: 23, kind: input, shape index: {}]
  %s24 = inlined_call_operand.hbm [shape: f32[2,3], index: 24, kind: output, shape index: {0}]
  %s25 = inlined_call_operand.vmem [shape: s32[2,1], index: 25, kind: output, shape index: {1}]
  %26 = xla_tuple %s24, %s25
  %s27 = sld [smem:[#allocation0]]
  $region174: #{tpu_custom_call.1} parent=0
    _
  %s29 = ssub.s32 1, %s27
  %s30 = scalar_select 0, %s29, %s27
  $region1: #{tpu_custom_call.1} parent=0
    #allocation2 [shape = 'u8[8192]{0}', space=vmem, size = 0x2000, scoped, tag = 'input window, operand 0, single buffered']
    #allocation3 [shape = 's32[1]{0}', space=sflag, size = 0x4, scoped, tag = 'scoped memory for tpu_custom_call.1']
    #allocation4 [shape = 's32[1]{0}', space=sflag, size = 0x4, scoped, tag = 'scoped memory for tpu_custom_call.1']
    #allocation5 [shape = 'u8[1024]{0}', space=vmem, size = 0x400, scoped, tag = 'input window, operand 1, single buffered']
    #allocation6 [shape = 's32[1]{0}', space=sflag, size = 0x4, scoped, tag = 'scoped memory for tpu_custom_call.1']
    #allocation7 [shape = 'u8[512]{0}', space=vmem, size = 0x400, scoped, tag = 'input window, operand 2, single buffered']
    #allocation8 [shape = 'u8[512]{0}', space=vmem, size = 0x400, scoped, tag = 'input window, operand 3, single buffered']
    #allocation9 [shape = 's32[1]{0}', space=sflag, size = 0x4, scoped, tag = 'scoped memory for tpu_custom_call.1']
    #allocation10 [shape = 'u8[1024]{0}', space=vmem, size = 0x400, scoped, tag = 'input window, operand 5, single buffered']
    #allocation11 [shape = 'u8[1024]{0}', space=vmem, size = 0x400, scoped, tag = 'input window, operand 7, single buffered']
    #allocation12 [shape = 's32[1]{0}', space=sflag, size = 0x4, scoped, tag = 'scoped memory for tpu_custom_call.1']
    #allocation13 [shape = 'u8[1024]{0}', space=vmem, size = 0x400, scoped, tag = 'input window, operand 9, single buffered']
    #allocation14 [shape = 'u8[16384]{0}', space=vmem, size = 0x4000, scoped, tag = 'input window, operand 10, single buffered']
    #allocation15 [shape = 's32[1]{0}', space=sflag, size = 0x4, scoped, tag = 'scoped memory for tpu_custom_call.1']
    #allocation16 [shape = 'u8[1024]{0}', space=vmem, size = 0x400, scoped, tag = 'input window, operand 11, single buffered']
    #allocation17 [shape = 'u8[1024]{0}', space=vmem, size = 0x400, scoped, tag = 'input window, operand 12, single buffered']
    #allocation18 [shape = 's32[1]{0}', space=sflag, size = 0x4, scoped, tag = 'scoped memory for tpu_custom_call.1']
    #allocation19 [shape = 'u8[1024]{0}', space=vmem, size = 0x400, scoped, tag = 'input window, operand 13, single buffered']
    #allocation20 [shape = 'u8[16384]{0}', space=vmem, size = 0x4000, scoped, tag = 'input window, operand 14, single buffered']
    #allocation21 [shape = 's32[1]{0}', space=sflag, size = 0x4, scoped, tag = 'scoped memory for tpu_custom_call.1']
    #allocation22 [shape = 'u8[1024]{0}', space=vmem, size = 0x400, scoped, tag = 'input window, operand 15, single buffered']
    #allocation23 [shape = 'u8[1024]{0}', space=vmem, size = 0x400, scoped, tag = 'input window, operand 17, single buffered']
    #allocation24 [shape = 's32[1]{0}', space=sflag, size = 0x4, scoped, tag = 'scoped memory for tpu_custom_call.1']
    #allocation25 [shape = 'u8[1024]{0}', space=vmem, size = 0x400, scoped, tag = 'input window, operand 18, single buffered']
    #allocation26 [shape = 'u8[1024]{0}', space=vmem, size = 0x400, scoped, tag = 'output window, operand 0, single buffered']
    %31 = vsyncpa [#allocation3], 0
    %32 = vsyncpa [#allocation6], 0
    %33 = vsyncpa [#allocation9], 0
    %34 = vsyncpa [#allocation12], 0
    %35 = vsyncpa [#allocation15], 0
    %36 = vsyncpa [#allocation18], 0
    %37 = vsyncpa [#allocation21], 0
    %38 = vsyncpa [#allocation24], 0
    %39 = vsyncpa [#allocation4], 0
    // Predicated region
    $region2: #{tpu_custom_call.1} parent=1 // pred_check
      _
    $region3: #{tpu_custom_call.1} parent=1 // pred_check_branch
      %41 = sbr.rel (0) target = $region5
    $region4: #{tpu_custom_call.1} parent=1 // pred_region
      %s43 = ssub.s32 256, 256
      %44 = vsyncadd [#allocation3], %s43
      %s45 = sshll.u32 [#allocation2], 4
      %s46 = int_to_ptr.vmem [resolvable:$true] %s45
      %51 = dma.hbm_to_vmem [thread:$0]  %s0, 256, %s46, [#allocation3], 128, 128, 8
    $region5: #{tpu_custom_call.1} parent=1 // pred_fallthru
      _
    // Predicated region
    $region6: #{tpu_custom_call.1} parent=1 // pred_check
      _
    $region7: #{tpu_custom_call.1} parent=1 // pred_check_branch
      %53 = sbr.rel (0) target = $region9
    $region8: #{tpu_custom_call.1} parent=1 // pred_region
      %s55 = ssub.s32 32, 32
      %56 = vsyncadd [#allocation6], %s55
      %s57 = sshll.u32 [#allocation5], 4
      %s58 = int_to_ptr.vmem [resolvable:$true] %s57
      %63 = dma.hbm_to_vmem [thread:$0]  %s1, 32, %s58, [#allocation6], 16, 16, 1
    $region9: #{tpu_custom_call.1} parent=1 // pred_fallthru
      _
    // Predicated region
    $region10: #{tpu_custom_call.1} parent=1 // pred_check
      _
    $region11: #{tpu_custom_call.1} parent=1 // pred_check_branch
      %65 = sbr.rel (0) target = $region13
    $region12: #{tpu_custom_call.1} parent=1 // pred_region
      %s67 = ssub.s32 16, 16
      %68 = vsyncadd [#allocation6], %s67
      %s70 = sshll.u32 [#allocation7], 4
      %s71 = int_to_ptr.vmem [resolvable:$true] %s70
      %73 = dma.hbm_to_vmem [thread:$0]  %s2, 16, %s71, [#allocation6]
    $region13: #{tpu_custom_call.1} parent=1 // pred_fallthru
      _
    // Predicated region
    $region14: #{tpu_custom_call.1} parent=1 // pred_check
      _
    $region15: #{tpu_custom_call.1} parent=1 // pred_check_branch
      %75 = sbr.rel (0) target = $region17
    $region16: #{tpu_custom_call.1} parent=1 // pred_region
      %s77 = ssub.s32 16, 16
      %78 = vsyncadd [#allocation9], %s77
      %s80 = sshll.u32 [#allocation8], 4
      %s81 = int_to_ptr.vmem [resolvable:$true] %s80
      %83 = dma.hbm_to_vmem [thread:$0]  %s3, 16, %s81, [#allocation9]
    $region17: #{tpu_custom_call.1} parent=1 // pred_fallthru
      _
    // Predicated region
    $region18: #{tpu_custom_call.1} parent=1 // pred_check
      _
    $region19: #{tpu_custom_call.1} parent=1 // pred_check_branch
      %85 = sbr.rel (0) target = $region21
    $region20: #{tpu_custom_call.1} parent=1 // pred_region
      _
    $region21: #{tpu_custom_call.1} parent=1 // pred_fallthru
      _
    // Predicated region
    $region22: #{tpu_custom_call.1} parent=1 // pred_check
      _
    $region23: #{tpu_custom_call.1} parent=1 // pred_check_branch
      %87 = sbr.rel (0) target = $region25
    $region24: #{tpu_custom_call.1} parent=1 // pred_region
      %s89 = ssub.s32 32, 32
      %90 = vsyncadd [#allocation9], %s89
      %s91 = sshll.u32 [#allocation10], 4
      %s92 = int_to_ptr.vmem [resolvable:$true] %s91
      %97 = dma.hbm_to_vmem [thread:$0]  %s5, 32, %s92, [#allocation9], 16, 16, 1
    $region25: #{tpu_custom_call.1} parent=1 // pred_fallthru
      _
    // Predicated region
    $region26: #{tpu_custom_call.1} parent=1 // pred_check
      _
    $region27: #{tpu_custom_call.1} parent=1 // pred_check_branch
      %99 = sbr.rel (0) target = $region29
    $region28: #{tpu_custom_call.1} parent=1 // pred_region
      _
    $region29: #{tpu_custom_call.1} parent=1 // pred_fallthru
      _
    // Predicated region
    $region30: #{tpu_custom_call.1} parent=1 // pred_check
      _
    $region31: #{tpu_custom_call.1} parent=1 // pred_check_branch
      %101 = sbr.rel (0) target = $region33
    $region32: #{tpu_custom_call.1} parent=1 // pred_region
      %s103 = ssub.s32 32, 32
      %104 = vsyncadd [#allocation12], %s103
      %s105 = sshll.u32 [#allocation11], 4
      %s106 = int_to_ptr.vmem [resolvable:$true] %s105
      %111 = dma.hbm_to_vmem [thread:$0]  %s7, 32, %s106, [#allocation12], 16, 16, 1
    $region33: #{tpu_custom_call.1} parent=1 // pred_fallthru
      _
    // Predicated region
    $region34: #{tpu_custom_call.1} parent=1 // pred_check
      _
    $region35: #{tpu_custom_call.1} parent=1 // pred_check_branch
      %113 = sbr.rel (0) target = $region37
    $region36: #{tpu_custom_call.1} parent=1 // pred_region
      _
    $region37: #{tpu_custom_call.1} parent=1 // pred_fallthru
      _
    // Predicated region
    $region38: #{tpu_custom_call.1} parent=1 // pred_check
      _
    $region39: #{tpu_custom_call.1} parent=1 // pred_check_branch
      %115 = sbr.rel (0) target = $region41
    $region40: #{tpu_custom_call.1} parent=1 // pred_region
      %s117 = ssub.s32 32, 32
      %118 = vsyncadd [#allocation12], %s117
      %s119 = sshll.u32 [#allocation13], 4
      %s120 = int_to_ptr.vmem [resolvable:$true] %s119
      %125 = dma.hbm_to_vmem [thread:$0]  %s9, 32, %s120, [#allocation12], 16, 16, 1
    $region41: #{tpu_custom_call.1} parent=1 // pred_fallthru
      _
    // Predicated region
    $region42: #{tpu_custom_call.1} parent=1 // pred_check
      _
    $region43: #{tpu_custom_call.1} parent=1 // pred_check_branch
      %127 = sbr.rel (0) target = $region45
    $region44: #{tpu_custom_call.1} parent=1 // pred_region
      %s129 = ssub.s32 512, 512
      %130 = vsyncadd [#allocation15], %s129
      %s131 = sshll.u32 [#allocation14], 4
      %s132 = int_to_ptr.vmem [resolvable:$true] %s131
      %137 = dma.hbm_to_vmem [thread:$0]  %s10, 512, %s132, [#allocation15], 64, 64, 4
    $region45: #{tpu_custom_call.1} parent=1 // pred_fallthru
      _
    // Predicated region
    $region46: #{tpu_custom_call.1} parent=1 // pred_check
      _
    $region47: #{tpu_custom_call.1} parent=1 // pred_check_branch
      %139 = sbr.rel (0) target = $region49
    $region48: #{tpu_custom_call.1} parent=1 // pred_region
      %s141 = ssub.s32 32, 32
      %142 = vsyncadd [#allocation15], %s141
      %s143 = sshll.u32 [#allocation16], 4
      %s144 = int_to_ptr.vmem [resolvable:$true] %s143
      %149 = dma.hbm_to_vmem [thread:$0]  %s11, 32, %s144, [#allocation15], 16, 16, 1
    $region49: #{tpu_custom_call.1} parent=1 // pred_fallthru
      _
    // Predicated region
    $region50: #{tpu_custom_call.1} parent=1 // pred_check
      _
    $region51: #{tpu_custom_call.1} parent=1 // pred_check_branch
      %151 = sbr.rel (0) target = $region53
    $region52: #{tpu_custom_call.1} parent=1 // pred_region
      %s153 = ssub.s32 32, 32
      %154 = vsyncadd [#allocation18], %s153
      %s155 = sshll.u32 [#allocation17], 4
      %s156 = int_to_ptr.vmem [resolvable:$true] %s155
      %161 = dma.hbm_to_vmem [thread:$0]  %s12, 32, %s156, [#allocation18], 16, 16, 1
    $region53: #{tpu_custom_call.1} parent=1 // pred_fallthru
      _
    // Predicated region
    $region54: #{tpu_custom_call.1} parent=1 // pred_check
      _
    $region55: #{tpu_custom_call.1} parent=1 // pred_check_branch
      %163 = sbr.rel (0) target = $region57
    $region56: #{tpu_custom_call.1} parent=1 // pred_region
      %s165 = ssub.s32 32, 32
      %166 = vsyncadd [#allocation18], %s165
      %s167 = sshll.u32 [#allocation19], 4
      %s168 = int_to_ptr.vmem [resolvable:$true] %s167
      %173 = dma.hbm_to_vmem [thread:$0]  %s13, 32, %s168, [#allocation18], 16, 16, 1
    $region57: #{tpu_custom_call.1} parent=1 // pred_fallthru
      _
    // Predicated region
    $region58: #{tpu_custom_call.1} parent=1 // pred_check
      _
    $region59: #{tpu_custom_call.1} parent=1 // pred_check_branch
      %175 = sbr.rel (0) target = $region61
    $region60: #{tpu_custom_call.1} parent=1 // pred_region
      %s177 = ssub.s32 512, 512
      %178 = vsyncadd [#allocation21], %s177
      %s179 = sshll.u32 [#allocation20], 4
      %s180 = int_to_ptr.vmem [resolvable:$true] %s179
      %185 = dma.hbm_to_vmem [thread:$0]  %s14, 512, %s180, [#allocation21], 64, 64, 4
    $region61: #{tpu_custom_call.1} parent=1 // pred_fallthru
      _
    // Predicated region
    $region62: #{tpu_custom_call.1} parent=1 // pred_check
      _
    $region63: #{tpu_custom_call.1} parent=1 // pred_check_branch
      %187 = sbr.rel (0) target = $region65
    $region64: #{tpu_custom_call.1} parent=1 // pred_region
      %s189 = ssub.s32 32, 32
      %190 = vsyncadd [#allocation21], %s189
      %s191 = sshll.u32 [#allocation22], 4
      %s192 = int_to_ptr.vmem [resolvable:$true] %s191
      %197 = dma.hbm_to_vmem [thread:$0]  %s15, 32, %s192, [#allocation21], 16, 16, 1
    $region65: #{tpu_custom_call.1} parent=1 // pred_fallthru
      _
    // Predicated region
    $region66: #{tpu_custom_call.1} parent=1 // pred_check
      _
    $region67: #{tpu_custom_call.1} parent=1 // pred_check_branch
      %199 = sbr.rel (0) target = $region69
    $region68: #{tpu_custom_call.1} parent=1 // pred_region
      _
    $region69: #{tpu_custom_call.1} parent=1 // pred_fallthru
      _
    // Predicated region
    $region70: #{tpu_custom_call.1} parent=1 // pred_check
      _
    $region71: #{tpu_custom_call.1} parent=1 // pred_check_branch
      %201 = sbr.rel (0) target = $region73
    $region72: #{tpu_custom_call.1} parent=1 // pred_region
      %s203 = ssub.s32 32, 32
      %204 = vsyncadd [#allocation24], %s203
      %s205 = sshll.u32 [#allocation23], 4
      %s206 = int_to_ptr.vmem [resolvable:$true] %s205
      %211 = dma.hbm_to_vmem [thread:$0]  %s17, 32, %s206, [#allocation24], 16, 16, 1
    $region73: #{tpu_custom_call.1} parent=1 // pred_fallthru
      _
    // Predicated region
    $region74: #{tpu_custom_call.1} parent=1 // pred_check
      _
    $region75: #{tpu_custom_call.1} parent=1 // pred_check_branch
      %213 = sbr.rel (0) target = $region77
    $region76: #{tpu_custom_call.1} parent=1 // pred_region
      %s215 = ssub.s32 32, 32
      %216 = vsyncadd [#allocation24], %s215
      %s217 = sshll.u32 [#allocation25], 4
      %s218 = int_to_ptr.vmem [resolvable:$true] %s217
      %223 = dma.hbm_to_vmem [thread:$0]  %s18, 32, %s218, [#allocation24], 16, 16, 1
    $region77: #{tpu_custom_call.1} parent=1 // pred_fallthru
      _
    // Predicated region
    $region78: #{tpu_custom_call.1} parent=1 // pred_check
      _
    $region79: #{tpu_custom_call.1} parent=1 // pred_check_branch
      %225 = sbr.rel (0) target = $region81
    $region80: #{tpu_custom_call.1} parent=1 // pred_region
      _
    $region81: #{tpu_custom_call.1} parent=1 // pred_fallthru
      _
    // Predicated region
    $region82: #{tpu_custom_call.1} parent=1 // pred_check
      _
    $region83: #{tpu_custom_call.1} parent=1 // pred_check_branch
      %227 = sbr.rel (0) target = $region85
    $region84: #{tpu_custom_call.1} parent=1 // pred_region
      _
    $region85: #{tpu_custom_call.1} parent=1 // pred_fallthru
      _
    // Predicated region
    $region86: #{tpu_custom_call.1} parent=1 // pred_check
      _
    $region87: #{tpu_custom_call.1} parent=1 // pred_check_branch
      %229 = sbr.rel (0) target = $region89
    $region88: #{tpu_custom_call.1} parent=1 // pred_region
      _
    $region89: #{tpu_custom_call.1} parent=1 // pred_fallthru
      _
    // Predicated region
    $region90: #{tpu_custom_call.1} parent=1 // pred_check
      _
    $region91: #{tpu_custom_call.1} parent=1 // pred_check_branch
      %231 = sbr.rel (0) target = $region93
    $region92: #{tpu_custom_call.1} parent=1 // pred_region
      _
    $region93: #{tpu_custom_call.1} parent=1 // pred_fallthru
      _
    // Predicated region
    $region94: #{tpu_custom_call.1} parent=1 // pred_check
      _
    $region95: #{tpu_custom_call.1} parent=1 // pred_check_branch
      %233 = sbr.rel (0) target = $region97
    $region96: #{tpu_custom_call.1} parent=1 // pred_region
      _
    $region97: #{tpu_custom_call.1} parent=1 // pred_fallthru
      _
    // Predicated region
    $region98: #{tpu_custom_call.1} parent=1 // pred_check
      _
    $region99: #{tpu_custom_call.1} parent=1 // pred_check_branch
      %235 = sbr.rel (0) target = $region101
    $region100: #{tpu_custom_call.1} parent=1 // pred_region
      %236 = dma.done [#allocation3], 256
    $region101: #{tpu_custom_call.1} parent=1 // pred_fallthru
      _
    // Predicated region
    $region102: #{tpu_custom_call.1} parent=1 // pred_check
      _
    $region103: #{tpu_custom_call.1} parent=1 // pred_check_branch
      %238 = sbr.rel (0) target = $region105
    $region104: #{tpu_custom_call.1} parent=1 // pred_region
      %239 = dma.done [#allocation6], 32
    $region105: #{tpu_custom_call.1} parent=1 // pred_fallthru
      _
    // Predicated region
    $region106: #{tpu_custom_call.1} parent=1 // pred_check
      _
    $region107: #{tpu_custom_call.1} parent=1 // pred_check_branch
      %241 = sbr.rel (0) target = $region109
    $region108: #{tpu_custom_call.1} parent=1 // pred_region
      %242 = dma.done [#allocation6], 16
    $region109: #{tpu_custom_call.1} parent=1 // pred_fallthru
      _
    // Predicated region
    $region110: #{tpu_custom_call.1} parent=1 // pred_check
      _
    $region111: #{tpu_custom_call.1} parent=1 // pred_check_branch
      %244 = sbr.rel (0) target = $region113
    $region112: #{tpu_custom_call.1} parent=1 // pred_region
      %245 = dma.done [#allocation9], 16
    $region113: #{tpu_custom_call.1} parent=1 // pred_fallthru
      _
    // Predicated region
    $region114: #{tpu_custom_call.1} parent=1 // pred_check
      _
    $region115: #{tpu_custom_call.1} parent=1 // pred_check_branch
      %247 = sbr.rel (0) target = $region117
    $region116: #{tpu_custom_call.1} parent=1 // pred_region
      %248 = dma.done [#allocation9], 32
    $region117: #{tpu_custom_call.1} parent=1 // pred_fallthru
      _
    // Predicated region
    $region118: #{tpu_custom_call.1} parent=1 // pred_check
      _
    $region119: #{tpu_custom_call.1} parent=1 // pred_check_branch
      %250 = sbr.rel (0) target = $region121
    $region120: #{tpu_custom_call.1} parent=1 // pred_region
      %251 = dma.done [#allocation12], 32
    $region121: #{tpu_custom_call.1} parent=1 // pred_fallthru
      _
    // Predicated region
    $region122: #{tpu_custom_call.1} parent=1 // pred_check
      _
    $region123: #{tpu_custom_call.1} parent=1 // pred_check_branch
      %253 = sbr.rel (0) target = $region125
    $region124: #{tpu_custom_call.1} parent=1 // pred_region
      %254 = dma.done [#allocation12], 32
    $region125: #{tpu_custom_call.1} parent=1 // pred_fallthru
      _
    // Predicated region
    $region126: #{tpu_custom_call.1} parent=1 // pred_check
      _
    $region127: #{tpu_custom_call.1} parent=1 // pred_check_branch
      %256 = sbr.rel (0) target = $region129
    $region128: #{tpu_custom_call.1} parent=1 // pred_region
      %257 = dma.done [#allocation15], 512
    $region129: #{tpu_custom_call.1} parent=1 // pred_fallthru
      _
    // Predicated region
    $region130: #{tpu_custom_call.1} parent=1 // pred_check
      _
    $region131: #{tpu_custom_call.1} parent=1 // pred_check_branch
      %259 = sbr.rel (0) target = $region133
    $region132: #{tpu_custom_call.1} parent=1 // pred_region
      %260 = dma.done [#allocation15], 32
    $region133: #{tpu_custom_call.1} parent=1 // pred_fallthru
      _
    // Predicated region
    $region134: #{tpu_custom_call.1} parent=1 // pred_check
      _
    $region135: #{tpu_custom_call.1} parent=1 // pred_check_branch
      %262 = sbr.rel (0) target = $region137
    $region136: #{tpu_custom_call.1} parent=1 // pred_region
      %263 = dma.done [#allocation18], 32
    $region137: #{tpu_custom_call.1} parent=1 // pred_fallthru
      _
    // Predicated region
    $region138: #{tpu_custom_call.1} parent=1 // pred_check
      _
    $region139: #{tpu_custom_call.1} parent=1 // pred_check_branch
      %265 = sbr.rel (0) target = $region141
    $region140: #{tpu_custom_call.1} parent=1 // pred_region
      %266 = dma.done [#allocation18], 32
    $region141: #{tpu_custom_call.1} parent=1 // pred_fallthru
      _
    // Predicated region
    $region142: #{tpu_custom_call.1} parent=1 // pred_check
      _
    $region143: #{tpu_custom_call.1} parent=1 // pred_check_branch
      %268 = sbr.rel (0) target = $region145
    $region144: #{tpu_custom_call.1} parent=1 // pred_region
      %269 = dma.done [#allocation21], 512
    $region145: #{tpu_custom_call.1} parent=1 // pred_fallthru
      _
    // Predicated region
    $region146: #{tpu_custom_call.1} parent=1 // pred_check
      _
    $region147: #{tpu_custom_call.1} parent=1 // pred_check_branch
      %271 = sbr.rel (0) target = $region149
    $region148: #{tpu_custom_call.1} parent=1 // pred_region
      %272 = dma.done [#allocation21], 32
    $region149: #{tpu_custom_call.1} parent=1 // pred_fallthru
      _
    // Predicated region
    $region150: #{tpu_custom_call.1} parent=1 // pred_check
      _
    $region151: #{tpu_custom_call.1} parent=1 // pred_check_branch
      %274 = sbr.rel (0) target = $region153
    $region152: #{tpu_custom_call.1} parent=1 // pred_region
      %275 = dma.done [#allocation24], 32
    $region153: #{tpu_custom_call.1} parent=1 // pred_fallthru
      _
    // Predicated region
    $region154: #{tpu_custom_call.1} parent=1 // pred_check
      _
    $region155: #{tpu_custom_call.1} parent=1 // pred_check_branch
      %277 = sbr.rel (0) target = $region157
    $region156: #{tpu_custom_call.1} parent=1 // pred_region
      %278 = dma.done [#allocation24], 32
    $region157: #{tpu_custom_call.1} parent=1 // pred_fallthru
      _
    %v280 = vld [vmem:[#allocation5] sm:$0x1]
    %v281 = vld [vmem:[#allocation5 + $0x1] sm:$0x1]
    %v282 = vld [vmem:[#allocation2] sm:$0xff]
    %v283 = vld [vmem:[#allocation2 + $0x8] sm:$0xff]
    %v284 = vld [vmem:[#allocation7] sm:$0x1]
    %v285 = vld [vmem:[#allocation8] sm:$0x1]
    %vm286 = vcmask 261120
    %v287 = vsel %vm286, %v282, 0.0
    %288 = vadd.xlane.f32.xlu0 %v287
    %v289 = vpop.xlane.xlu0 %288
    %v290 = vsel %vm286, %v283, 0.0
    %291 = vadd.xlane.f32.xlu0 %v290
    %v292 = vpop.xlane.xlu0 %291
    %v293 = vrcp.pop 32.0
    %v294 = vmul.f32 %v289, %v293
    %v295 = vmul.f32 %v292, %v293
    %v296 = vsub.f32 %v282, %v294
    %v297 = vsub.f32 %v283, %v295
    %v298 = vmul.f32 %v296, %v296
    %v299 = vmul.f32 %v297, %v297
    %v300 = vsel %vm286, %v298, 0.0
    %301 = vadd.xlane.f32.xlu0 %v300
    %v302 = vpop.xlane.xlu0 %301
    %v303 = vsel %vm286, %v299, 0.0
    %304 = vadd.xlane.f32.xlu0 %v303
    %v305 = vpop.xlane.xlu0 %304
    %v306 = vmul.f32 %v302, %v293
    %v307 = vmul.f32 %v305, %v293
    %v308 = vadd.f32 %v306, 1e-12
    %v309 = vadd.f32 %v307, 1e-12
    %v310 = vrsqrt.pop %v308
    %v311 = vrsqrt.pop %v309
    %v312 = vmul.f32 %v296, %v310
    %v313 = vmul.f32 %v297, %v311
    %v315 = vlaneseq
    %v316 = vshrl.u32 %v315, 7
    %v317 = vsub.s32 0, %v316
    %v318 = vrot.slane %v284, %v317
    %v320 = vmul.f32 %v312, %v318
    %v321 = vmul.f32 %v313, %v318
    %v323 = vlaneseq
    %v324 = vshrl.u32 %v323, 7
    %v325 = vsub.s32 0, %v324
    %v326 = vrot.slane %v285, %v325
    %v328 = vadd.f32 %v320, %v326
    %v329 = vadd.f32 %v321, %v326
    %v330 = vpack.c.bf16 %v329, %v328
    %v331 = vld [vmem:[%s4] sm:$0xf]
    %v332 = vld [vmem:[%s4 + $0x4] sm:$0xf]
    %v333 = vld [vmem:[%s4 + $0x8] sm:$0xf]
    %v334 = vld [vmem:[%s4 + $0xc] sm:$0xf]
    %v335 = vld [vmem:[#allocation10] sm:$0x1]
    %v337 = vlaneseq
    %v338 = vshrl.u32 %v337, 7
    %v339 = vsub.s32 0, %v338
    %v340 = vrot.slane %v335, %v339
    %v346 = vunpack.c.l.b16 %v331
    %v347 = vunpack.c.l.b16 %v332
    %v348 = vunpack.c.l.b16 %v333
    %v349 = vunpack.c.l.b16 %v334
    %v350 = vpack.c.b16 %v347, %v346
    %v351 = vpack.c.b16 %v349, %v348
    %v355 = vsel %vm286, %v330, 0
    %357 = vmatprep.subr.bf16.mxu0 0
    %358 = vmatpush1.bf16.msra.mxu0 0
    %359 = vmatprep.subr.bf16.mxu0 0
    %360 = vmatpush1.bf16.msra.mxu0 0
    %361 = vmatprep.subr.bf16.mxu0 0
    %362 = vmatpush1.bf16.msra.mxu0 0
    %363 = vmatprep.subr.bf16.mxu0 0
    %364 = vmatpush1.bf16.msra.mxu0 0
    %365 = vmatprep.subr.bf16.mxu0 0
    %366 = vmatpush1.bf16.msra.mxu0 0
    %367 = vmatprep.subr.bf16.mxu0 0
    %368 = vmatpush1.bf16.msra.mxu0 0
    %369 = vmatprep.subr.bf16.mxu0 0
    %370 = vmatpush1.bf16.msra.mxu0 %v351
    %371 = vmatprep.subr.bf16.mxu0 0
    %372 = vmatpush1.bf16.msra.mxu0 %v350
    %373 = vmatprep.subr.bf16.mxu0 0
    %374 = vmatpush2.bf16.msra.mxu0 0
    %375 = vmatprep.subr.bf16.mxu0 0
    %376 = vmatpush2.bf16.msra.mxu0 0
    %377 = vmatprep.subr.bf16.mxu0 0
    %378 = vmatpush2.bf16.msra.mxu0 0
    %379 = vmatprep.subr.bf16.mxu0 0
    %380 = vmatpush2.bf16.msra.mxu0 0
    %381 = vmatprep.subr.bf16.mxu0 0
    %382 = vmatpush2.bf16.msra.mxu0 0
    %383 = vmatprep.subr.bf16.mxu0 0
    %384 = vmatpush2.bf16.msra.mxu0 0
    %385 = vmatprep.subr.bf16.mxu0 0
    %386 = vmatpush2.bf16.msra.mxu0 0
    %387 = vmatprep.subr.bf16.mxu0 0
    %388 = vmatpush2.bf16.msra.mxu0 0
    %389 = vmatprep.mubr.bf16.mxu0 0
    %390 = vmatmul.mubr.bf16.gmra.mxu0 %v355
    %v391 = vpop.f32.mrf.mxu0
    %v392 = vadd.f32 %v340, %v391
    %v393 = vpop.f32.mrf.mxu0
    %v394 = vpop.f32.mrf.mxu0
    %v395 = vadd.f32 %v340, %v394
    %v396 = vpop.f32.mrf.mxu0
    %397 = vdwg.mxu0
    %v398 = vld [vmem:[%s6] sm:$0xf]
    %v399 = vld [vmem:[%s6 + $0x4] sm:$0xf]
    %v400 = vld [vmem:[%s6 + $0x8] sm:$0xf]
    %v401 = vld [vmem:[%s6 + $0xc] sm:$0xf]
    %v402 = vld [vmem:[#allocation11] sm:$0x1]
    %v404 = vlaneseq
    %v405 = vshrl.u32 %v404, 7
    %v406 = vsub.s32 0, %v405
    %v407 = vrot.slane %v402, %v406
    %v413 = vunpack.c.l.b16 %v398
    %v414 = vunpack.c.l.b16 %v399
    %v415 = vunpack.c.l.b16 %v400
    %v416 = vunpack.c.l.b16 %v401
    %v417 = vpack.c.b16 %v414, %v413
    %v418 = vpack.c.b16 %v416, %v415
    %421 = vmatprep.subr.bf16.mxu0 0
    %422 = vmatpush1.bf16.msra.mxu0 0
    %423 = vmatprep.subr.bf16.mxu0 0
    %424 = vmatpush1.bf16.msra.mxu0 0
    %425 = vmatprep.subr.bf16.mxu0 0
    %426 = vmatpush1.bf16.msra.mxu0 0
    %427 = vmatprep.subr.bf16.mxu0 0
    %428 = vmatpush1.bf16.msra.mxu0 0
    %429 = vmatprep.subr.bf16.mxu0 0
    %430 = vmatpush1.bf16.msra.mxu0 0
    %431 = vmatprep.subr.bf16.mxu0 0
    %432 = vmatpush1.bf16.msra.mxu0 0
    %433 = vmatprep.subr.bf16.mxu0 0
    %434 = vmatpush1.bf16.msra.mxu0 %v418
    %435 = vmatprep.subr.bf16.mxu0 0
    %436 = vmatpush1.bf16.msra.mxu0 %v417
    %437 = vmatprep.subr.bf16.mxu0 0
    %438 = vmatpush2.bf16.msra.mxu0 0
    %439 = vmatprep.subr.bf16.mxu0 0
    %440 = vmatpush2.bf16.msra.mxu0 0
    %441 = vmatprep.subr.bf16.mxu0 0
    %442 = vmatpush2.bf16.msra.mxu0 0
    %443 = vmatprep.subr.bf16.mxu0 0
    %444 = vmatpush2.bf16.msra.mxu0 0
    %445 = vmatprep.subr.bf16.mxu0 0
    %446 = vmatpush2.bf16.msra.mxu0 0
    %447 = vmatprep.subr.bf16.mxu0 0
    %448 = vmatpush2.bf16.msra.mxu0 0
    %449 = vmatprep.subr.bf16.mxu0 0
    %450 = vmatpush2.bf16.msra.mxu0 0
    %451 = vmatprep.subr.bf16.mxu0 0
    %452 = vmatpush2.bf16.msra.mxu0 0
    %453 = vmatprep.mubr.bf16.mxu0 0
    %454 = vmatmul.mubr.bf16.gmra.mxu0 %v355
    %v455 = vpop.f32.mrf.mxu0
    %v456 = vadd.f32 %v407, %v455
    %v457 = vpop.f32.mrf.mxu0
    %v458 = vpop.f32.mrf.mxu0
    %v459 = vadd.f32 %v407, %v458
    %v460 = vpop.f32.mrf.mxu0
    %461 = vdwg.mxu0
    %v462 = vld [vmem:[%s8] sm:$0xf]
    %v463 = vld [vmem:[%s8 + $0x4] sm:$0xf]
    %v464 = vld [vmem:[%s8 + $0x8] sm:$0xf]
    %v465 = vld [vmem:[%s8 + $0xc] sm:$0xf]
    %v466 = vld [vmem:[#allocation13] sm:$0x1]
    %v468 = vlaneseq
    %v469 = vshrl.u32 %v468, 7
    %v470 = vsub.s32 0, %v469
    %v471 = vrot.slane %v466, %v470
    %v477 = vunpack.c.l.b16 %v462
    %v478 = vunpack.c.l.b16 %v463
    %v479 = vunpack.c.l.b16 %v464
    %v480 = vunpack.c.l.b16 %v465
    %v481 = vpack.c.b16 %v478, %v477
    %v482 = vpack.c.b16 %v480, %v479
    %485 = vmatprep.subr.bf16.mxu0 0
    %486 = vmatpush1.bf16.msra.mxu0 0
    %487 = vmatprep.subr.bf16.mxu0 0
    %488 = vmatpush1.bf16.msra.mxu0 0
    %489 = vmatprep.subr.bf16.mxu0 0
    %490 = vmatpush1.bf16.msra.mxu0 0
    %491 = vmatprep.subr.bf16.mxu0 0
    %492 = vmatpush1.bf16.msra.mxu0 0
    %493 = vmatprep.subr.bf16.mxu0 0
    %494 = vmatpush1.bf16.msra.mxu0 0
    %495 = vmatprep.subr.bf16.mxu0 0
    %496 = vmatpush1.bf16.msra.mxu0 0
    %497 = vmatprep.subr.bf16.mxu0 0
    %498 = vmatpush1.bf16.msra.mxu0 %v482
    %499 = vmatprep.subr.bf16.mxu0 0
    %500 = vmatpush1.bf16.msra.mxu0 %v481
    %501 = vmatprep.subr.bf16.mxu0 0
    %502 = vmatpush2.bf16.msra.mxu0 0
    %503 = vmatprep.subr.bf16.mxu0 0
    %504 = vmatpush2.bf16.msra.mxu0 0
    %505 = vmatprep.subr.bf16.mxu0 0
    %506 = vmatpush2.bf16.msra.mxu0 0
    %507 = vmatprep.subr.bf16.mxu0 0
    %508 = vmatpush2.bf16.msra.mxu0 0
    %509 = vmatprep.subr.bf16.mxu0 0
    %510 = vmatpush2.bf16.msra.mxu0 0
    %511 = vmatprep.subr.bf16.mxu0 0
    %512 = vmatpush2.bf16.msra.mxu0 0
    %513 = vmatprep.subr.bf16.mxu0 0
    %514 = vmatpush2.bf16.msra.mxu0 0
    %515 = vmatprep.subr.bf16.mxu0 0
    %516 = vmatpush2.bf16.msra.mxu0 0
    %517 = vmatprep.mubr.bf16.mxu0 0
    %518 = vmatmul.mubr.bf16.gmra.mxu0 %v355
    %v519 = vpop.f32.mrf.mxu0
    %v520 = vadd.f32 %v471, %v519
    %v521 = vpop.f32.mrf.mxu0
    %v522 = vpop.f32.mrf.mxu0
    %v523 = vadd.f32 %v471, %v522
    %v524 = vpop.f32.mrf.mxu0
    %525 = vdwg.mxu0
    %v526 = vpack.c.bf16 %v392, %v392
    %v527 = vpack.c.bf16 %v395, %v395
    %v528 = vpack.c.bf16 %v456, %v456
    %v529 = vpack.c.bf16 %v459, %v459
    %v530 = vpack.c.bf16 %v520, %v520
    %v531 = vpack.c.bf16 %v523, %v523
    %vm532 = vcmask 64512
    %v534 = vsel %vm532, %v526, 0
    %v537 = vsel %vm532, %v528, 0
    %539 = vmatprep.subr.bf16.mxu0 0
    %540 = vmatpush1.bf16.xpose.msra.mxu0 0
    %541 = vmatprep.subr.bf16.mxu0 0
    %542 = vmatpush1.bf16.xpose.msra.mxu0 0
    %543 = vmatprep.subr.bf16.mxu0 0
    %544 = vmatpush1.bf16.xpose.msra.mxu0 0
    %545 = vmatprep.subr.bf16.mxu0 0
    %546 = vmatpush1.bf16.xpose.msra.mxu0 0
    %547 = vmatprep.subr.bf16.mxu0 0
    %548 = vmatpush1.bf16.xpose.msra.mxu0 0
    %549 = vmatprep.subr.bf16.mxu0 0
    %550 = vmatpush1.bf16.xpose.msra.mxu0 0
    %551 = vmatprep.subr.bf16.mxu0 0
    %552 = vmatpush1.bf16.xpose.msra.mxu0 0
    %553 = vmatprep.subr.bf16.mxu0 0
    %554 = vmatpush1.bf16.xpose.msra.mxu0 %v537
    %555 = vmatprep.subr.bf16.mxu0 0
    %556 = vmatpush2.bf16.xpose.msra.mxu0 0
    %557 = vmatprep.subr.bf16.mxu0 0
    %558 = vmatpush2.bf16.xpose.msra.mxu0 0
    %559 = vmatprep.subr.bf16.mxu0 0
    %560 = vmatpush2.bf16.xpose.msra.mxu0 0
    %561 = vmatprep.subr.bf16.mxu0 0
    %562 = vmatpush2.bf16.xpose.msra.mxu0 0
    %563 = vmatprep.subr.bf16.mxu0 0
    %564 = vmatpush2.bf16.xpose.msra.mxu0 0
    %565 = vmatprep.subr.bf16.mxu0 0
    %566 = vmatpush2.bf16.xpose.msra.mxu0 0
    %567 = vmatprep.subr.bf16.mxu0 0
    %568 = vmatpush2.bf16.xpose.msra.mxu0 0
    %569 = vmatprep.subr.bf16.mxu0 0
    %570 = vmatpush2.bf16.xpose.msra.mxu0 0
    %571 = vmatprep.mubr.bf16.mxu0 0
    %572 = vmatmul.mubr.bf16.gmra.mxu0 %v534
    %v573 = vpop.f32.mrf.mxu0
    %v574 = vadd.f32 0.0, %v573
    %v575 = vpop.f32.mrf.mxu0
    %v576 = vpop.f32.mrf.mxu0
    %v577 = vpop.f32.mrf.mxu0
    %578 = vdwg.mxu0
    %v580 = vsel %vm532, %v527, 0
    %v583 = vsel %vm532, %v529, 0
    %585 = vmatprep.subr.bf16.mxu0 0
    %586 = vmatpush1.bf16.xpose.msra.mxu0 0
    %587 = vmatprep.subr.bf16.mxu0 0
    %588 = vmatpush1.bf16.xpose.msra.mxu0 0
    %589 = vmatprep.subr.bf16.mxu0 0
    %590 = vmatpush1.bf16.xpose.msra.mxu0 0
    %591 = vmatprep.subr.bf16.mxu0 0
    %592 = vmatpush1.bf16.xpose.msra.mxu0 0
    %593 = vmatprep.subr.bf16.mxu0 0
    %594 = vmatpush1.bf16.xpose.msra.mxu0 0
    %595 = vmatprep.subr.bf16.mxu0 0
    %596 = vmatpush1.bf16.xpose.msra.mxu0 0
    %597 = vmatprep.subr.bf16.mxu0 0
    %598 = vmatpush1.bf16.xpose.msra.mxu0 0
    %599 = vmatprep.subr.bf16.mxu0 0
    %600 = vmatpush1.bf16.xpose.msra.mxu0 %v583
    %601 = vmatprep.subr.bf16.mxu0 0
    %602 = vmatpush2.bf16.xpose.msra.mxu0 0
    %603 = vmatprep.subr.bf16.mxu0 0
    %604 = vmatpush2.bf16.xpose.msra.mxu0 0
    %605 = vmatprep.subr.bf16.mxu0 0
    %606 = vmatpush2.bf16.xpose.msra.mxu0 0
    %607 = vmatprep.subr.bf16.mxu0 0
    %608 = vmatpush2.bf16.xpose.msra.mxu0 0
    %609 = vmatprep.subr.bf16.mxu0 0
    %610 = vmatpush2.bf16.xpose.msra.mxu0 0
    %611 = vmatprep.subr.bf16.mxu0 0
    %612 = vmatpush2.bf16.xpose.msra.mxu0 0
    %613 = vmatprep.subr.bf16.mxu0 0
    %614 = vmatpush2.bf16.xpose.msra.mxu0 0
    %615 = vmatprep.subr.bf16.mxu0 0
    %616 = vmatpush2.bf16.xpose.msra.mxu0 0
    %617 = vmatprep.mubr.bf16.mxu0 0
    %618 = vmatmul.mubr.bf16.gmra.mxu0 %v580
    %v619 = vpop.f32.mrf.mxu0
    %v620 = vadd.f32 0.0, %v619
    %v621 = vpop.f32.mrf.mxu0
    %v622 = vpop.f32.mrf.mxu0
    %v623 = vpop.f32.mrf.mxu0
    %624 = vdwg.mxu0
    %v625 = vmul.f32 %v574, 0.35355338
    %v626 = vmul.f32 %v620, 0.35355338
    %v629 = vlaneseq
    %v630 = vshrl.u32 %v629, 7
    %v631 = vsub.s32 0, %v630
    %v632 = vrot.slane %v280, %v631
    %v633 = vlaneseq
    %v634 = vshrl.u32 %v633, 7
    %v635 = vsub.s32 0, %v634
    %v636 = vrot.slane %v281, %v635
    %v639 = vadd.f32 %v625, %v632
    %v640 = vadd.f32 %v626, %v636
    %v641 = vsel %vm532, %v639, -inf
    %642 = vmax.xlane.f32.xlu0 %v641
    %v643 = vpop.xlane.xlu0 %642
    %v644 = vsel %vm532, %v640, -inf
    %645 = vmax.xlane.f32.xlu0 %v644
    %v646 = vpop.xlane.xlu0 %645
    %v647 = vsub.f32 %v639, %v643
    %v648 = vsub.f32 %v640, %v646
    %v649 = vmul.f32 %v647, 1.442695
    %v650 = vpow.pop %v649
    %v651 = vmul.f32 %v648, 1.442695
    %v652 = vpow.pop %v651
    %v653 = vsel %vm532, %v650, 0.0
    %654 = vadd.xlane.f32.xlu0 %v653
    %v655 = vpop.xlane.xlu0 %654
    %v656 = vsel %vm532, %v652, 0.0
    %657 = vadd.xlane.f32.xlu0 %v656
    %v658 = vpop.xlane.xlu0 %657
    %v659 = vrcp.pop %v655
    %v660 = vrcp.pop %v658
    %v661 = vmul.f32 %v650, %v659
    %v662 = vmul.f32 %v652, %v660
    %v663 = vpack.c.bf16 %v661, %v661
    %v664 = vpack.c.bf16 %v662, %v662
    %v666 = vsel %vm532, %v663, 0
    %vm668 = vcmask 1043456
    %v670 = vsel %vm668, %v530, 0
    %672 = vmatprep.subr.bf16.mxu0 0
    %673 = vmatpush1.bf16.msra.mxu0 0
    %674 = vmatprep.subr.bf16.mxu0 0
    %675 = vmatpush1.bf16.msra.mxu0 0
    %676 = vmatprep.subr.bf16.mxu0 0
    %677 = vmatpush1.bf16.msra.mxu0 0
    %678 = vmatprep.subr.bf16.mxu0 0
    %679 = vmatpush1.bf16.msra.mxu0 0
    %680 = vmatprep.subr.bf16.mxu0 0
    %681 = vmatpush1.bf16.msra.mxu0 0
    %682 = vmatprep.subr.bf16.mxu0 0
    %683 = vmatpush1.bf16.msra.mxu0 0
    %684 = vmatprep.subr.bf16.mxu0 0
    %685 = vmatpush1.bf16.msra.mxu0 0
    %686 = vmatprep.subr.bf16.mxu0 0
    %687 = vmatpush1.bf16.msra.mxu0 %v670
    %688 = vmatprep.subr.bf16.mxu0 0
    %689 = vmatpush2.bf16.msra.mxu0 0
    %690 = vmatprep.subr.bf16.mxu0 0
    %691 = vmatpush2.bf16.msra.mxu0 0
    %692 = vmatprep.subr.bf16.mxu0 0
    %693 = vmatpush2.bf16.msra.mxu0 0
    %694 = vmatprep.subr.bf16.mxu0 0
    %695 = vmatpush2.bf16.msra.mxu0 0
    %696 = vmatprep.subr.bf16.mxu0 0
    %697 = vmatpush2.bf16.msra.mxu0 0
    %698 = vmatprep.subr.bf16.mxu0 0
    %699 = vmatpush2.bf16.msra.mxu0 0
    %700 = vmatprep.subr.bf16.mxu0 0
    %701 = vmatpush2.bf16.msra.mxu0 0
    %702 = vmatprep.subr.bf16.mxu0 0
    %703 = vmatpush2.bf16.msra.mxu0 0
    %704 = vmatprep.mubr.bf16.mxu0 0
    %705 = vmatmul.mubr.bf16.gmra.mxu0 %v666
    %v706 = vpop.f32.mrf.mxu0
    %v707 = vadd.f32 0.0, %v706
    %v708 = vpop.f32.mrf.mxu0
    %v709 = vpop.f32.mrf.mxu0
    %v710 = vpop.f32.mrf.mxu0
    %711 = vdwg.mxu0
    %v713 = vsel %vm532, %v664, 0
    %v716 = vsel %vm668, %v531, 0
    %718 = vmatprep.subr.bf16.mxu0 0
    %719 = vmatpush1.bf16.msra.mxu0 0
    %720 = vmatprep.subr.bf16.mxu0 0
    %721 = vmatpush1.bf16.msra.mxu0 0
    %722 = vmatprep.subr.bf16.mxu0 0
    %723 = vmatpush1.bf16.msra.mxu0 0
    %724 = vmatprep.subr.bf16.mxu0 0
    %725 = vmatpush1.bf16.msra.mxu0 0
    %726 = vmatprep.subr.bf16.mxu0 0
    %727 = vmatpush1.bf16.msra.mxu0 0
    %728 = vmatprep.subr.bf16.mxu0 0
    %729 = vmatpush1.bf16.msra.mxu0 0
    %730 = vmatprep.subr.bf16.mxu0 0
    %731 = vmatpush1.bf16.msra.mxu0 0
    %732 = vmatprep.subr.bf16.mxu0 0
    %733 = vmatpush1.bf16.msra.mxu0 %v716
    %734 = vmatprep.subr.bf16.mxu0 0
    %735 = vmatpush2.bf16.msra.mxu0 0
    %736 = vmatprep.subr.bf16.mxu0 0
    %737 = vmatpush2.bf16.msra.mxu0 0
    %738 = vmatprep.subr.bf16.mxu0 0
    %739 = vmatpush2.bf16.msra.mxu0 0
    %740 = vmatprep.subr.bf16.mxu0 0
    %741 = vmatpush2.bf16.msra.mxu0 0
    %742 = vmatprep.subr.bf16.mxu0 0
    %743 = vmatpush2.bf16.msra.mxu0 0
    %744 = vmatprep.subr.bf16.mxu0 0
    %745 = vmatpush2.bf16.msra.mxu0 0
    %746 = vmatprep.subr.bf16.mxu0 0
    %747 = vmatpush2.bf16.msra.mxu0 0
    %748 = vmatprep.subr.bf16.mxu0 0
    %749 = vmatpush2.bf16.msra.mxu0 0
    %750 = vmatprep.mubr.bf16.mxu0 0
    %751 = vmatmul.mubr.bf16.gmra.mxu0 %v713
    %v752 = vpop.f32.mrf.mxu0
    %v753 = vadd.f32 0.0, %v752
    %v754 = vpop.f32.mrf.mxu0
    %v755 = vpop.f32.mrf.mxu0
    %v756 = vpop.f32.mrf.mxu0
    %757 = vdwg.mxu0
    %759 = vrot.lane.b32.xlu0 %v526, 120
    %v760 = vpop.permute.xlu0 %759
    %762 = vrot.lane.b32.xlu0 %v528, 120
    %v763 = vpop.permute.xlu0 %762
    %v765 = vsel %vm532, %v760, 0
    %v768 = vsel %vm532, %v763, 0
    %770 = vmatprep.subr.bf16.mxu0 0
    %771 = vmatpush1.bf16.xpose.msra.mxu0 0
    %772 = vmatprep.subr.bf16.mxu0 0
    %773 = vmatpush1.bf16.xpose.msra.mxu0 0
    %774 = vmatprep.subr.bf16.mxu0 0
    %775 = vmatpush1.bf16.xpose.msra.mxu0 0
    %776 = vmatprep.subr.bf16.mxu0 0
    %777 = vmatpush1.bf16.xpose.msra.mxu0 0
    %778 = vmatprep.subr.bf16.mxu0 0
    %779 = vmatpush1.bf16.xpose.msra.mxu0 0
    %780 = vmatprep.subr.bf16.mxu0 0
    %781 = vmatpush1.bf16.xpose.msra.mxu0 0
    %782 = vmatprep.subr.bf16.mxu0 0
    %783 = vmatpush1.bf16.xpose.msra.mxu0 0
    %784 = vmatprep.subr.bf16.mxu0 0
    %785 = vmatpush1.bf16.xpose.msra.mxu0 %v768
    %786 = vmatprep.subr.bf16.mxu0 0
    %787 = vmatpush2.bf16.xpose.msra.mxu0 0
    %788 = vmatprep.subr.bf16.mxu0 0
    %789 = vmatpush2.bf16.xpose.msra.mxu0 0
    %790 = vmatprep.subr.bf16.mxu0 0
    %791 = vmatpush2.bf16.xpose.msra.mxu0 0
    %792 = vmatprep.subr.bf16.mxu0 0
    %793 = vmatpush2.bf16.xpose.msra.mxu0 0
    %794 = vmatprep.subr.bf16.mxu0 0
    %795 = vmatpush2.bf16.xpose.msra.mxu0 0
    %796 = vmatprep.subr.bf16.mxu0 0
    %797 = vmatpush2.bf16.xpose.msra.mxu0 0
    %798 = vmatprep.subr.bf16.mxu0 0
    %799 = vmatpush2.bf16.xpose.msra.mxu0 0
    %800 = vmatprep.subr.bf16.mxu0 0
    %801 = vmatpush2.bf16.xpose.msra.mxu0 0
    %802 = vmatprep.mubr.bf16.mxu0 0
    %803 = vmatmul.mubr.bf16.gmra.mxu0 %v765
    %v804 = vpop.f32.mrf.mxu0
    %v805 = vadd.f32 0.0, %v804
    %v806 = vpop.f32.mrf.mxu0
    %v807 = vpop.f32.mrf.mxu0
    %v808 = vpop.f32.mrf.mxu0
    %809 = vdwg.mxu0
    %811 = vrot.lane.b32.xlu0 %v527, 120
    %v812 = vpop.permute.xlu0 %811
    %814 = vrot.lane.b32.xlu0 %v529, 120
    %v815 = vpop.permute.xlu0 %814
    %v817 = vsel %vm532, %v812, 0
    %v820 = vsel %vm532, %v815, 0
    %822 = vmatprep.subr.bf16.mxu0 0
    %823 = vmatpush1.bf16.xpose.msra.mxu0 0
    %824 = vmatprep.subr.bf16.mxu0 0
    %825 = vmatpush1.bf16.xpose.msra.mxu0 0
    %826 = vmatprep.subr.bf16.mxu0 0
    %827 = vmatpush1.bf16.xpose.msra.mxu0 0
    %828 = vmatprep.subr.bf16.mxu0 0
    %829 = vmatpush1.bf16.xpose.msra.mxu0 0
    %830 = vmatprep.subr.bf16.mxu0 0
    %831 = vmatpush1.bf16.xpose.msra.mxu0 0
    %832 = vmatprep.subr.bf16.mxu0 0
    %833 = vmatpush1.bf16.xpose.msra.mxu0 0
    %834 = vmatprep.subr.bf16.mxu0 0
    %835 = vmatpush1.bf16.xpose.msra.mxu0 0
    %836 = vmatprep.subr.bf16.mxu0 0
    %837 = vmatpush1.bf16.xpose.msra.mxu0 %v820
    %838 = vmatprep.subr.bf16.mxu0 0
    %839 = vmatpush2.bf16.xpose.msra.mxu0 0
    %840 = vmatprep.subr.bf16.mxu0 0
    %841 = vmatpush2.bf16.xpose.msra.mxu0 0
    %842 = vmatprep.subr.bf16.mxu0 0
    %843 = vmatpush2.bf16.xpose.msra.mxu0 0
    %844 = vmatprep.subr.bf16.mxu0 0
    %845 = vmatpush2.bf16.xpose.msra.mxu0 0
    %846 = vmatprep.subr.bf16.mxu0 0
    %847 = vmatpush2.bf16.xpose.msra.mxu0 0
    %848 = vmatprep.subr.bf16.mxu0 0
    %849 = vmatpush2.bf16.xpose.msra.mxu0 0
    %850 = vmatprep.subr.bf16.mxu0 0
    %851 = vmatpush2.bf16.xpose.msra.mxu0 0
    %852 = vmatprep.subr.bf16.mxu0 0
    %853 = vmatpush2.bf16.xpose.msra.mxu0 0
    %854 = vmatprep.mubr.bf16.mxu0 0
    %855 = vmatmul.mubr.bf16.gmra.mxu0 %v817
    %v856 = vpop.f32.mrf.mxu0
    %v857 = vadd.f32 0.0, %v856
    %v858 = vpop.f32.mrf.mxu0
    %v859 = vpop.f32.mrf.mxu0
    %v860 = vpop.f32.mrf.mxu0
    %861 = vdwg.mxu0
    %v862 = vmul.f32 %v805, 0.35355338
    %v863 = vmul.f32 %v857, 0.35355338
    %v864 = vadd.f32 %v862, %v632
    %v865 = vadd.f32 %v863, %v636
    %v866 = vsel %vm532, %v864, -inf
    %867 = vmax.xlane.f32.xlu0 %v866
    %v868 = vpop.xlane.xlu0 %867
    %v869 = vsel %vm532, %v865, -inf
    %870 = vmax.xlane.f32.xlu0 %v869
    %v871 = vpop.xlane.xlu0 %870
    %v872 = vsub.f32 %v864, %v868
    %v873 = vsub.f32 %v865, %v871
    %v874 = vmul.f32 %v872, 1.442695
    %v875 = vpow.pop %v874
    %v876 = vmul.f32 %v873, 1.442695
    %v877 = vpow.pop %v876
    %v878 = vsel %vm532, %v875, 0.0
    %879 = vadd.xlane.f32.xlu0 %v878
    %v880 = vpop.xlane.xlu0 %879
    %v881 = vsel %vm532, %v877, 0.0
    %882 = vadd.xlane.f32.xlu0 %v881
    %v883 = vpop.xlane.xlu0 %882
    %v884 = vrcp.pop %v880
    %v885 = vrcp.pop %v883
    %v886 = vmul.f32 %v875, %v884
    %v887 = vmul.f32 %v877, %v885
    %v888 = vpack.c.bf16 %v886, %v886
    %v889 = vpack.c.bf16 %v887, %v887
    %891 = vrot.lane.b32.xlu0 %v530, 120
    %v892 = vpop.permute.xlu0 %891
    %v894 = vsel %vm532, %v888, 0
    %v897 = vsel %vm668, %v892, 0
    %899 = vmatprep.subr.bf16.mxu0 0
    %900 = vmatpush1.bf16.msra.mxu0 0
    %901 = vmatprep.subr.bf16.mxu0 0
    %902 = vmatpush1.bf16.msra.mxu0 0
    %903 = vmatprep.subr.bf16.mxu0 0
    %904 = vmatpush1.bf16.msra.mxu0 0
    %905 = vmatprep.subr.bf16.mxu0 0
    %906 = vmatpush1.bf16.msra.mxu0 0
    %907 = vmatprep.subr.bf16.mxu0 0
    %908 = vmatpush1.bf16.msra.mxu0 0
    %909 = vmatprep.subr.bf16.mxu0 0
    %910 = vmatpush1.bf16.msra.mxu0 0
    %911 = vmatprep.subr.bf16.mxu0 0
    %912 = vmatpush1.bf16.msra.mxu0 0
    %913 = vmatprep.subr.bf16.mxu0 0
    %914 = vmatpush1.bf16.msra.mxu0 %v897
    %915 = vmatprep.subr.bf16.mxu0 0
    %916 = vmatpush2.bf16.msra.mxu0 0
    %917 = vmatprep.subr.bf16.mxu0 0
    %918 = vmatpush2.bf16.msra.mxu0 0
    %919 = vmatprep.subr.bf16.mxu0 0
    %920 = vmatpush2.bf16.msra.mxu0 0
    %921 = vmatprep.subr.bf16.mxu0 0
    %922 = vmatpush2.bf16.msra.mxu0 0
    %923 = vmatprep.subr.bf16.mxu0 0
    %924 = vmatpush2.bf16.msra.mxu0 0
    %925 = vmatprep.subr.bf16.mxu0 0
    %926 = vmatpush2.bf16.msra.mxu0 0
    %927 = vmatprep.subr.bf16.mxu0 0
    %928 = vmatpush2.bf16.msra.mxu0 0
    %929 = vmatprep.subr.bf16.mxu0 0
    %930 = vmatpush2.bf16.msra.mxu0 0
    %931 = vmatprep.mubr.bf16.mxu0 0
    %932 = vmatmul.mubr.bf16.gmra.mxu0 %v894
    %v933 = vpop.f32.mrf.mxu0
    %v934 = vadd.f32 0.0, %v933
    %v935 = vpop.f32.mrf.mxu0
    %v936 = vpop.f32.mrf.mxu0
    %v937 = vpop.f32.mrf.mxu0
    %938 = vdwg.mxu0
    %940 = vrot.lane.b32.xlu0 %v531, 120
    %v941 = vpop.permute.xlu0 %940
    %v943 = vsel %vm532, %v889, 0
    %v946 = vsel %vm668, %v941, 0
    %948 = vmatprep.subr.bf16.mxu0 0
    %949 = vmatpush1.bf16.msra.mxu0 0
    %950 = vmatprep.subr.bf16.mxu0 0
    %951 = vmatpush1.bf16.msra.mxu0 0
    %952 = vmatprep.subr.bf16.mxu0 0
    %953 = vmatpush1.bf16.msra.mxu0 0
    %954 = vmatprep.subr.bf16.mxu0 0
    %955 = vmatpush1.bf16.msra.mxu0 0
    %956 = vmatprep.subr.bf16.mxu0 0
    %957 = vmatpush1.bf16.msra.mxu0 0
    %958 = vmatprep.subr.bf16.mxu0 0
    %959 = vmatpush1.bf16.msra.mxu0 0
    %960 = vmatprep.subr.bf16.mxu0 0
    %961 = vmatpush1.bf16.msra.mxu0 0
    %962 = vmatprep.subr.bf16.mxu0 0
    %963 = vmatpush1.bf16.msra.mxu0 %v946
    %964 = vmatprep.subr.bf16.mxu0 0
    %965 = vmatpush2.bf16.msra.mxu0 0
    %966 = vmatprep.subr.bf16.mxu0 0
    %967 = vmatpush2.bf16.msra.mxu0 0
    %968 = vmatprep.subr.bf16.mxu0 0
    %969 = vmatpush2.bf16.msra.mxu0 0
    %970 = vmatprep.subr.bf16.mxu0 0
    %971 = vmatpush2.bf16.msra.mxu0 0
    %972 = vmatprep.subr.bf16.mxu0 0
    %973 = vmatpush2.bf16.msra.mxu0 0
    %974 = vmatprep.subr.bf16.mxu0 0
    %975 = vmatpush2.bf16.msra.mxu0 0
    %976 = vmatprep.subr.bf16.mxu0 0
    %977 = vmatpush2.bf16.msra.mxu0 0
    %978 = vmatprep.subr.bf16.mxu0 0
    %979 = vmatpush2.bf16.msra.mxu0 0
    %980 = vmatprep.mubr.bf16.mxu0 0
    %981 = vmatmul.mubr.bf16.gmra.mxu0 %v943
    %v982 = vpop.f32.mrf.mxu0
    %v983 = vadd.f32 0.0, %v982
    %v984 = vpop.f32.mrf.mxu0
    %v985 = vpop.f32.mrf.mxu0
    %v986 = vpop.f32.mrf.mxu0
    %987 = vdwg.mxu0
    %988 = vrot.lane.b32.xlu0 %v526, 112
    %v989 = vpop.permute.xlu0 %988
    %990 = vrot.lane.b32.xlu0 %v528, 112
    %v991 = vpop.permute.xlu0 %990
    %v993 = vsel %vm532, %v989, 0
    %v996 = vsel %vm532, %v991, 0
    %998 = vmatprep.subr.bf16.mxu0 0
    %999 = vmatpush1.bf16.xpose.msra.mxu0 0
    %1000 = vmatprep.subr.bf16.mxu0 0
    %1001 = vmatpush1.bf16.xpose.msra.mxu0 0
    %1002 = vmatprep.subr.bf16.mxu0 0
    %1003 = vmatpush1.bf16.xpose.msra.mxu0 0
    %1004 = vmatprep.subr.bf16.mxu0 0
    %1005 = vmatpush1.bf16.xpose.msra.mxu0 0
    %1006 = vmatprep.subr.bf16.mxu0 0
    %1007 = vmatpush1.bf16.xpose.msra.mxu0 0
    %1008 = vmatprep.subr.bf16.mxu0 0
    %1009 = vmatpush1.bf16.xpose.msra.mxu0 0
    %1010 = vmatprep.subr.bf16.mxu0 0
    %1011 = vmatpush1.bf16.xpose.msra.mxu0 0
    %1012 = vmatprep.subr.bf16.mxu0 0
    %1013 = vmatpush1.bf16.xpose.msra.mxu0 %v996
    %1014 = vmatprep.subr.bf16.mxu0 0
    %1015 = vmatpush2.bf16.xpose.msra.mxu0 0
    %1016 = vmatprep.subr.bf16.mxu0 0
    %1017 = vmatpush2.bf16.xpose.msra.mxu0 0
    %1018 = vmatprep.subr.bf16.mxu0 0
    %1019 = vmatpush2.bf16.xpose.msra.mxu0 0
    %1020 = vmatprep.subr.bf16.mxu0 0
    %1021 = vmatpush2.bf16.xpose.msra.mxu0 0
    %1022 = vmatprep.subr.bf16.mxu0 0
    %1023 = vmatpush2.bf16.xpose.msra.mxu0 0
    %1024 = vmatprep.subr.bf16.mxu0 0
    %1025 = vmatpush2.bf16.xpose.msra.mxu0 0
    %1026 = vmatprep.subr.bf16.mxu0 0
    %1027 = vmatpush2.bf16.xpose.msra.mxu0 0
    %1028 = vmatprep.subr.bf16.mxu0 0
    %1029 = vmatpush2.bf16.xpose.msra.mxu0 0
    %1030 = vmatprep.mubr.bf16.mxu0 0
    %1031 = vmatmul.mubr.bf16.gmra.mxu0 %v993
    %v1032 = vpop.f32.mrf.mxu0
    %v1033 = vadd.f32 0.0, %v1032
    %v1034 = vpop.f32.mrf.mxu0
    %v1035 = vpop.f32.mrf.mxu0
    %v1036 = vpop.f32.mrf.mxu0
    %1037 = vdwg.mxu0
    %1038 = vrot.lane.b32.xlu0 %v527, 112
    %v1039 = vpop.permute.xlu0 %1038
    %1040 = vrot.lane.b32.xlu0 %v529, 112
    %v1041 = vpop.permute.xlu0 %1040
    %v1043 = vsel %vm532, %v1039, 0
    %v1046 = vsel %vm532, %v1041, 0
    %1048 = vmatprep.subr.bf16.mxu0 0
    %1049 = vmatpush1.bf16.xpose.msra.mxu0 0
    %1050 = vmatprep.subr.bf16.mxu0 0
    %1051 = vmatpush1.bf16.xpose.msra.mxu0 0
    %1052 = vmatprep.subr.bf16.mxu0 0
    %1053 = vmatpush1.bf16.xpose.msra.mxu0 0
    %1054 = vmatprep.subr.bf16.mxu0 0
    %1055 = vmatpush1.bf16.xpose.msra.mxu0 0
    %1056 = vmatprep.subr.bf16.mxu0 0
    %1057 = vmatpush1.bf16.xpose.msra.mxu0 0
    %1058 = vmatprep.subr.bf16.mxu0 0
    %1059 = vmatpush1.bf16.xpose.msra.mxu0 0
    %1060 = vmatprep.subr.bf16.mxu0 0
    %1061 = vmatpush1.bf16.xpose.msra.mxu0 0
    %1062 = vmatprep.subr.bf16.mxu0 0
    %1063 = vmatpush1.bf16.xpose.msra.mxu0 %v1046
    %1064 = vmatprep.subr.bf16.mxu0 0
    %1065 = vmatpush2.bf16.xpose.msra.mxu0 0
    %1066 = vmatprep.subr.bf16.mxu0 0
    %1067 = vmatpush2.bf16.xpose.msra.mxu0 0
    %1068 = vmatprep.subr.bf16.mxu0 0
    %1069 = vmatpush2.bf16.xpose.msra.mxu0 0
    %1070 = vmatprep.subr.bf16.mxu0 0
    %1071 = vmatpush2.bf16.xpose.msra.mxu0 0
    %1072 = vmatprep.subr.bf16.mxu0 0
    %1073 = vmatpush2.bf16.xpose.msra.mxu0 0
    %1074 = vmatprep.subr.bf16.mxu0 0
    %1075 = vmatpush2.bf16.xpose.msra.mxu0 0
    %1076 = vmatprep.subr.bf16.mxu0 0
    %1077 = vmatpush2.bf16.xpose.msra.mxu0 0
    %1078 = vmatprep.subr.bf16.mxu0 0
    %1079 = vmatpush2.bf16.xpose.msra.mxu0 0
    %1080 = vmatprep.mubr.bf16.mxu0 0
    %1081 = vmatmul.mubr.bf16.gmra.mxu0 %v1043
    %v1082 = vpop.f32.mrf.mxu0
    %v1083 = vadd.f32 0.0, %v1082
    %v1084 = vpop.f32.mrf.mxu0
    %v1085 = vpop.f32.mrf.mxu0
    %v1086 = vpop.f32.mrf.mxu0
    %1087 = vdwg.mxu0
    %v1088 = vmul.f32 %v1033, 0.35355338
    %v1089 = vmul.f32 %v1083, 0.35355338
    %v1090 = vadd.f32 %v1088, %v632
    %v1091 = vadd.f32 %v1089, %v636
    %v1092 = vsel %vm532, %v1090, -inf
    %1093 = vmax.xlane.f32.xlu0 %v1092
    %v1094 = vpop.xlane.xlu0 %1093
    %v1095 = vsel %vm532, %v1091, -inf
    %1096 = vmax.xlane.f32.xlu0 %v1095
    %v1097 = vpop.xlane.xlu0 %1096
    %v1098 = vsub.f32 %v1090, %v1094
    %v1099 = vsub.f32 %v1091, %v1097
    %v1100 = vmul.f32 %v1098, 1.442695
    %v1101 = vpow.pop %v1100
    %v1102 = vmul.f32 %v1099, 1.442695
    %v1103 = vpow.pop %v1102
    %v1104 = vsel %vm532, %v1101, 0.0
    %1105 = vadd.xlane.f32.xlu0 %v1104
    %v1106 = vpop.xlane.xlu0 %1105
    %v1107 = vsel %vm532, %v1103, 0.0
    %1108 = vadd.xlane.f32.xlu0 %v1107
    %v1109 = vpop.xlane.xlu0 %1108
    %v1110 = vrcp.pop %v1106
    %v1111 = vrcp.pop %v1109
    %v1112 = vmul.f32 %v1101, %v1110
    %v1113 = vmul.f32 %v1103, %v1111
    %v1114 = vpack.c.bf16 %v1112, %v1112
    %v1115 = vpack.c.bf16 %v1113, %v1113
    %1116 = vrot.lane.b32.xlu0 %v530, 112
    %v1117 = vpop.permute.xlu0 %1116
    %v1119 = vsel %vm532, %v1114, 0
    %v1122 = vsel %vm668, %v1117, 0
    %1124 = vmatprep.subr.bf16.mxu0 0
    %1125 = vmatpush1.bf16.msra.mxu0 0
    %1126 = vmatprep.subr.bf16.mxu0 0
    %1127 = vmatpush1.bf16.msra.mxu0 0
    %1128 = vmatprep.subr.bf16.mxu0 0
    %1129 = vmatpush1.bf16.msra.mxu0 0
    %1130 = vmatprep.subr.bf16.mxu0 0
    %1131 = vmatpush1.bf16.msra.mxu0 0
    %1132 = vmatprep.subr.bf16.mxu0 0
    %1133 = vmatpush1.bf16.msra.mxu0 0
    %1134 = vmatprep.subr.bf16.mxu0 0
    %1135 = vmatpush1.bf16.msra.mxu0 0
    %1136 = vmatprep.subr.bf16.mxu0 0
    %1137 = vmatpush1.bf16.msra.mxu0 0
    %1138 = vmatprep.subr.bf16.mxu0 0
    %1139 = vmatpush1.bf16.msra.mxu0 %v1122
    %1140 = vmatprep.subr.bf16.mxu0 0
    %1141 = vmatpush2.bf16.msra.mxu0 0
    %1142 = vmatprep.subr.bf16.mxu0 0
    %1143 = vmatpush2.bf16.msra.mxu0 0
    %1144 = vmatprep.subr.bf16.mxu0 0
    %1145 = vmatpush2.bf16.msra.mxu0 0
    %1146 = vmatprep.subr.bf16.mxu0 0
    %1147 = vmatpush2.bf16.msra.mxu0 0
    %1148 = vmatprep.subr.bf16.mxu0 0
    %1149 = vmatpush2.bf16.msra.mxu0 0
    %1150 = vmatprep.subr.bf16.mxu0 0
    %1151 = vmatpush2.bf16.msra.mxu0 0
    %1152 = vmatprep.subr.bf16.mxu0 0
    %1153 = vmatpush2.bf16.msra.mxu0 0
    %1154 = vmatprep.subr.bf16.mxu0 0
    %1155 = vmatpush2.bf16.msra.mxu0 0
    %1156 = vmatprep.mubr.bf16.mxu0 0
    %1157 = vmatmul.mubr.bf16.gmra.mxu0 %v1119
    %v1158 = vpop.f32.mrf.mxu0
    %v1159 = vadd.f32 0.0, %v1158
    %v1160 = vpop.f32.mrf.mxu0
    %v1161 = vpop.f32.mrf.mxu0
    %v1162 = vpop.f32.mrf.mxu0
    %1163 = vdwg.mxu0
    %1164 = vrot.lane.b32.xlu0 %v531, 112
    %v1165 = vpop.permute.xlu0 %1164
    %v1167 = vsel %vm532, %v1115, 0
    %v1170 = vsel %vm668, %v1165, 0
    %1172 = vmatprep.subr.bf16.mxu0 0
    %1173 = vmatpush1.bf16.msra.mxu0 0
    %1174 = vmatprep.subr.bf16.mxu0 0
    %1175 = vmatpush1.bf16.msra.mxu0 0
    %1176 = vmatprep.subr.bf16.mxu0 0
    %1177 = vmatpush1.bf16.msra.mxu0 0
    %1178 = vmatprep.subr.bf16.mxu0 0
    %1179 = vmatpush1.bf16.msra.mxu0 0
    %1180 = vmatprep.subr.bf16.mxu0 0
    %1181 = vmatpush1.bf16.msra.mxu0 0
    %1182 = vmatprep.subr.bf16.mxu0 0
    %1183 = vmatpush1.bf16.msra.mxu0 0
    %1184 = vmatprep.subr.bf16.mxu0 0
    %1185 = vmatpush1.bf16.msra.mxu0 0
    %1186 = vmatprep.subr.bf16.mxu0 0
    %1187 = vmatpush1.bf16.msra.mxu0 %v1170
    %1188 = vmatprep.subr.bf16.mxu0 0
    %1189 = vmatpush2.bf16.msra.mxu0 0
    %1190 = vmatprep.subr.bf16.mxu0 0
    %1191 = vmatpush2.bf16.msra.mxu0 0
    %1192 = vmatprep.subr.bf16.mxu0 0
    %1193 = vmatpush2.bf16.msra.mxu0 0
    %1194 = vmatprep.subr.bf16.mxu0 0
    %1195 = vmatpush2.bf16.msra.mxu0 0
    %1196 = vmatprep.subr.bf16.mxu0 0
    %1197 = vmatpush2.bf16.msra.mxu0 0
    %1198 = vmatprep.subr.bf16.mxu0 0
    %1199 = vmatpush2.bf16.msra.mxu0 0
    %1200 = vmatprep.subr.bf16.mxu0 0
    %1201 = vmatpush2.bf16.msra.mxu0 0
    %1202 = vmatprep.subr.bf16.mxu0 0
    %1203 = vmatpush2.bf16.msra.mxu0 0
    %1204 = vmatprep.mubr.bf16.mxu0 0
    %1205 = vmatmul.mubr.bf16.gmra.mxu0 %v1167
    %v1206 = vpop.f32.mrf.mxu0
    %v1207 = vadd.f32 0.0, %v1206
    %v1208 = vpop.f32.mrf.mxu0
    %v1209 = vpop.f32.mrf.mxu0
    %v1210 = vpop.f32.mrf.mxu0
    %1211 = vdwg.mxu0
    %1212 = vrot.lane.b32.xlu0 %v526, 104
    %v1213 = vpop.permute.xlu0 %1212
    %1214 = vrot.lane.b32.xlu0 %v528, 104
    %v1215 = vpop.permute.xlu0 %1214
    %v1217 = vsel %vm532, %v1213, 0
    %v1220 = vsel %vm532, %v1215, 0
    %1222 = vmatprep.subr.bf16.mxu0 0
    %1223 = vmatpush1.bf16.xpose.msra.mxu0 0
    %1224 = vmatprep.subr.bf16.mxu0 0
    %1225 = vmatpush1.bf16.xpose.msra.mxu0 0
    %1226 = vmatprep.subr.bf16.mxu0 0
    %1227 = vmatpush1.bf16.xpose.msra.mxu0 0
    %1228 = vmatprep.subr.bf16.mxu0 0
    %1229 = vmatpush1.bf16.xpose.msra.mxu0 0
    %1230 = vmatprep.subr.bf16.mxu0 0
    %1231 = vmatpush1.bf16.xpose.msra.mxu0 0
    %1232 = vmatprep.subr.bf16.mxu0 0
    %1233 = vmatpush1.bf16.xpose.msra.mxu0 0
    %1234 = vmatprep.subr.bf16.mxu0 0
    %1235 = vmatpush1.bf16.xpose.msra.mxu0 0
    %1236 = vmatprep.subr.bf16.mxu0 0
    %1237 = vmatpush1.bf16.xpose.msra.mxu0 %v1220
    %1238 = vmatprep.subr.bf16.mxu0 0
    %1239 = vmatpush2.bf16.xpose.msra.mxu0 0
    %1240 = vmatprep.subr.bf16.mxu0 0
    %1241 = vmatpush2.bf16.xpose.msra.mxu0 0
    %1242 = vmatprep.subr.bf16.mxu0 0
    %1243 = vmatpush2.bf16.xpose.msra.mxu0 0
    %1244 = vmatprep.subr.bf16.mxu0 0
    %1245 = vmatpush2.bf16.xpose.msra.mxu0 0
    %1246 = vmatprep.subr.bf16.mxu0 0
    %1247 = vmatpush2.bf16.xpose.msra.mxu0 0
    %1248 = vmatprep.subr.bf16.mxu0 0
    %1249 = vmatpush2.bf16.xpose.msra.mxu0 0
    %1250 = vmatprep.subr.bf16.mxu0 0
    %1251 = vmatpush2.bf16.xpose.msra.mxu0 0
    %1252 = vmatprep.subr.bf16.mxu0 0
    %1253 = vmatpush2.bf16.xpose.msra.mxu0 0
    %1254 = vmatprep.mubr.bf16.mxu0 0
    %1255 = vmatmul.mubr.bf16.gmra.mxu0 %v1217
    %v1256 = vpop.f32.mrf.mxu0
    %v1257 = vadd.f32 0.0, %v1256
    %v1258 = vpop.f32.mrf.mxu0
    %v1259 = vpop.f32.mrf.mxu0
    %v1260 = vpop.f32.mrf.mxu0
    %1261 = vdwg.mxu0
    %1262 = vrot.lane.b32.xlu0 %v527, 104
    %v1263 = vpop.permute.xlu0 %1262
    %1264 = vrot.lane.b32.xlu0 %v529, 104
    %v1265 = vpop.permute.xlu0 %1264
    %v1267 = vsel %vm532, %v1263, 0
    %v1270 = vsel %vm532, %v1265, 0
    %1272 = vmatprep.subr.bf16.mxu0 0
    %1273 = vmatpush1.bf16.xpose.msra.mxu0 0
    %1274 = vmatprep.subr.bf16.mxu0 0
    %1275 = vmatpush1.bf16.xpose.msra.mxu0 0
    %1276 = vmatprep.subr.bf16.mxu0 0
    %1277 = vmatpush1.bf16.xpose.msra.mxu0 0
    %1278 = vmatprep.subr.bf16.mxu0 0
    %1279 = vmatpush1.bf16.xpose.msra.mxu0 0
    %1280 = vmatprep.subr.bf16.mxu0 0
    %1281 = vmatpush1.bf16.xpose.msra.mxu0 0
    %1282 = vmatprep.subr.bf16.mxu0 0
    %1283 = vmatpush1.bf16.xpose.msra.mxu0 0
    %1284 = vmatprep.subr.bf16.mxu0 0
    %1285 = vmatpush1.bf16.xpose.msra.mxu0 0
    %1286 = vmatprep.subr.bf16.mxu0 0
    %1287 = vmatpush1.bf16.xpose.msra.mxu0 %v1270
    %1288 = vmatprep.subr.bf16.mxu0 0
    %1289 = vmatpush2.bf16.xpose.msra.mxu0 0
    %1290 = vmatprep.subr.bf16.mxu0 0
    %1291 = vmatpush2.bf16.xpose.msra.mxu0 0
    %1292 = vmatprep.subr.bf16.mxu0 0
    %1293 = vmatpush2.bf16.xpose.msra.mxu0 0
    %1294 = vmatprep.subr.bf16.mxu0 0
    %1295 = vmatpush2.bf16.xpose.msra.mxu0 0
    %1296 = vmatprep.subr.bf16.mxu0 0
    %1297 = vmatpush2.bf16.xpose.msra.mxu0 0
    %1298 = vmatprep.subr.bf16.mxu0 0
    %1299 = vmatpush2.bf16.xpose.msra.mxu0 0
    %1300 = vmatprep.subr.bf16.mxu0 0
    %1301 = vmatpush2.bf16.xpose.msra.mxu0 0
    %1302 = vmatprep.subr.bf16.mxu0 0
    %1303 = vmatpush2.bf16.xpose.msra.mxu0 0
    %1304 = vmatprep.mubr.bf16.mxu0 0
    %1305 = vmatmul.mubr.bf16.gmra.mxu0 %v1267
    %v1306 = vpop.f32.mrf.mxu0
    %v1307 = vadd.f32 0.0, %v1306
    %v1308 = vpop.f32.mrf.mxu0
    %v1309 = vpop.f32.mrf.mxu0
    %v1310 = vpop.f32.mrf.mxu0
    %1311 = vdwg.mxu0
    %v1312 = vmul.f32 %v1257, 0.35355338
    %v1313 = vmul.f32 %v1307, 0.35355338
    %v1314 = vadd.f32 %v1312, %v632
    %v1315 = vadd.f32 %v1313, %v636
    %v1316 = vsel %vm532, %v1314, -inf
    %1317 = vmax.xlane.f32.xlu0 %v1316
    %v1318 = vpop.xlane.xlu0 %1317
    %v1319 = vsel %vm532, %v1315, -inf
    %1320 = vmax.xlane.f32.xlu0 %v1319
    %v1321 = vpop.xlane.xlu0 %1320
    %v1322 = vsub.f32 %v1314, %v1318
    %v1323 = vsub.f32 %v1315, %v1321
    %v1324 = vmul.f32 %v1322, 1.442695
    %v1325 = vpow.pop %v1324
    %v1326 = vmul.f32 %v1323, 1.442695
    %v1327 = vpow.pop %v1326
    %v1328 = vsel %vm532, %v1325, 0.0
    %1329 = vadd.xlane.f32.xlu0 %v1328
    %v1330 = vpop.xlane.xlu0 %1329
    %v1331 = vsel %vm532, %v1327, 0.0
    %1332 = vadd.xlane.f32.xlu0 %v1331
    %v1333 = vpop.xlane.xlu0 %1332
    %v1334 = vrcp.pop %v1330
    %v1335 = vrcp.pop %v1333
    %v1336 = vmul.f32 %v1325, %v1334
    %v1337 = vmul.f32 %v1327, %v1335
    %v1338 = vpack.c.bf16 %v1336, %v1336
    %v1339 = vpack.c.bf16 %v1337, %v1337
    %1340 = vrot.lane.b32.xlu0 %v530, 104
    %v1341 = vpop.permute.xlu0 %1340
    %v1343 = vsel %vm532, %v1338, 0
    %v1346 = vsel %vm668, %v1341, 0
    %1348 = vmatprep.subr.bf16.mxu0 0
    %1349 = vmatpush1.bf16.msra.mxu0 0
    %1350 = vmatprep.subr.bf16.mxu0 0
    %1351 = vmatpush1.bf16.msra.mxu0 0
    %1352 = vmatprep.subr.bf16.mxu0 0
    %1353 = vmatpush1.bf16.msra.mxu0 0
    %1354 = vmatprep.subr.bf16.mxu0 0
    %1355 = vmatpush1.bf16.msra.mxu0 0
    %1356 = vmatprep.subr.bf16.mxu0 0
    %1357 = vmatpush1.bf16.msra.mxu0 0
    %1358 = vmatprep.subr.bf16.mxu0 0
    %1359 = vmatpush1.bf16.msra.mxu0 0
    %1360 = vmatprep.subr.bf16.mxu0 0
    %1361 = vmatpush1.bf16.msra.mxu0 0
    %1362 = vmatprep.subr.bf16.mxu0 0
    %1363 = vmatpush1.bf16.msra.mxu0 %v1346
    %1364 = vmatprep.subr.bf16.mxu0 0
    %1365 = vmatpush2.bf16.msra.mxu0 0
    %1366 = vmatprep.subr.bf16.mxu0 0
    %1367 = vmatpush2.bf16.msra.mxu0 0
    %1368 = vmatprep.subr.bf16.mxu0 0
    %1369 = vmatpush2.bf16.msra.mxu0 0
    %1370 = vmatprep.subr.bf16.mxu0 0
    %1371 = vmatpush2.bf16.msra.mxu0 0
    %1372 = vmatprep.subr.bf16.mxu0 0
    %1373 = vmatpush2.bf16.msra.mxu0 0
    %1374 = vmatprep.subr.bf16.mxu0 0
    %1375 = vmatpush2.bf16.msra.mxu0 0
    %1376 = vmatprep.subr.bf16.mxu0 0
    %1377 = vmatpush2.bf16.msra.mxu0 0
    %1378 = vmatprep.subr.bf16.mxu0 0
    %1379 = vmatpush2.bf16.msra.mxu0 0
    %1380 = vmatprep.mubr.bf16.mxu0 0
    %1381 = vmatmul.mubr.bf16.gmra.mxu0 %v1343
    %v1382 = vpop.f32.mrf.mxu0
    %v1383 = vadd.f32 0.0, %v1382
    %v1384 = vpop.f32.mrf.mxu0
    %v1385 = vpop.f32.mrf.mxu0
    %v1386 = vpop.f32.mrf.mxu0
    %1387 = vdwg.mxu0
    %1388 = vrot.lane.b32.xlu0 %v531, 104
    %v1389 = vpop.permute.xlu0 %1388
    %v1391 = vsel %vm532, %v1339, 0
    %v1394 = vsel %vm668, %v1389, 0
    %1396 = vmatprep.subr.bf16.mxu0 0
    %1397 = vmatpush1.bf16.msra.mxu0 0
    %1398 = vmatprep.subr.bf16.mxu0 0
    %1399 = vmatpush1.bf16.msra.mxu0 0
    %1400 = vmatprep.subr.bf16.mxu0 0
    %1401 = vmatpush1.bf16.msra.mxu0 0
    %1402 = vmatprep.subr.bf16.mxu0 0
    %1403 = vmatpush1.bf16.msra.mxu0 0
    %1404 = vmatprep.subr.bf16.mxu0 0
    %1405 = vmatpush1.bf16.msra.mxu0 0
    %1406 = vmatprep.subr.bf16.mxu0 0
    %1407 = vmatpush1.bf16.msra.mxu0 0
    %1408 = vmatprep.subr.bf16.mxu0 0
    %1409 = vmatpush1.bf16.msra.mxu0 0
    %1410 = vmatprep.subr.bf16.mxu0 0
    %1411 = vmatpush1.bf16.msra.mxu0 %v1394
    %1412 = vmatprep.subr.bf16.mxu0 0
    %1413 = vmatpush2.bf16.msra.mxu0 0
    %1414 = vmatprep.subr.bf16.mxu0 0
    %1415 = vmatpush2.bf16.msra.mxu0 0
    %1416 = vmatprep.subr.bf16.mxu0 0
    %1417 = vmatpush2.bf16.msra.mxu0 0
    %1418 = vmatprep.subr.bf16.mxu0 0
    %1419 = vmatpush2.bf16.msra.mxu0 0
    %1420 = vmatprep.subr.bf16.mxu0 0
    %1421 = vmatpush2.bf16.msra.mxu0 0
    %1422 = vmatprep.subr.bf16.mxu0 0
    %1423 = vmatpush2.bf16.msra.mxu0 0
    %1424 = vmatprep.subr.bf16.mxu0 0
    %1425 = vmatpush2.bf16.msra.mxu0 0
    %1426 = vmatprep.subr.bf16.mxu0 0
    %1427 = vmatpush2.bf16.msra.mxu0 0
    %1428 = vmatprep.mubr.bf16.mxu0 0
    %1429 = vmatmul.mubr.bf16.gmra.mxu0 %v1391
    %v1430 = vpop.f32.mrf.mxu0
    %v1431 = vadd.f32 0.0, %v1430
    %v1432 = vpop.f32.mrf.mxu0
    %v1433 = vpop.f32.mrf.mxu0
    %v1434 = vpop.f32.mrf.mxu0
    %1435 = vdwg.mxu0
    %1438 = vrot.lane.b32.xlu0 %v934, 8
    %v1439 = vpop.permute.xlu0 %1438
    %1440 = vrot.lane.b32.xlu0 %v983, 8
    %v1441 = vpop.permute.xlu0 %1440
    %1446 = vrot.lane.b32.xlu0 %v1159, 16
    %v1447 = vpop.permute.xlu0 %1446
    %1448 = vrot.lane.b32.xlu0 %v1207, 16
    %v1449 = vpop.permute.xlu0 %1448
    %1454 = vrot.lane.b32.xlu0 %v1383, 24
    %v1455 = vpop.permute.xlu0 %1454
    %1456 = vrot.lane.b32.xlu0 %v1431, 24
    %v1457 = vpop.permute.xlu0 %1456
    %v1460 = vsel %vm532, %v707, %v1439
    %v1461 = vsel %vm532, %v753, %v1441
    %vm1462 = vcmask 130048
    %v1463 = vsel %vm1462, %v1460, %v1447
    %v1464 = vsel %vm1462, %v1461, %v1449
    %vm1465 = vcmask 195584
    %v1466 = vsel %vm1465, %v1463, %v1455
    %v1467 = vsel %vm1465, %v1464, %v1457
    %v1468 = vpack.c.bf16 %v1467, %v1466
    %v1469 = vld [vmem:[#allocation14] sm:$0xf]
    %v1470 = vld [vmem:[#allocation14 + $0x4] sm:$0xf]
    %v1471 = vld [vmem:[#allocation14 + $0x8] sm:$0xf]
    %v1472 = vld [vmem:[#allocation14 + $0xc] sm:$0xf]
    %v1473 = vld [vmem:[#allocation16] sm:$0x1]
    %v1475 = vlaneseq
    %v1476 = vshrl.u32 %v1475, 7
    %v1477 = vsub.s32 0, %v1476
    %v1478 = vrot.slane %v1473, %v1477
    %v1484 = vunpack.c.l.b16 %v1469
    %v1485 = vunpack.c.l.b16 %v1470
    %v1486 = vunpack.c.l.b16 %v1471
    %v1487 = vunpack.c.l.b16 %v1472
    %v1488 = vpack.c.b16 %v1485, %v1484
    %v1489 = vpack.c.b16 %v1487, %v1486
    %v1493 = vsel %vm286, %v1468, 0
    %1495 = vmatprep.subr.bf16.mxu0 0
    %1496 = vmatpush1.bf16.msra.mxu0 0
    %1497 = vmatprep.subr.bf16.mxu0 0
    %1498 = vmatpush1.bf16.msra.mxu0 0
    %1499 = vmatprep.subr.bf16.mxu0 0
    %1500 = vmatpush1.bf16.msra.mxu0 0
    %1501 = vmatprep.subr.bf16.mxu0 0
    %1502 = vmatpush1.bf16.msra.mxu0 0
    %1503 = vmatprep.subr.bf16.mxu0 0
    %1504 = vmatpush1.bf16.msra.mxu0 0
    %1505 = vmatprep.subr.bf16.mxu0 0
    %1506 = vmatpush1.bf16.msra.mxu0 0
    %1507 = vmatprep.subr.bf16.mxu0 0
    %1508 = vmatpush1.bf16.msra.mxu0 %v1489
    %1509 = vmatprep.subr.bf16.mxu0 0
    %1510 = vmatpush1.bf16.msra.mxu0 %v1488
    %1511 = vmatprep.subr.bf16.mxu0 0
    %1512 = vmatpush2.bf16.msra.mxu0 0
    %1513 = vmatprep.subr.bf16.mxu0 0
    %1514 = vmatpush2.bf16.msra.mxu0 0
    %1515 = vmatprep.subr.bf16.mxu0 0
    %1516 = vmatpush2.bf16.msra.mxu0 0
    %1517 = vmatprep.subr.bf16.mxu0 0
    %1518 = vmatpush2.bf16.msra.mxu0 0
    %1519 = vmatprep.subr.bf16.mxu0 0
    %1520 = vmatpush2.bf16.msra.mxu0 0
    %1521 = vmatprep.subr.bf16.mxu0 0
    %1522 = vmatpush2.bf16.msra.mxu0 0
    %1523 = vmatprep.subr.bf16.mxu0 0
    %1524 = vmatpush2.bf16.msra.mxu0 0
    %1525 = vmatprep.subr.bf16.mxu0 0
    %1526 = vmatpush2.bf16.msra.mxu0 0
    %1527 = vmatprep.mubr.bf16.mxu0 0
    %1528 = vmatmul.mubr.bf16.gmra.mxu0 %v1493
    %v1529 = vpop.f32.mrf.mxu0
    %v1530 = vadd.f32 %v1478, %v1529
    %v1531 = vpop.f32.mrf.mxu0
    %v1532 = vpop.f32.mrf.mxu0
    %v1533 = vadd.f32 %v1478, %v1532
    %v1534 = vpop.f32.mrf.mxu0
    %1535 = vdwg.mxu0
    %v1536 = vadd.f32 %v1530, %v328
    %v1537 = vadd.f32 %v1533, %v329
    %v1538 = vld [vmem:[#allocation17] sm:$0x1]
    %v1539 = vld [vmem:[#allocation19] sm:$0x1]
    %v1540 = vsel %vm286, %v1536, 0.0
    %1541 = vadd.xlane.f32.xlu0 %v1540
    %v1542 = vpop.xlane.xlu0 %1541
    %v1543 = vsel %vm286, %v1537, 0.0
    %1544 = vadd.xlane.f32.xlu0 %v1543
    %v1545 = vpop.xlane.xlu0 %1544
    %v1546 = vmul.f32 %v1542, %v293
    %v1547 = vmul.f32 %v1545, %v293
    %v1548 = vsub.f32 %v1536, %v1546
    %v1549 = vsub.f32 %v1537, %v1547
    %v1550 = vmul.f32 %v1548, %v1548
    %v1551 = vmul.f32 %v1549, %v1549
    %v1552 = vsel %vm286, %v1550, 0.0
    %1553 = vadd.xlane.f32.xlu0 %v1552
    %v1554 = vpop.xlane.xlu0 %1553
    %v1555 = vsel %vm286, %v1551, 0.0
    %1556 = vadd.xlane.f32.xlu0 %v1555
    %v1557 = vpop.xlane.xlu0 %1556
    %v1558 = vmul.f32 %v1554, %v293
    %v1559 = vmul.f32 %v1557, %v293
    %v1560 = vadd.f32 %v1558, 1e-12
    %v1561 = vadd.f32 %v1559, 1e-12
    %v1562 = vrsqrt.pop %v1560
    %v1563 = vrsqrt.pop %v1561
    %v1564 = vmul.f32 %v1548, %v1562
    %v1565 = vmul.f32 %v1549, %v1563
    %v1567 = vlaneseq
    %v1568 = vshrl.u32 %v1567, 7
    %v1569 = vsub.s32 0, %v1568
    %v1570 = vrot.slane %v1538, %v1569
    %v1572 = vmul.f32 %v1564, %v1570
    %v1573 = vmul.f32 %v1565, %v1570
    %v1575 = vlaneseq
    %v1576 = vshrl.u32 %v1575, 7
    %v1577 = vsub.s32 0, %v1576
    %v1578 = vrot.slane %v1539, %v1577
    %v1580 = vadd.f32 %v1572, %v1578
    %v1581 = vadd.f32 %v1573, %v1578
    %v1582 = vpack.c.bf16 %v1581, %v1580
    %v1583 = vld [vmem:[#allocation20] sm:$0xf]
    %v1584 = vld [vmem:[#allocation20 + $0x4] sm:$0xf]
    %v1585 = vld [vmem:[#allocation20 + $0x8] sm:$0xf]
    %v1586 = vld [vmem:[#allocation20 + $0xc] sm:$0xf]
    %v1587 = vld [vmem:[#allocation22] sm:$0x1]
    %v1589 = vlaneseq
    %v1590 = vshrl.u32 %v1589, 7
    %v1591 = vsub.s32 0, %v1590
    %v1592 = vrot.slane %v1587, %v1591
    %v1598 = vunpack.c.l.b16 %v1583
    %v1599 = vunpack.c.l.b16 %v1584
    %v1600 = vunpack.c.l.b16 %v1585
    %v1601 = vunpack.c.l.b16 %v1586
    %v1602 = vpack.c.b16 %v1599, %v1598
    %v1603 = vpack.c.b16 %v1601, %v1600
    %v1607 = vsel %vm286, %v1582, 0
    %1609 = vmatprep.subr.bf16.mxu0 0
    %1610 = vmatpush1.bf16.msra.mxu0 0
    %1611 = vmatprep.subr.bf16.mxu0 0
    %1612 = vmatpush1.bf16.msra.mxu0 0
    %1613 = vmatprep.subr.bf16.mxu0 0
    %1614 = vmatpush1.bf16.msra.mxu0 0
    %1615 = vmatprep.subr.bf16.mxu0 0
    %1616 = vmatpush1.bf16.msra.mxu0 0
    %1617 = vmatprep.subr.bf16.mxu0 0
    %1618 = vmatpush1.bf16.msra.mxu0 0
    %1619 = vmatprep.subr.bf16.mxu0 0
    %1620 = vmatpush1.bf16.msra.mxu0 0
    %1621 = vmatprep.subr.bf16.mxu0 0
    %1622 = vmatpush1.bf16.msra.mxu0 %v1603
    %1623 = vmatprep.subr.bf16.mxu0 0
    %1624 = vmatpush1.bf16.msra.mxu0 %v1602
    %1625 = vmatprep.subr.bf16.mxu0 0
    %1626 = vmatpush2.bf16.msra.mxu0 0
    %1627 = vmatprep.subr.bf16.mxu0 0
    %1628 = vmatpush2.bf16.msra.mxu0 0
    %1629 = vmatprep.subr.bf16.mxu0 0
    %1630 = vmatpush2.bf16.msra.mxu0 0
    %1631 = vmatprep.subr.bf16.mxu0 0
    %1632 = vmatpush2.bf16.msra.mxu0 0
    %1633 = vmatprep.subr.bf16.mxu0 0
    %1634 = vmatpush2.bf16.msra.mxu0 0
    %1635 = vmatprep.subr.bf16.mxu0 0
    %1636 = vmatpush2.bf16.msra.mxu0 0
    %1637 = vmatprep.subr.bf16.mxu0 0
    %1638 = vmatpush2.bf16.msra.mxu0 0
    %1639 = vmatprep.subr.bf16.mxu0 0
    %1640 = vmatpush2.bf16.msra.mxu0 0
    %1641 = vmatprep.mubr.bf16.mxu0 0
    %1642 = vmatmul.mubr.bf16.gmra.mxu0 %v1607
    %v1643 = vpop.f32.mrf.mxu0
    %v1644 = vadd.f32 %v1592, %v1643
    %v1645 = vpop.f32.mrf.mxu0
    %v1646 = vpop.f32.mrf.mxu0
    %v1647 = vadd.f32 %v1592, %v1646
    %v1648 = vpop.f32.mrf.mxu0
    %1649 = vdwg.mxu0
    %v1650 = vmul.f32 %v1644, 0.5
    %v1651 = vmul.f32 %v1647, 0.5
    %v1652 = vmul.f32 %v1644, 0.70710677
    %v1653 = vmul.f32 %v1647, 0.70710677
    %v1654 = verf.f32.pop %v1652
    %v1655 = verf.f32.pop %v1653
    %v1656 = vadd.f32 %v1654, 1.0
    %v1657 = vadd.f32 %v1655, 1.0
    %v1658 = vmul.f32 %v1650, %v1656
    %v1659 = vmul.f32 %v1651, %v1657
    %v1660 = vpack.c.bf16 %v1659, %v1658
    %v1661 = vld [vmem:[%s16] sm:$0xf]
    %v1662 = vld [vmem:[%s16 + $0x4] sm:$0xf]
    %v1663 = vld [vmem:[%s16 + $0x8] sm:$0xf]
    %v1664 = vld [vmem:[%s16 + $0xc] sm:$0xf]
    %v1665 = vld [vmem:[%s16 + $0x10] sm:$0xf]
    %v1666 = vld [vmem:[%s16 + $0x14] sm:$0xf]
    %v1667 = vld [vmem:[%s16 + $0x18] sm:$0xf]
    %v1668 = vld [vmem:[%s16 + $0x1c] sm:$0xf]
    %v1669 = vld [vmem:[#allocation23] sm:$0x1]
    %v1671 = vlaneseq
    %v1672 = vshrl.u32 %v1671, 7
    %v1673 = vsub.s32 0, %v1672
    %v1674 = vrot.slane %v1669, %v1673
    %v1684 = vunpack.c.l.b16 %v1661
    %v1685 = vunpack.c.l.b16 %v1662
    %v1686 = vunpack.c.l.b16 %v1663
    %v1687 = vunpack.c.l.b16 %v1664
    %v1688 = vunpack.c.l.b16 %v1665
    %v1689 = vunpack.c.l.b16 %v1666
    %v1690 = vunpack.c.l.b16 %v1667
    %v1691 = vunpack.c.l.b16 %v1668
    %v1692 = vpack.c.b16 %v1685, %v1684
    %v1693 = vpack.c.b16 %v1687, %v1686
    %v1694 = vpack.c.b16 %v1689, %v1688
    %v1695 = vpack.c.b16 %v1691, %v1690
    %vm1700 = vcmask 523264
    %v1702 = vsel %vm1700, %v1660, 0
    %1704 = vmatprep.subr.bf16.mxu0 0
    %1705 = vmatpush1.bf16.msra.mxu0 0
    %1706 = vmatprep.subr.bf16.mxu0 0
    %1707 = vmatpush1.bf16.msra.mxu0 0
    %1708 = vmatprep.subr.bf16.mxu0 0
    %1709 = vmatpush1.bf16.msra.mxu0 0
    %1710 = vmatprep.subr.bf16.mxu0 0
    %1711 = vmatpush1.bf16.msra.mxu0 0
    %1712 = vmatprep.subr.bf16.mxu0 0
    %1713 = vmatpush1.bf16.msra.mxu0 %v1695
    %1714 = vmatprep.subr.bf16.mxu0 0
    %1715 = vmatpush1.bf16.msra.mxu0 %v1694
    %1716 = vmatprep.subr.bf16.mxu0 0
    %1717 = vmatpush1.bf16.msra.mxu0 %v1693
    %1718 = vmatprep.subr.bf16.mxu0 0
    %1719 = vmatpush1.bf16.msra.mxu0 %v1692
    %1720 = vmatprep.subr.bf16.mxu0 0
    %1721 = vmatpush2.bf16.msra.mxu0 0
    %1722 = vmatprep.subr.bf16.mxu0 0
    %1723 = vmatpush2.bf16.msra.mxu0 0
    %1724 = vmatprep.subr.bf16.mxu0 0
    %1725 = vmatpush2.bf16.msra.mxu0 0
    %1726 = vmatprep.subr.bf16.mxu0 0
    %1727 = vmatpush2.bf16.msra.mxu0 0
    %1728 = vmatprep.subr.bf16.mxu0 0
    %1729 = vmatpush2.bf16.msra.mxu0 0
    %1730 = vmatprep.subr.bf16.mxu0 0
    %1731 = vmatpush2.bf16.msra.mxu0 0
    %1732 = vmatprep.subr.bf16.mxu0 0
    %1733 = vmatpush2.bf16.msra.mxu0 0
    %1734 = vmatprep.subr.bf16.mxu0 0
    %1735 = vmatpush2.bf16.msra.mxu0 0
    %1736 = vmatprep.mubr.bf16.mxu0 0
    %1737 = vmatmul.mubr.bf16.gmra.mxu0 %v1702
    %v1738 = vpop.f32.mrf.mxu0
    %v1739 = vadd.f32 %v1674, %v1738
    %v1740 = vpop.f32.mrf.mxu0
    %v1741 = vpop.f32.mrf.mxu0
    %v1742 = vadd.f32 %v1674, %v1741
    %v1743 = vpop.f32.mrf.mxu0
    %1744 = vdwg.mxu0
    %v1745 = vadd.f32 %v1739, %v1580
    %v1746 = vadd.f32 %v1742, %v1581
    %v1747 = vld [vmem:[#allocation25] sm:$0x1]
    %v1748 = vld [vmem:[%s19] sm:$0x1]
    %v1749 = vsel %vm286, %v1745, 0.0
    %1750 = vadd.xlane.f32.xlu0 %v1749
    %v1751 = vpop.xlane.xlu0 %1750
    %v1752 = vsel %vm286, %v1746, 0.0
    %1753 = vadd.xlane.f32.xlu0 %v1752
    %v1754 = vpop.xlane.xlu0 %1753
    %v1755 = vmul.f32 %v1751, %v293
    %v1756 = vmul.f32 %v1754, %v293
    %v1757 = vsub.f32 %v1745, %v1755
    %v1758 = vsub.f32 %v1746, %v1756
    %v1759 = vmul.f32 %v1757, %v1757
    %v1760 = vmul.f32 %v1758, %v1758
    %v1761 = vsel %vm286, %v1759, 0.0
    %1762 = vadd.xlane.f32.xlu0 %v1761
    %v1763 = vpop.xlane.xlu0 %1762
    %v1764 = vsel %vm286, %v1760, 0.0
    %1765 = vadd.xlane.f32.xlu0 %v1764
    %v1766 = vpop.xlane.xlu0 %1765
    %v1767 = vmul.f32 %v1763, %v293
    %v1768 = vmul.f32 %v1766, %v293
    %v1769 = vadd.f32 %v1767, 1e-12
    %v1770 = vadd.f32 %v1768, 1e-12
    %v1771 = vrsqrt.pop %v1769
    %v1772 = vrsqrt.pop %v1770
    %v1773 = vmul.f32 %v1757, %v1771
    %v1774 = vmul.f32 %v1758, %v1772
    %v1776 = vlaneseq
    %v1777 = vshrl.u32 %v1776, 7
    %v1778 = vsub.s32 0, %v1777
    %v1779 = vrot.slane %v1747, %v1778
    %v1781 = vmul.f32 %v1773, %v1779
    %v1782 = vmul.f32 %v1774, %v1779
    %v1784 = vlaneseq
    %v1785 = vshrl.u32 %v1784, 7
    %v1786 = vsub.s32 0, %v1785
    %v1787 = vrot.slane %v1748, %v1786
    %v1789 = vadd.f32 %v1781, %v1787
    %v1790 = vadd.f32 %v1782, %v1787
    %v1791 = vpack.c.bf16 %v1790, %v1789
    %s1792 = scalar_lea.vmem %s4, 16
    %v1793 = vld [vmem:[%s1792] sm:$0xf]
    %v1794 = vld [vmem:[%s1792 + $0x4] sm:$0xf]
    %v1795 = vld [vmem:[%s1792 + $0x8] sm:$0xf]
    %v1796 = vld [vmem:[%s1792 + $0xc] sm:$0xf]
    %s1797 = scalar_lea.vmem [#allocation10], 1
    %v1798 = vld [vmem:[%s1797] sm:$0x1]
    %v1800 = vlaneseq
    %v1801 = vshrl.u32 %v1800, 7
    %v1802 = vsub.s32 0, %v1801
    %v1803 = vrot.slane %v1798, %v1802
    %v1809 = vunpack.c.l.b16 %v1793
    %v1810 = vunpack.c.l.b16 %v1794
    %v1811 = vunpack.c.l.b16 %v1795
    %v1812 = vunpack.c.l.b16 %v1796
    %v1813 = vpack.c.b16 %v1810, %v1809
    %v1814 = vpack.c.b16 %v1812, %v1811
    %v1818 = vsel %vm286, %v1791, 0
    %1820 = vmatprep.subr.bf16.mxu0 0
    %1821 = vmatpush1.bf16.msra.mxu0 0
    %1822 = vmatprep.subr.bf16.mxu0 0
    %1823 = vmatpush1.bf16.msra.mxu0 0
    %1824 = vmatprep.subr.bf16.mxu0 0
    %1825 = vmatpush1.bf16.msra.mxu0 0
    %1826 = vmatprep.subr.bf16.mxu0 0
    %1827 = vmatpush1.bf16.msra.mxu0 0
    %1828 = vmatprep.subr.bf16.mxu0 0
    %1829 = vmatpush1.bf16.msra.mxu0 0
    %1830 = vmatprep.subr.bf16.mxu0 0
    %1831 = vmatpush1.bf16.msra.mxu0 0
    %1832 = vmatprep.subr.bf16.mxu0 0
    %1833 = vmatpush1.bf16.msra.mxu0 %v1814
    %1834 = vmatprep.subr.bf16.mxu0 0
    %1835 = vmatpush1.bf16.msra.mxu0 %v1813
    %1836 = vmatprep.subr.bf16.mxu0 0
    %1837 = vmatpush2.bf16.msra.mxu0 0
    %1838 = vmatprep.subr.bf16.mxu0 0
    %1839 = vmatpush2.bf16.msra.mxu0 0
    %1840 = vmatprep.subr.bf16.mxu0 0
    %1841 = vmatpush2.bf16.msra.mxu0 0
    %1842 = vmatprep.subr.bf16.mxu0 0
    %1843 = vmatpush2.bf16.msra.mxu0 0
    %1844 = vmatprep.subr.bf16.mxu0 0
    %1845 = vmatpush2.bf16.msra.mxu0 0
    %1846 = vmatprep.subr.bf16.mxu0 0
    %1847 = vmatpush2.bf16.msra.mxu0 0
    %1848 = vmatprep.subr.bf16.mxu0 0
    %1849 = vmatpush2.bf16.msra.mxu0 0
    %1850 = vmatprep.subr.bf16.mxu0 0
    %1851 = vmatpush2.bf16.msra.mxu0 0
    %1852 = vmatprep.mubr.bf16.mxu0 0
    %1853 = vmatmul.mubr.bf16.gmra.mxu0 %v1818
    %v1854 = vpop.f32.mrf.mxu0
    %v1855 = vadd.f32 %v1803, %v1854
    %v1856 = vpop.f32.mrf.mxu0
    %v1857 = vpop.f32.mrf.mxu0
    %v1858 = vadd.f32 %v1803, %v1857
    %v1859 = vpop.f32.mrf.mxu0
    %1860 = vdwg.mxu0
    %s1861 = scalar_lea.vmem %s6, 16
    %v1862 = vld [vmem:[%s1861] sm:$0xf]
    %v1863 = vld [vmem:[%s1861 + $0x4] sm:$0xf]
    %v1864 = vld [vmem:[%s1861 + $0x8] sm:$0xf]
    %v1865 = vld [vmem:[%s1861 + $0xc] sm:$0xf]
    %s1866 = scalar_lea.vmem [#allocation11], 1
    %v1867 = vld [vmem:[%s1866] sm:$0x1]
    %v1869 = vlaneseq
    %v1870 = vshrl.u32 %v1869, 7
    %v1871 = vsub.s32 0, %v1870
    %v1872 = vrot.slane %v1867, %v1871
    %v1878 = vunpack.c.l.b16 %v1862
    %v1879 = vunpack.c.l.b16 %v1863
    %v1880 = vunpack.c.l.b16 %v1864
    %v1881 = vunpack.c.l.b16 %v1865
    %v1882 = vpack.c.b16 %v1879, %v1878
    %v1883 = vpack.c.b16 %v1881, %v1880
    %1886 = vmatprep.subr.bf16.mxu0 0
    %1887 = vmatpush1.bf16.msra.mxu0 0
    %1888 = vmatprep.subr.bf16.mxu0 0
    %1889 = vmatpush1.bf16.msra.mxu0 0
    %1890 = vmatprep.subr.bf16.mxu0 0
    %1891 = vmatpush1.bf16.msra.mxu0 0
    %1892 = vmatprep.subr.bf16.mxu0 0
    %1893 = vmatpush1.bf16.msra.mxu0 0
    %1894 = vmatprep.subr.bf16.mxu0 0
    %1895 = vmatpush1.bf16.msra.mxu0 0
    %1896 = vmatprep.subr.bf16.mxu0 0
    %1897 = vmatpush1.bf16.msra.mxu0 0
    %1898 = vmatprep.subr.bf16.mxu0 0
    %1899 = vmatpush1.bf16.msra.mxu0 %v1883
    %1900 = vmatprep.subr.bf16.mxu0 0
    %1901 = vmatpush1.bf16.msra.mxu0 %v1882
    %1902 = vmatprep.subr.bf16.mxu0 0
    %1903 = vmatpush2.bf16.msra.mxu0 0
    %1904 = vmatprep.subr.bf16.mxu0 0
    %1905 = vmatpush2.bf16.msra.mxu0 0
    %1906 = vmatprep.subr.bf16.mxu0 0
    %1907 = vmatpush2.bf16.msra.mxu0 0
    %1908 = vmatprep.subr.bf16.mxu0 0
    %1909 = vmatpush2.bf16.msra.mxu0 0
    %1910 = vmatprep.subr.bf16.mxu0 0
    %1911 = vmatpush2.bf16.msra.mxu0 0
    %1912 = vmatprep.subr.bf16.mxu0 0
    %1913 = vmatpush2.bf16.msra.mxu0 0
    %1914 = vmatprep.subr.bf16.mxu0 0
    %1915 = vmatpush2.bf16.msra.mxu0 0
    %1916 = vmatprep.subr.bf16.mxu0 0
    %1917 = vmatpush2.bf16.msra.mxu0 0
    %1918 = vmatprep.mubr.bf16.mxu0 0
    %1919 = vmatmul.mubr.bf16.gmra.mxu0 %v1818
    %v1920 = vpop.f32.mrf.mxu0
    %v1921 = vadd.f32 %v1872, %v1920
    %v1922 = vpop.f32.mrf.mxu0
    %v1923 = vpop.f32.mrf.mxu0
    %v1924 = vadd.f32 %v1872, %v1923
    %v1925 = vpop.f32.mrf.mxu0
    %1926 = vdwg.mxu0
    %s1927 = scalar_lea.vmem %s8, 16
    %v1928 = vld [vmem:[%s1927] sm:$0xf]
    %v1929 = vld [vmem:[%s1927 + $0x4] sm:$0xf]
    %v1930 = vld [vmem:[%s1927 + $0x8] sm:$0xf]
    %v1931 = vld [vmem:[%s1927 + $0xc] sm:$0xf]
    %s1932 = scalar_lea.vmem [#allocation13], 1
    %v1933 = vld [vmem:[%s1932] sm:$0x1]
    %v1935 = vlaneseq
    %v1936 = vshrl.u32 %v1935, 7
    %v1937 = vsub.s32 0, %v1936
    %v1938 = vrot.slane %v1933, %v1937
    %v1944 = vunpack.c.l.b16 %v1928
    %v1945 = vunpack.c.l.b16 %v1929
    %v1946 = vunpack.c.l.b16 %v1930
    %v1947 = vunpack.c.l.b16 %v1931
    %v1948 = vpack.c.b16 %v1945, %v1944
    %v1949 = vpack.c.b16 %v1947, %v1946
    %1952 = vmatprep.subr.bf16.mxu0 0
    %1953 = vmatpush1.bf16.msra.mxu0 0
    %1954 = vmatprep.subr.bf16.mxu0 0
    %1955 = vmatpush1.bf16.msra.mxu0 0
    %1956 = vmatprep.subr.bf16.mxu0 0
    %1957 = vmatpush1.bf16.msra.mxu0 0
    %1958 = vmatprep.subr.bf16.mxu0 0
    %1959 = vmatpush1.bf16.msra.mxu0 0
    %1960 = vmatprep.subr.bf16.mxu0 0
    %1961 = vmatpush1.bf16.msra.mxu0 0
    %1962 = vmatprep.subr.bf16.mxu0 0
    %1963 = vmatpush1.bf16.msra.mxu0 0
    %1964 = vmatprep.subr.bf16.mxu0 0
    %1965 = vmatpush1.bf16.msra.mxu0 %v1949
    %1966 = vmatprep.subr.bf16.mxu0 0
    %1967 = vmatpush1.bf16.msra.mxu0 %v1948
    %1968 = vmatprep.subr.bf16.mxu0 0
    %1969 = vmatpush2.bf16.msra.mxu0 0
    %1970 = vmatprep.subr.bf16.mxu0 0
    %1971 = vmatpush2.bf16.msra.mxu0 0
    %1972 = vmatprep.subr.bf16.mxu0 0
    %1973 = vmatpush2.bf16.msra.mxu0 0
    %1974 = vmatprep.subr.bf16.mxu0 0
    %1975 = vmatpush2.bf16.msra.mxu0 0
    %1976 = vmatprep.subr.bf16.mxu0 0
    %1977 = vmatpush2.bf16.msra.mxu0 0
    %1978 = vmatprep.subr.bf16.mxu0 0
    %1979 = vmatpush2.bf16.msra.mxu0 0
    %1980 = vmatprep.subr.bf16.mxu0 0
    %1981 = vmatpush2.bf16.msra.mxu0 0
    %1982 = vmatprep.subr.bf16.mxu0 0
    %1983 = vmatpush2.bf16.msra.mxu0 0
    %1984 = vmatprep.mubr.bf16.mxu0 0
    %1985 = vmatmul.mubr.bf16.gmra.mxu0 %v1818
    %v1986 = vpop.f32.mrf.mxu0
    %v1987 = vadd.f32 %v1938, %v1986
    %v1988 = vpop.f32.mrf.mxu0
    %v1989 = vpop.f32.mrf.mxu0
    %v1990 = vadd.f32 %v1938, %v1989
    %v1991 = vpop.f32.mrf.mxu0
    %1992 = vdwg.mxu0
    %v1993 = vpack.c.bf16 %v1855, %v1855
    %v1994 = vpack.c.bf16 %v1858, %v1858
    %v1995 = vpack.c.bf16 %v1921, %v1921
    %v1996 = vpack.c.bf16 %v1924, %v1924
    %v1997 = vpack.c.bf16 %v1987, %v1987
    %v1998 = vpack.c.bf16 %v1990, %v1990
    %v2000 = vsel %vm532, %v1993, 0
    %v2003 = vsel %vm532, %v1995, 0
    %2005 = vmatprep.subr.bf16.mxu0 0
    %2006 = vmatpush1.bf16.xpose.msra.mxu0 0
    %2007 = vmatprep.subr.bf16.mxu0 0
    %2008 = vmatpush1.bf16.xpose.msra.mxu0 0
    %2009 = vmatprep.subr.bf16.mxu0 0
    %2010 = vmatpush1.bf16.xpose.msra.mxu0 0
    %2011 = vmatprep.subr.bf16.mxu0 0
    %2012 = vmatpush1.bf16.xpose.msra.mxu0 0
    %2013 = vmatprep.subr.bf16.mxu0 0
    %2014 = vmatpush1.bf16.xpose.msra.mxu0 0
    %2015 = vmatprep.subr.bf16.mxu0 0
    %2016 = vmatpush1.bf16.xpose.msra.mxu0 0
    %2017 = vmatprep.subr.bf16.mxu0 0
    %2018 = vmatpush1.bf16.xpose.msra.mxu0 0
    %2019 = vmatprep.subr.bf16.mxu0 0
    %2020 = vmatpush1.bf16.xpose.msra.mxu0 %v2003
    %2021 = vmatprep.subr.bf16.mxu0 0
    %2022 = vmatpush2.bf16.xpose.msra.mxu0 0
    %2023 = vmatprep.subr.bf16.mxu0 0
    %2024 = vmatpush2.bf16.xpose.msra.mxu0 0
    %2025 = vmatprep.subr.bf16.mxu0 0
    %2026 = vmatpush2.bf16.xpose.msra.mxu0 0
    %2027 = vmatprep.subr.bf16.mxu0 0
    %2028 = vmatpush2.bf16.xpose.msra.mxu0 0
    %2029 = vmatprep.subr.bf16.mxu0 0
    %2030 = vmatpush2.bf16.xpose.msra.mxu0 0
    %2031 = vmatprep.subr.bf16.mxu0 0
    %2032 = vmatpush2.bf16.xpose.msra.mxu0 0
    %2033 = vmatprep.subr.bf16.mxu0 0
    %2034 = vmatpush2.bf16.xpose.msra.mxu0 0
    %2035 = vmatprep.subr.bf16.mxu0 0
    %2036 = vmatpush2.bf16.xpose.msra.mxu0 0
    %2037 = vmatprep.mubr.bf16.mxu0 0
    %2038 = vmatmul.mubr.bf16.gmra.mxu0 %v2000
    %v2039 = vpop.f32.mrf.mxu0
    %v2040 = vadd.f32 0.0, %v2039
    %v2041 = vpop.f32.mrf.mxu0
    %v2042 = vpop.f32.mrf.mxu0
    %v2043 = vpop.f32.mrf.mxu0
    %2044 = vdwg.mxu0
    %v2046 = vsel %vm532, %v1994, 0
    %v2049 = vsel %vm532, %v1996, 0
    %2051 = vmatprep.subr.bf16.mxu0 0
    %2052 = vmatpush1.bf16.xpose.msra.mxu0 0
    %2053 = vmatprep.subr.bf16.mxu0 0
    %2054 = vmatpush1.bf16.xpose.msra.mxu0 0
    %2055 = vmatprep.subr.bf16.mxu0 0
    %2056 = vmatpush1.bf16.xpose.msra.mxu0 0
    %2057 = vmatprep.subr.bf16.mxu0 0
    %2058 = vmatpush1.bf16.xpose.msra.mxu0 0
    %2059 = vmatprep.subr.bf16.mxu0 0
    %2060 = vmatpush1.bf16.xpose.msra.mxu0 0
    %2061 = vmatprep.subr.bf16.mxu0 0
    %2062 = vmatpush1.bf16.xpose.msra.mxu0 0
    %2063 = vmatprep.subr.bf16.mxu0 0
    %2064 = vmatpush1.bf16.xpose.msra.mxu0 0
    %2065 = vmatprep.subr.bf16.mxu0 0
    %2066 = vmatpush1.bf16.xpose.msra.mxu0 %v2049
    %2067 = vmatprep.subr.bf16.mxu0 0
    %2068 = vmatpush2.bf16.xpose.msra.mxu0 0
    %2069 = vmatprep.subr.bf16.mxu0 0
    %2070 = vmatpush2.bf16.xpose.msra.mxu0 0
    %2071 = vmatprep.subr.bf16.mxu0 0
    %2072 = vmatpush2.bf16.xpose.msra.mxu0 0
    %2073 = vmatprep.subr.bf16.mxu0 0
    %2074 = vmatpush2.bf16.xpose.msra.mxu0 0
    %2075 = vmatprep.subr.bf16.mxu0 0
    %2076 = vmatpush2.bf16.xpose.msra.mxu0 0
    %2077 = vmatprep.subr.bf16.mxu0 0
    %2078 = vmatpush2.bf16.xpose.msra.mxu0 0
    %2079 = vmatprep.subr.bf16.mxu0 0
    %2080 = vmatpush2.bf16.xpose.msra.mxu0 0
    %2081 = vmatprep.subr.bf16.mxu0 0
    %2082 = vmatpush2.bf16.xpose.msra.mxu0 0
    %2083 = vmatprep.mubr.bf16.mxu0 0
    %2084 = vmatmul.mubr.bf16.gmra.mxu0 %v2046
    %v2085 = vpop.f32.mrf.mxu0
    %v2086 = vadd.f32 0.0, %v2085
    %v2087 = vpop.f32.mrf.mxu0
    %v2088 = vpop.f32.mrf.mxu0
    %v2089 = vpop.f32.mrf.mxu0
    %2090 = vdwg.mxu0
    %v2091 = vmul.f32 %v2040, 0.35355338
    %v2092 = vmul.f32 %v2086, 0.35355338
    %v2093 = vadd.f32 %v2091, %v632
    %v2094 = vadd.f32 %v2092, %v636
    %v2095 = vsel %vm532, %v2093, -inf
    %2096 = vmax.xlane.f32.xlu0 %v2095
    %v2097 = vpop.xlane.xlu0 %2096
    %v2098 = vsel %vm532, %v2094, -inf
    %2099 = vmax.xlane.f32.xlu0 %v2098
    %v2100 = vpop.xlane.xlu0 %2099
    %v2101 = vsub.f32 %v2093, %v2097
    %v2102 = vsub.f32 %v2094, %v2100
    %v2103 = vmul.f32 %v2101, 1.442695
    %v2104 = vpow.pop %v2103
    %v2105 = vmul.f32 %v2102, 1.442695
    %v2106 = vpow.pop %v2105
    %v2107 = vsel %vm532, %v2104, 0.0
    %2108 = vadd.xlane.f32.xlu0 %v2107
    %v2109 = vpop.xlane.xlu0 %2108
    %v2110 = vsel %vm532, %v2106, 0.0
    %2111 = vadd.xlane.f32.xlu0 %v2110
    %v2112 = vpop.xlane.xlu0 %2111
    %v2113 = vrcp.pop %v2109
    %v2114 = vrcp.pop %v2112
    %v2115 = vmul.f32 %v2104, %v2113
    %v2116 = vmul.f32 %v2106, %v2114
    %v2117 = vpack.c.bf16 %v2115, %v2115
    %v2118 = vpack.c.bf16 %v2116, %v2116
    %v2120 = vsel %vm532, %v2117, 0
    %v2123 = vsel %vm668, %v1997, 0
    %2125 = vmatprep.subr.bf16.mxu0 0
    %2126 = vmatpush1.bf16.msra.mxu0 0
    %2127 = vmatprep.subr.bf16.mxu0 0
    %2128 = vmatpush1.bf16.msra.mxu0 0
    %2129 = vmatprep.subr.bf16.mxu0 0
    %2130 = vmatpush1.bf16.msra.mxu0 0
    %2131 = vmatprep.subr.bf16.mxu0 0
    %2132 = vmatpush1.bf16.msra.mxu0 0
    %2133 = vmatprep.subr.bf16.mxu0 0
    %2134 = vmatpush1.bf16.msra.mxu0 0
    %2135 = vmatprep.subr.bf16.mxu0 0
    %2136 = vmatpush1.bf16.msra.mxu0 0
    %2137 = vmatprep.subr.bf16.mxu0 0
    %2138 = vmatpush1.bf16.msra.mxu0 0
    %2139 = vmatprep.subr.bf16.mxu0 0
    %2140 = vmatpush1.bf16.msra.mxu0 %v2123
    %2141 = vmatprep.subr.bf16.mxu0 0
    %2142 = vmatpush2.bf16.msra.mxu0 0
    %2143 = vmatprep.subr.bf16.mxu0 0
    %2144 = vmatpush2.bf16.msra.mxu0 0
    %2145 = vmatprep.subr.bf16.mxu0 0
    %2146 = vmatpush2.bf16.msra.mxu0 0
    %2147 = vmatprep.subr.bf16.mxu0 0
    %2148 = vmatpush2.bf16.msra.mxu0 0
    %2149 = vmatprep.subr.bf16.mxu0 0
    %2150 = vmatpush2.bf16.msra.mxu0 0
    %2151 = vmatprep.subr.bf16.mxu0 0
    %2152 = vmatpush2.bf16.msra.mxu0 0
    %2153 = vmatprep.subr.bf16.mxu0 0
    %2154 = vmatpush2.bf16.msra.mxu0 0
    %2155 = vmatprep.subr.bf16.mxu0 0
    %2156 = vmatpush2.bf16.msra.mxu0 0
    %2157 = vmatprep.mubr.bf16.mxu0 0
    %2158 = vmatmul.mubr.bf16.gmra.mxu0 %v2120
    %v2159 = vpop.f32.mrf.mxu0
    %v2160 = vadd.f32 0.0, %v2159
    %v2161 = vpop.f32.mrf.mxu0
    %v2162 = vpop.f32.mrf.mxu0
    %v2163 = vpop.f32.mrf.mxu0
    %2164 = vdwg.mxu0
    %v2166 = vsel %vm532, %v2118, 0
    %v2169 = vsel %vm668, %v1998, 0
    %2171 = vmatprep.subr.bf16.mxu0 0
    %2172 = vmatpush1.bf16.msra.mxu0 0
    %2173 = vmatprep.subr.bf16.mxu0 0
    %2174 = vmatpush1.bf16.msra.mxu0 0
    %2175 = vmatprep.subr.bf16.mxu0 0
    %2176 = vmatpush1.bf16.msra.mxu0 0
    %2177 = vmatprep.subr.bf16.mxu0 0
    %2178 = vmatpush1.bf16.msra.mxu0 0
    %2179 = vmatprep.subr.bf16.mxu0 0
    %2180 = vmatpush1.bf16.msra.mxu0 0
    %2181 = vmatprep.subr.bf16.mxu0 0
    %2182 = vmatpush1.bf16.msra.mxu0 0
    %2183 = vmatprep.subr.bf16.mxu0 0
    %2184 = vmatpush1.bf16.msra.mxu0 0
    %2185 = vmatprep.subr.bf16.mxu0 0
    %2186 = vmatpush1.bf16.msra.mxu0 %v2169
    %2187 = vmatprep.subr.bf16.mxu0 0
    %2188 = vmatpush2.bf16.msra.mxu0 0
    %2189 = vmatprep.subr.bf16.mxu0 0
    %2190 = vmatpush2.bf16.msra.mxu0 0
    %2191 = vmatprep.subr.bf16.mxu0 0
    %2192 = vmatpush2.bf16.msra.mxu0 0
    %2193 = vmatprep.subr.bf16.mxu0 0
    %2194 = vmatpush2.bf16.msra.mxu0 0
    %2195 = vmatprep.subr.bf16.mxu0 0
    %2196 = vmatpush2.bf16.msra.mxu0 0
    %2197 = vmatprep.subr.bf16.mxu0 0
    %2198 = vmatpush2.bf16.msra.mxu0 0
    %2199 = vmatprep.subr.bf16.mxu0 0
    %2200 = vmatpush2.bf16.msra.mxu0 0
    %2201 = vmatprep.subr.bf16.mxu0 0
    %2202 = vmatpush2.bf16.msra.mxu0 0
    %2203 = vmatprep.mubr.bf16.mxu0 0
    %2204 = vmatmul.mubr.bf16.gmra.mxu0 %v2166
    %v2205 = vpop.f32.mrf.mxu0
    %v2206 = vadd.f32 0.0, %v2205
    %v2207 = vpop.f32.mrf.mxu0
    %v2208 = vpop.f32.mrf.mxu0
    %v2209 = vpop.f32.mrf.mxu0
    %2210 = vdwg.mxu0
    %2212 = vrot.lane.b32.xlu0 %v1993, 120
    %v2213 = vpop.permute.xlu0 %2212
    %2215 = vrot.lane.b32.xlu0 %v1995, 120
    %v2216 = vpop.permute.xlu0 %2215
    %v2218 = vsel %vm532, %v2213, 0
    %v2221 = vsel %vm532, %v2216, 0
    %2223 = vmatprep.subr.bf16.mxu0 0
    %2224 = vmatpush1.bf16.xpose.msra.mxu0 0
    %2225 = vmatprep.subr.bf16.mxu0 0
    %2226 = vmatpush1.bf16.xpose.msra.mxu0 0
    %2227 = vmatprep.subr.bf16.mxu0 0
    %2228 = vmatpush1.bf16.xpose.msra.mxu0 0
    %2229 = vmatprep.subr.bf16.mxu0 0
    %2230 = vmatpush1.bf16.xpose.msra.mxu0 0
    %2231 = vmatprep.subr.bf16.mxu0 0
    %2232 = vmatpush1.bf16.xpose.msra.mxu0 0
    %2233 = vmatprep.subr.bf16.mxu0 0
    %2234 = vmatpush1.bf16.xpose.msra.mxu0 0
    %2235 = vmatprep.subr.bf16.mxu0 0
    %2236 = vmatpush1.bf16.xpose.msra.mxu0 0
    %2237 = vmatprep.subr.bf16.mxu0 0
    %2238 = vmatpush1.bf16.xpose.msra.mxu0 %v2221
    %2239 = vmatprep.subr.bf16.mxu0 0
    %2240 = vmatpush2.bf16.xpose.msra.mxu0 0
    %2241 = vmatprep.subr.bf16.mxu0 0
    %2242 = vmatpush2.bf16.xpose.msra.mxu0 0
    %2243 = vmatprep.subr.bf16.mxu0 0
    %2244 = vmatpush2.bf16.xpose.msra.mxu0 0
    %2245 = vmatprep.subr.bf16.mxu0 0
    %2246 = vmatpush2.bf16.xpose.msra.mxu0 0
    %2247 = vmatprep.subr.bf16.mxu0 0
    %2248 = vmatpush2.bf16.xpose.msra.mxu0 0
    %2249 = vmatprep.subr.bf16.mxu0 0
    %2250 = vmatpush2.bf16.xpose.msra.mxu0 0
    %2251 = vmatprep.subr.bf16.mxu0 0
    %2252 = vmatpush2.bf16.xpose.msra.mxu0 0
    %2253 = vmatprep.subr.bf16.mxu0 0
    %2254 = vmatpush2.bf16.xpose.msra.mxu0 0
    %2255 = vmatprep.mubr.bf16.mxu0 0
    %2256 = vmatmul.mubr.bf16.gmra.mxu0 %v2218
    %v2257 = vpop.f32.mrf.mxu0
    %v2258 = vadd.f32 0.0, %v2257
    %v2259 = vpop.f32.mrf.mxu0
    %v2260 = vpop.f32.mrf.mxu0
    %v2261 = vpop.f32.mrf.mxu0
    %2262 = vdwg.mxu0
    %2264 = vrot.lane.b32.xlu0 %v1994, 120
    %v2265 = vpop.permute.xlu0 %2264
    %2267 = vrot.lane.b32.xlu0 %v1996, 120
    %v2268 = vpop.permute.xlu0 %2267
    %v2270 = vsel %vm532, %v2265, 0
    %v2273 = vsel %vm532, %v2268, 0
    %2275 = vmatprep.subr.bf16.mxu0 0
    %2276 = vmatpush1.bf16.xpose.msra.mxu0 0
    %2277 = vmatprep.subr.bf16.mxu0 0
    %2278 = vmatpush1.bf16.xpose.msra.mxu0 0
    %2279 = vmatprep.subr.bf16.mxu0 0
    %2280 = vmatpush1.bf16.xpose.msra.mxu0 0
    %2281 = vmatprep.subr.bf16.mxu0 0
    %2282 = vmatpush1.bf16.xpose.msra.mxu0 0
    %2283 = vmatprep.subr.bf16.mxu0 0
    %2284 = vmatpush1.bf16.xpose.msra.mxu0 0
    %2285 = vmatprep.subr.bf16.mxu0 0
    %2286 = vmatpush1.bf16.xpose.msra.mxu0 0
    %2287 = vmatprep.subr.bf16.mxu0 0
    %2288 = vmatpush1.bf16.xpose.msra.mxu0 0
    %2289 = vmatprep.subr.bf16.mxu0 0
    %2290 = vmatpush1.bf16.xpose.msra.mxu0 %v2273
    %2291 = vmatprep.subr.bf16.mxu0 0
    %2292 = vmatpush2.bf16.xpose.msra.mxu0 0
    %2293 = vmatprep.subr.bf16.mxu0 0
    %2294 = vmatpush2.bf16.xpose.msra.mxu0 0
    %2295 = vmatprep.subr.bf16.mxu0 0
    %2296 = vmatpush2.bf16.xpose.msra.mxu0 0
    %2297 = vmatprep.subr.bf16.mxu0 0
    %2298 = vmatpush2.bf16.xpose.msra.mxu0 0
    %2299 = vmatprep.subr.bf16.mxu0 0
    %2300 = vmatpush2.bf16.xpose.msra.mxu0 0
    %2301 = vmatprep.subr.bf16.mxu0 0
    %2302 = vmatpush2.bf16.xpose.msra.mxu0 0
    %2303 = vmatprep.subr.bf16.mxu0 0
    %2304 = vmatpush2.bf16.xpose.msra.mxu0 0
    %2305 = vmatprep.subr.bf16.mxu0 0
    %2306 = vmatpush2.bf16.xpose.msra.mxu0 0
    %2307 = vmatprep.mubr.bf16.mxu0 0
    %2308 = vmatmul.mubr.bf16.gmra.mxu0 %v2270
    %v2309 = vpop.f32.mrf.mxu0
    %v2310 = vadd.f32 0.0, %v2309
    %v2311 = vpop.f32.mrf.mxu0
    %v2312 = vpop.f32.mrf.mxu0
    %v2313 = vpop.f32.mrf.mxu0
    %2314 = vdwg.mxu0
    %v2315 = vmul.f32 %v2258, 0.35355338
    %v2316 = vmul.f32 %v2310, 0.35355338
    %v2317 = vadd.f32 %v2315, %v632
    %v2318 = vadd.f32 %v2316, %v636
    %v2319 = vsel %vm532, %v2317, -inf
    %2320 = vmax.xlane.f32.xlu0 %v2319
    %v2321 = vpop.xlane.xlu0 %2320
    %v2322 = vsel %vm532, %v2318, -inf
    %2323 = vmax.xlane.f32.xlu0 %v2322
    %v2324 = vpop.xlane.xlu0 %2323
    %v2325 = vsub.f32 %v2317, %v2321
    %v2326 = vsub.f32 %v2318, %v2324
    %v2327 = vmul.f32 %v2325, 1.442695
    %v2328 = vpow.pop %v2327
    %v2329 = vmul.f32 %v2326, 1.442695
    %v2330 = vpow.pop %v2329
    %v2331 = vsel %vm532, %v2328, 0.0
    %2332 = vadd.xlane.f32.xlu0 %v2331
    %v2333 = vpop.xlane.xlu0 %2332
    %v2334 = vsel %vm532, %v2330, 0.0
    %2335 = vadd.xlane.f32.xlu0 %v2334
    %v2336 = vpop.xlane.xlu0 %2335
    %v2337 = vrcp.pop %v2333
    %v2338 = vrcp.pop %v2336
    %v2339 = vmul.f32 %v2328, %v2337
    %v2340 = vmul.f32 %v2330, %v2338
    %v2341 = vpack.c.bf16 %v2339, %v2339
    %v2342 = vpack.c.bf16 %v2340, %v2340
    %2344 = vrot.lane.b32.xlu0 %v1997, 120
    %v2345 = vpop.permute.xlu0 %2344
    %v2347 = vsel %vm532, %v2341, 0
    %v2350 = vsel %vm668, %v2345, 0
    %2352 = vmatprep.subr.bf16.mxu0 0
    %2353 = vmatpush1.bf16.msra.mxu0 0
    %2354 = vmatprep.subr.bf16.mxu0 0
    %2355 = vmatpush1.bf16.msra.mxu0 0
    %2356 = vmatprep.subr.bf16.mxu0 0
    %2357 = vmatpush1.bf16.msra.mxu0 0
    %2358 = vmatprep.subr.bf16.mxu0 0
    %2359 = vmatpush1.bf16.msra.mxu0 0
    %2360 = vmatprep.subr.bf16.mxu0 0
    %2361 = vmatpush1.bf16.msra.mxu0 0
    %2362 = vmatprep.subr.bf16.mxu0 0
    %2363 = vmatpush1.bf16.msra.mxu0 0
    %2364 = vmatprep.subr.bf16.mxu0 0
    %2365 = vmatpush1.bf16.msra.mxu0 0
    %2366 = vmatprep.subr.bf16.mxu0 0
    %2367 = vmatpush1.bf16.msra.mxu0 %v2350
    %2368 = vmatprep.subr.bf16.mxu0 0
    %2369 = vmatpush2.bf16.msra.mxu0 0
    %2370 = vmatprep.subr.bf16.mxu0 0
    %2371 = vmatpush2.bf16.msra.mxu0 0
    %2372 = vmatprep.subr.bf16.mxu0 0
    %2373 = vmatpush2.bf16.msra.mxu0 0
    %2374 = vmatprep.subr.bf16.mxu0 0
    %2375 = vmatpush2.bf16.msra.mxu0 0
    %2376 = vmatprep.subr.bf16.mxu0 0
    %2377 = vmatpush2.bf16.msra.mxu0 0
    %2378 = vmatprep.subr.bf16.mxu0 0
    %2379 = vmatpush2.bf16.msra.mxu0 0
    %2380 = vmatprep.subr.bf16.mxu0 0
    %2381 = vmatpush2.bf16.msra.mxu0 0
    %2382 = vmatprep.subr.bf16.mxu0 0
    %2383 = vmatpush2.bf16.msra.mxu0 0
    %2384 = vmatprep.mubr.bf16.mxu0 0
    %2385 = vmatmul.mubr.bf16.gmra.mxu0 %v2347
    %v2386 = vpop.f32.mrf.mxu0
    %v2387 = vadd.f32 0.0, %v2386
    %v2388 = vpop.f32.mrf.mxu0
    %v2389 = vpop.f32.mrf.mxu0
    %v2390 = vpop.f32.mrf.mxu0
    %2391 = vdwg.mxu0
    %2393 = vrot.lane.b32.xlu0 %v1998, 120
    %v2394 = vpop.permute.xlu0 %2393
    %v2396 = vsel %vm532, %v2342, 0
    %v2399 = vsel %vm668, %v2394, 0
    %2401 = vmatprep.subr.bf16.mxu0 0
    %2402 = vmatpush1.bf16.msra.mxu0 0
    %2403 = vmatprep.subr.bf16.mxu0 0
    %2404 = vmatpush1.bf16.msra.mxu0 0
    %2405 = vmatprep.subr.bf16.mxu0 0
    %2406 = vmatpush1.bf16.msra.mxu0 0
    %2407 = vmatprep.subr.bf16.mxu0 0
    %2408 = vmatpush1.bf16.msra.mxu0 0
    %2409 = vmatprep.subr.bf16.mxu0 0
    %2410 = vmatpush1.bf16.msra.mxu0 0
    %2411 = vmatprep.subr.bf16.mxu0 0
    %2412 = vmatpush1.bf16.msra.mxu0 0
    %2413 = vmatprep.subr.bf16.mxu0 0
    %2414 = vmatpush1.bf16.msra.mxu0 0
    %2415 = vmatprep.subr.bf16.mxu0 0
    %2416 = vmatpush1.bf16.msra.mxu0 %v2399
    %2417 = vmatprep.subr.bf16.mxu0 0
    %2418 = vmatpush2.bf16.msra.mxu0 0
    %2419 = vmatprep.subr.bf16.mxu0 0
    %2420 = vmatpush2.bf16.msra.mxu0 0
    %2421 = vmatprep.subr.bf16.mxu0 0
    %2422 = vmatpush2.bf16.msra.mxu0 0
    %2423 = vmatprep.subr.bf16.mxu0 0
    %2424 = vmatpush2.bf16.msra.mxu0 0
    %2425 = vmatprep.subr.bf16.mxu0 0
    %2426 = vmatpush2.bf16.msra.mxu0 0
    %2427 = vmatprep.subr.bf16.mxu0 0
    %2428 = vmatpush2.bf16.msra.mxu0 0
    %2429 = vmatprep.subr.bf16.mxu0 0
    %2430 = vmatpush2.bf16.msra.mxu0 0
    %2431 = vmatprep.subr.bf16.mxu0 0
    %2432 = vmatpush2.bf16.msra.mxu0 0
    %2433 = vmatprep.mubr.bf16.mxu0 0
    %2434 = vmatmul.mubr.bf16.gmra.mxu0 %v2396
    %v2435 = vpop.f32.mrf.mxu0
    %v2436 = vadd.f32 0.0, %v2435
    %v2437 = vpop.f32.mrf.mxu0
    %v2438 = vpop.f32.mrf.mxu0
    %v2439 = vpop.f32.mrf.mxu0
    %2440 = vdwg.mxu0
    %2441 = vrot.lane.b32.xlu0 %v1993, 112
    %v2442 = vpop.permute.xlu0 %2441
    %2443 = vrot.lane.b32.xlu0 %v1995, 112
    %v2444 = vpop.permute.xlu0 %2443
    %v2446 = vsel %vm532, %v2442, 0
    %v2449 = vsel %vm532, %v2444, 0
    %2451 = vmatprep.subr.bf16.mxu0 0
    %2452 = vmatpush1.bf16.xpose.msra.mxu0 0
    %2453 = vmatprep.subr.bf16.mxu0 0
    %2454 = vmatpush1.bf16.xpose.msra.mxu0 0
    %2455 = vmatprep.subr.bf16.mxu0 0
    %2456 = vmatpush1.bf16.xpose.msra.mxu0 0
    %2457 = vmatprep.subr.bf16.mxu0 0
    %2458 = vmatpush1.bf16.xpose.msra.mxu0 0
    %2459 = vmatprep.subr.bf16.mxu0 0
    %2460 = vmatpush1.bf16.xpose.msra.mxu0 0
    %2461 = vmatprep.subr.bf16.mxu0 0
    %2462 = vmatpush1.bf16.xpose.msra.mxu0 0
    %2463 = vmatprep.subr.bf16.mxu0 0
    %2464 = vmatpush1.bf16.xpose.msra.mxu0 0
    %2465 = vmatprep.subr.bf16.mxu0 0
    %2466 = vmatpush1.bf16.xpose.msra.mxu0 %v2449
    %2467 = vmatprep.subr.bf16.mxu0 0
    %2468 = vmatpush2.bf16.xpose.msra.mxu0 0
    %2469 = vmatprep.subr.bf16.mxu0 0
    %2470 = vmatpush2.bf16.xpose.msra.mxu0 0
    %2471 = vmatprep.subr.bf16.mxu0 0
    %2472 = vmatpush2.bf16.xpose.msra.mxu0 0
    %2473 = vmatprep.subr.bf16.mxu0 0
    %2474 = vmatpush2.bf16.xpose.msra.mxu0 0
    %2475 = vmatprep.subr.bf16.mxu0 0
    %2476 = vmatpush2.bf16.xpose.msra.mxu0 0
    %2477 = vmatprep.subr.bf16.mxu0 0
    %2478 = vmatpush2.bf16.xpose.msra.mxu0 0
    %2479 = vmatprep.subr.bf16.mxu0 0
    %2480 = vmatpush2.bf16.xpose.msra.mxu0 0
    %2481 = vmatprep.subr.bf16.mxu0 0
    %2482 = vmatpush2.bf16.xpose.msra.mxu0 0
    %2483 = vmatprep.mubr.bf16.mxu0 0
    %2484 = vmatmul.mubr.bf16.gmra.mxu0 %v2446
    %v2485 = vpop.f32.mrf.mxu0
    %v2486 = vadd.f32 0.0, %v2485
    %v2487 = vpop.f32.mrf.mxu0
    %v2488 = vpop.f32.mrf.mxu0
    %v2489 = vpop.f32.mrf.mxu0
    %2490 = vdwg.mxu0
    %2491 = vrot.lane.b32.xlu0 %v1994, 112
    %v2492 = vpop.permute.xlu0 %2491
    %2493 = vrot.lane.b32.xlu0 %v1996, 112
    %v2494 = vpop.permute.xlu0 %2493
    %v2496 = vsel %vm532, %v2492, 0
    %v2499 = vsel %vm532, %v2494, 0
    %2501 = vmatprep.subr.bf16.mxu0 0
    %2502 = vmatpush1.bf16.xpose.msra.mxu0 0
    %2503 = vmatprep.subr.bf16.mxu0 0
    %2504 = vmatpush1.bf16.xpose.msra.mxu0 0
    %2505 = vmatprep.subr.bf16.mxu0 0
    %2506 = vmatpush1.bf16.xpose.msra.mxu0 0
    %2507 = vmatprep.subr.bf16.mxu0 0
    %2508 = vmatpush1.bf16.xpose.msra.mxu0 0
    %2509 = vmatprep.subr.bf16.mxu0 0
    %2510 = vmatpush1.bf16.xpose.msra.mxu0 0
    %2511 = vmatprep.subr.bf16.mxu0 0
    %2512 = vmatpush1.bf16.xpose.msra.mxu0 0
    %2513 = vmatprep.subr.bf16.mxu0 0
    %2514 = vmatpush1.bf16.xpose.msra.mxu0 0
    %2515 = vmatprep.subr.bf16.mxu0 0
    %2516 = vmatpush1.bf16.xpose.msra.mxu0 %v2499
    %2517 = vmatprep.subr.bf16.mxu0 0
    %2518 = vmatpush2.bf16.xpose.msra.mxu0 0
    %2519 = vmatprep.subr.bf16.mxu0 0
    %2520 = vmatpush2.bf16.xpose.msra.mxu0 0
    %2521 = vmatprep.subr.bf16.mxu0 0
    %2522 = vmatpush2.bf16.xpose.msra.mxu0 0
    %2523 = vmatprep.subr.bf16.mxu0 0
    %2524 = vmatpush2.bf16.xpose.msra.mxu0 0
    %2525 = vmatprep.subr.bf16.mxu0 0
    %2526 = vmatpush2.bf16.xpose.msra.mxu0 0
    %2527 = vmatprep.subr.bf16.mxu0 0
    %2528 = vmatpush2.bf16.xpose.msra.mxu0 0
    %2529 = vmatprep.subr.bf16.mxu0 0
    %2530 = vmatpush2.bf16.xpose.msra.mxu0 0
    %2531 = vmatprep.subr.bf16.mxu0 0
    %2532 = vmatpush2.bf16.xpose.msra.mxu0 0
    %2533 = vmatprep.mubr.bf16.mxu0 0
    %2534 = vmatmul.mubr.bf16.gmra.mxu0 %v2496
    %v2535 = vpop.f32.mrf.mxu0
    %v2536 = vadd.f32 0.0, %v2535
    %v2537 = vpop.f32.mrf.mxu0
    %v2538 = vpop.f32.mrf.mxu0
    %v2539 = vpop.f32.mrf.mxu0
    %2540 = vdwg.mxu0
    %v2541 = vmul.f32 %v2486, 0.35355338
    %v2542 = vmul.f32 %v2536, 0.35355338
    %v2543 = vadd.f32 %v2541, %v632
    %v2544 = vadd.f32 %v2542, %v636
    %v2545 = vsel %vm532, %v2543, -inf
    %2546 = vmax.xlane.f32.xlu0 %v2545
    %v2547 = vpop.xlane.xlu0 %2546
    %v2548 = vsel %vm532, %v2544, -inf
    %2549 = vmax.xlane.f32.xlu0 %v2548
    %v2550 = vpop.xlane.xlu0 %2549
    %v2551 = vsub.f32 %v2543, %v2547
    %v2552 = vsub.f32 %v2544, %v2550
    %v2553 = vmul.f32 %v2551, 1.442695
    %v2554 = vpow.pop %v2553
    %v2555 = vmul.f32 %v2552, 1.442695
    %v2556 = vpow.pop %v2555
    %v2557 = vsel %vm532, %v2554, 0.0
    %2558 = vadd.xlane.f32.xlu0 %v2557
    %v2559 = vpop.xlane.xlu0 %2558
    %v2560 = vsel %vm532, %v2556, 0.0
    %2561 = vadd.xlane.f32.xlu0 %v2560
    %v2562 = vpop.xlane.xlu0 %2561
    %v2563 = vrcp.pop %v2559
    %v2564 = vrcp.pop %v2562
    %v2565 = vmul.f32 %v2554, %v2563
    %v2566 = vmul.f32 %v2556, %v2564
    %v2567 = vpack.c.bf16 %v2565, %v2565
    %v2568 = vpack.c.bf16 %v2566, %v2566
    %2569 = vrot.lane.b32.xlu0 %v1997, 112
    %v2570 = vpop.permute.xlu0 %2569
    %v2572 = vsel %vm532, %v2567, 0
    %v2575 = vsel %vm668, %v2570, 0
    %2577 = vmatprep.subr.bf16.mxu0 0
    %2578 = vmatpush1.bf16.msra.mxu0 0
    %2579 = vmatprep.subr.bf16.mxu0 0
    %2580 = vmatpush1.bf16.msra.mxu0 0
    %2581 = vmatprep.subr.bf16.mxu0 0
    %2582 = vmatpush1.bf16.msra.mxu0 0
    %2583 = vmatprep.subr.bf16.mxu0 0
    %2584 = vmatpush1.bf16.msra.mxu0 0
    %2585 = vmatprep.subr.bf16.mxu0 0
    %2586 = vmatpush1.bf16.msra.mxu0 0
    %2587 = vmatprep.subr.bf16.mxu0 0
    %2588 = vmatpush1.bf16.msra.mxu0 0
    %2589 = vmatprep.subr.bf16.mxu0 0
    %2590 = vmatpush1.bf16.msra.mxu0 0
    %2591 = vmatprep.subr.bf16.mxu0 0
    %2592 = vmatpush1.bf16.msra.mxu0 %v2575
    %2593 = vmatprep.subr.bf16.mxu0 0
    %2594 = vmatpush2.bf16.msra.mxu0 0
    %2595 = vmatprep.subr.bf16.mxu0 0
    %2596 = vmatpush2.bf16.msra.mxu0 0
    %2597 = vmatprep.subr.bf16.mxu0 0
    %2598 = vmatpush2.bf16.msra.mxu0 0
    %2599 = vmatprep.subr.bf16.mxu0 0
    %2600 = vmatpush2.bf16.msra.mxu0 0
    %2601 = vmatprep.subr.bf16.mxu0 0
    %2602 = vmatpush2.bf16.msra.mxu0 0
    %2603 = vmatprep.subr.bf16.mxu0 0
    %2604 = vmatpush2.bf16.msra.mxu0 0
    %2605 = vmatprep.subr.bf16.mxu0 0
    %2606 = vmatpush2.bf16.msra.mxu0 0
    %2607 = vmatprep.subr.bf16.mxu0 0
    %2608 = vmatpush2.bf16.msra.mxu0 0
    %2609 = vmatprep.mubr.bf16.mxu0 0
    %2610 = vmatmul.mubr.bf16.gmra.mxu0 %v2572
    %v2611 = vpop.f32.mrf.mxu0
    %v2612 = vadd.f32 0.0, %v2611
    %v2613 = vpop.f32.mrf.mxu0
    %v2614 = vpop.f32.mrf.mxu0
    %v2615 = vpop.f32.mrf.mxu0
    %2616 = vdwg.mxu0
    %2617 = vrot.lane.b32.xlu0 %v1998, 112
    %v2618 = vpop.permute.xlu0 %2617
    %v2620 = vsel %vm532, %v2568, 0
    %v2623 = vsel %vm668, %v2618, 0
    %2625 = vmatprep.subr.bf16.mxu0 0
    %2626 = vmatpush1.bf16.msra.mxu0 0
    %2627 = vmatprep.subr.bf16.mxu0 0
    %2628 = vmatpush1.bf16.msra.mxu0 0
    %2629 = vmatprep.subr.bf16.mxu0 0
    %2630 = vmatpush1.bf16.msra.mxu0 0
    %2631 = vmatprep.subr.bf16.mxu0 0
    %2632 = vmatpush1.bf16.msra.mxu0 0
    %2633 = vmatprep.subr.bf16.mxu0 0
    %2634 = vmatpush1.bf16.msra.mxu0 0
    %2635 = vmatprep.subr.bf16.mxu0 0
    %2636 = vmatpush1.bf16.msra.mxu0 0
    %2637 = vmatprep.subr.bf16.mxu0 0
    %2638 = vmatpush1.bf16.msra.mxu0 0
    %2639 = vmatprep.subr.bf16.mxu0 0
    %2640 = vmatpush1.bf16.msra.mxu0 %v2623
    %2641 = vmatprep.subr.bf16.mxu0 0
    %2642 = vmatpush2.bf16.msra.mxu0 0
    %2643 = vmatprep.subr.bf16.mxu0 0
    %2644 = vmatpush2.bf16.msra.mxu0 0
    %2645 = vmatprep.subr.bf16.mxu0 0
    %2646 = vmatpush2.bf16.msra.mxu0 0
    %2647 = vmatprep.subr.bf16.mxu0 0
    %2648 = vmatpush2.bf16.msra.mxu0 0
    %2649 = vmatprep.subr.bf16.mxu0 0
    %2650 = vmatpush2.bf16.msra.mxu0 0
    %2651 = vmatprep.subr.bf16.mxu0 0
    %2652 = vmatpush2.bf16.msra.mxu0 0
    %2653 = vmatprep.subr.bf16.mxu0 0
    %2654 = vmatpush2.bf16.msra.mxu0 0
    %2655 = vmatprep.subr.bf16.mxu0 0
    %2656 = vmatpush2.bf16.msra.mxu0 0
    %2657 = vmatprep.mubr.bf16.mxu0 0
    %2658 = vmatmul.mubr.bf16.gmra.mxu0 %v2620
    %v2659 = vpop.f32.mrf.mxu0
    %v2660 = vadd.f32 0.0, %v2659
    %v2661 = vpop.f32.mrf.mxu0
    %v2662 = vpop.f32.mrf.mxu0
    %v2663 = vpop.f32.mrf.mxu0
    %2664 = vdwg.mxu0
    %2665 = vrot.lane.b32.xlu0 %v1993, 104
    %v2666 = vpop.permute.xlu0 %2665
    %2667 = vrot.lane.b32.xlu0 %v1995, 104
    %v2668 = vpop.permute.xlu0 %2667
    %v2670 = vsel %vm532, %v2666, 0
    %v2673 = vsel %vm532, %v2668, 0
    %2675 = vmatprep.subr.bf16.mxu0 0
    %2676 = vmatpush1.bf16.xpose.msra.mxu0 0
    %2677 = vmatprep.subr.bf16.mxu0 0
    %2678 = vmatpush1.bf16.xpose.msra.mxu0 0
    %2679 = vmatprep.subr.bf16.mxu0 0
    %2680 = vmatpush1.bf16.xpose.msra.mxu0 0
    %2681 = vmatprep.subr.bf16.mxu0 0
    %2682 = vmatpush1.bf16.xpose.msra.mxu0 0
    %2683 = vmatprep.subr.bf16.mxu0 0
    %2684 = vmatpush1.bf16.xpose.msra.mxu0 0
    %2685 = vmatprep.subr.bf16.mxu0 0
    %2686 = vmatpush1.bf16.xpose.msra.mxu0 0
    %2687 = vmatprep.subr.bf16.mxu0 0
    %2688 = vmatpush1.bf16.xpose.msra.mxu0 0
    %2689 = vmatprep.subr.bf16.mxu0 0
    %2690 = vmatpush1.bf16.xpose.msra.mxu0 %v2673
    %2691 = vmatprep.subr.bf16.mxu0 0
    %2692 = vmatpush2.bf16.xpose.msra.mxu0 0
    %2693 = vmatprep.subr.bf16.mxu0 0
    %2694 = vmatpush2.bf16.xpose.msra.mxu0 0
    %2695 = vmatprep.subr.bf16.mxu0 0
    %2696 = vmatpush2.bf16.xpose.msra.mxu0 0
    %2697 = vmatprep.subr.bf16.mxu0 0
    %2698 = vmatpush2.bf16.xpose.msra.mxu0 0
    %2699 = vmatprep.subr.bf16.mxu0 0
    %2700 = vmatpush2.bf16.xpose.msra.mxu0 0
    %2701 = vmatprep.subr.bf16.mxu0 0
    %2702 = vmatpush2.bf16.xpose.msra.mxu0 0
    %2703 = vmatprep.subr.bf16.mxu0 0
    %2704 = vmatpush2.bf16.xpose.msra.mxu0 0
    %2705 = vmatprep.subr.bf16.mxu0 0
    %2706 = vmatpush2.bf16.xpose.msra.mxu0 0
    %2707 = vmatprep.mubr.bf16.mxu0 0
    %2708 = vmatmul.mubr.bf16.gmra.mxu0 %v2670
    %v2709 = vpop.f32.mrf.mxu0
    %v2710 = vadd.f32 0.0, %v2709
    %v2711 = vpop.f32.mrf.mxu0
    %v2712 = vpop.f32.mrf.mxu0
    %v2713 = vpop.f32.mrf.mxu0
    %2714 = vdwg.mxu0
    %2715 = vrot.lane.b32.xlu0 %v1994, 104
    %v2716 = vpop.permute.xlu0 %2715
    %2717 = vrot.lane.b32.xlu0 %v1996, 104
    %v2718 = vpop.permute.xlu0 %2717
    %v2720 = vsel %vm532, %v2716, 0
    %v2723 = vsel %vm532, %v2718, 0
    %2725 = vmatprep.subr.bf16.mxu0 0
    %2726 = vmatpush1.bf16.xpose.msra.mxu0 0
    %2727 = vmatprep.subr.bf16.mxu0 0
    %2728 = vmatpush1.bf16.xpose.msra.mxu0 0
    %2729 = vmatprep.subr.bf16.mxu0 0
    %2730 = vmatpush1.bf16.xpose.msra.mxu0 0
    %2731 = vmatprep.subr.bf16.mxu0 0
    %2732 = vmatpush1.bf16.xpose.msra.mxu0 0
    %2733 = vmatprep.subr.bf16.mxu0 0
    %2734 = vmatpush1.bf16.xpose.msra.mxu0 0
    %2735 = vmatprep.subr.bf16.mxu0 0
    %2736 = vmatpush1.bf16.xpose.msra.mxu0 0
    %2737 = vmatprep.subr.bf16.mxu0 0
    %2738 = vmatpush1.bf16.xpose.msra.mxu0 0
    %2739 = vmatprep.subr.bf16.mxu0 0
    %2740 = vmatpush1.bf16.xpose.msra.mxu0 %v2723
    %2741 = vmatprep.subr.bf16.mxu0 0
    %2742 = vmatpush2.bf16.xpose.msra.mxu0 0
    %2743 = vmatprep.subr.bf16.mxu0 0
    %2744 = vmatpush2.bf16.xpose.msra.mxu0 0
    %2745 = vmatprep.subr.bf16.mxu0 0
    %2746 = vmatpush2.bf16.xpose.msra.mxu0 0
    %2747 = vmatprep.subr.bf16.mxu0 0
    %2748 = vmatpush2.bf16.xpose.msra.mxu0 0
    %2749 = vmatprep.subr.bf16.mxu0 0
    %2750 = vmatpush2.bf16.xpose.msra.mxu0 0
    %2751 = vmatprep.subr.bf16.mxu0 0
    %2752 = vmatpush2.bf16.xpose.msra.mxu0 0
    %2753 = vmatprep.subr.bf16.mxu0 0
    %2754 = vmatpush2.bf16.xpose.msra.mxu0 0
    %2755 = vmatprep.subr.bf16.mxu0 0
    %2756 = vmatpush2.bf16.xpose.msra.mxu0 0
    %2757 = vmatprep.mubr.bf16.mxu0 0
    %2758 = vmatmul.mubr.bf16.gmra.mxu0 %v2720
    %v2759 = vpop.f32.mrf.mxu0
    %v2760 = vadd.f32 0.0, %v2759
    %v2761 = vpop.f32.mrf.mxu0
    %v2762 = vpop.f32.mrf.mxu0
    %v2763 = vpop.f32.mrf.mxu0
    %2764 = vdwg.mxu0
    %v2765 = vmul.f32 %v2710, 0.35355338
    %v2766 = vmul.f32 %v2760, 0.35355338
    %v2767 = vadd.f32 %v2765, %v632
    %v2768 = vadd.f32 %v2766, %v636
    %v2769 = vsel %vm532, %v2767, -inf
    %2770 = vmax.xlane.f32.xlu0 %v2769
    %v2771 = vpop.xlane.xlu0 %2770
    %v2772 = vsel %vm532, %v2768, -inf
    %2773 = vmax.xlane.f32.xlu0 %v2772
    %v2774 = vpop.xlane.xlu0 %2773
    %v2775 = vsub.f32 %v2767, %v2771
    %v2776 = vsub.f32 %v2768, %v2774
    %v2777 = vmul.f32 %v2775, 1.442695
    %v2778 = vpow.pop %v2777
    %v2779 = vmul.f32 %v2776, 1.442695
    %v2780 = vpow.pop %v2779
    %v2781 = vsel %vm532, %v2778, 0.0
    %2782 = vadd.xlane.f32.xlu0 %v2781
    %v2783 = vpop.xlane.xlu0 %2782
    %v2784 = vsel %vm532, %v2780, 0.0
    %2785 = vadd.xlane.f32.xlu0 %v2784
    %v2786 = vpop.xlane.xlu0 %2785
    %v2787 = vrcp.pop %v2783
    %v2788 = vrcp.pop %v2786
    %v2789 = vmul.f32 %v2778, %v2787
    %v2790 = vmul.f32 %v2780, %v2788
    %v2791 = vpack.c.bf16 %v2789, %v2789
    %v2792 = vpack.c.bf16 %v2790, %v2790
    %2793 = vrot.lane.b32.xlu0 %v1997, 104
    %v2794 = vpop.permute.xlu0 %2793
    %v2796 = vsel %vm532, %v2791, 0
    %v2799 = vsel %vm668, %v2794, 0
    %2801 = vmatprep.subr.bf16.mxu0 0
    %2802 = vmatpush1.bf16.msra.mxu0 0
    %2803 = vmatprep.subr.bf16.mxu0 0
    %2804 = vmatpush1.bf16.msra.mxu0 0
    %2805 = vmatprep.subr.bf16.mxu0 0
    %2806 = vmatpush1.bf16.msra.mxu0 0
    %2807 = vmatprep.subr.bf16.mxu0 0
    %2808 = vmatpush1.bf16.msra.mxu0 0
    %2809 = vmatprep.subr.bf16.mxu0 0
    %2810 = vmatpush1.bf16.msra.mxu0 0
    %2811 = vmatprep.subr.bf16.mxu0 0
    %2812 = vmatpush1.bf16.msra.mxu0 0
    %2813 = vmatprep.subr.bf16.mxu0 0
    %2814 = vmatpush1.bf16.msra.mxu0 0
    %2815 = vmatprep.subr.bf16.mxu0 0
    %2816 = vmatpush1.bf16.msra.mxu0 %v2799
    %2817 = vmatprep.subr.bf16.mxu0 0
    %2818 = vmatpush2.bf16.msra.mxu0 0
    %2819 = vmatprep.subr.bf16.mxu0 0
    %2820 = vmatpush2.bf16.msra.mxu0 0
    %2821 = vmatprep.subr.bf16.mxu0 0
    %2822 = vmatpush2.bf16.msra.mxu0 0
    %2823 = vmatprep.subr.bf16.mxu0 0
    %2824 = vmatpush2.bf16.msra.mxu0 0
    %2825 = vmatprep.subr.bf16.mxu0 0
    %2826 = vmatpush2.bf16.msra.mxu0 0
    %2827 = vmatprep.subr.bf16.mxu0 0
    %2828 = vmatpush2.bf16.msra.mxu0 0
    %2829 = vmatprep.subr.bf16.mxu0 0
    %2830 = vmatpush2.bf16.msra.mxu0 0
    %2831 = vmatprep.subr.bf16.mxu0 0
    %2832 = vmatpush2.bf16.msra.mxu0 0
    %2833 = vmatprep.mubr.bf16.mxu0 0
    %2834 = vmatmul.mubr.bf16.gmra.mxu0 %v2796
    %v2835 = vpop.f32.mrf.mxu0
    %v2836 = vadd.f32 0.0, %v2835
    %v2837 = vpop.f32.mrf.mxu0
    %v2838 = vpop.f32.mrf.mxu0
    %v2839 = vpop.f32.mrf.mxu0
    %2840 = vdwg.mxu0
    %2841 = vrot.lane.b32.xlu0 %v1998, 104
    %v2842 = vpop.permute.xlu0 %2841
    %v2844 = vsel %vm532, %v2792, 0
    %v2847 = vsel %vm668, %v2842, 0
    %2849 = vmatprep.subr.bf16.mxu0 0
    %2850 = vmatpush1.bf16.msra.mxu0 0
    %2851 = vmatprep.subr.bf16.mxu0 0
    %2852 = vmatpush1.bf16.msra.mxu0 0
    %2853 = vmatprep.subr.bf16.mxu0 0
    %2854 = vmatpush1.bf16.msra.mxu0 0
    %2855 = vmatprep.subr.bf16.mxu0 0
    %2856 = vmatpush1.bf16.msra.mxu0 0
    %2857 = vmatprep.subr.bf16.mxu0 0
    %2858 = vmatpush1.bf16.msra.mxu0 0
    %2859 = vmatprep.subr.bf16.mxu0 0
    %2860 = vmatpush1.bf16.msra.mxu0 0
    %2861 = vmatprep.subr.bf16.mxu0 0
    %2862 = vmatpush1.bf16.msra.mxu0 0
    %2863 = vmatprep.subr.bf16.mxu0 0
    %2864 = vmatpush1.bf16.msra.mxu0 %v2847
    %2865 = vmatprep.subr.bf16.mxu0 0
    %2866 = vmatpush2.bf16.msra.mxu0 0
    %2867 = vmatprep.subr.bf16.mxu0 0
    %2868 = vmatpush2.bf16.msra.mxu0 0
    %2869 = vmatprep.subr.bf16.mxu0 0
    %2870 = vmatpush2.bf16.msra.mxu0 0
    %2871 = vmatprep.subr.bf16.mxu0 0
    %2872 = vmatpush2.bf16.msra.mxu0 0
    %2873 = vmatprep.subr.bf16.mxu0 0
    %2874 = vmatpush2.bf16.msra.mxu0 0
    %2875 = vmatprep.subr.bf16.mxu0 0
    %2876 = vmatpush2.bf16.msra.mxu0 0
    %2877 = vmatprep.subr.bf16.mxu0 0
    %2878 = vmatpush2.bf16.msra.mxu0 0
    %2879 = vmatprep.subr.bf16.mxu0 0
    %2880 = vmatpush2.bf16.msra.mxu0 0
    %2881 = vmatprep.mubr.bf16.mxu0 0
    %2882 = vmatmul.mubr.bf16.gmra.mxu0 %v2844
    %v2883 = vpop.f32.mrf.mxu0
    %v2884 = vadd.f32 0.0, %v2883
    %v2885 = vpop.f32.mrf.mxu0
    %v2886 = vpop.f32.mrf.mxu0
    %v2887 = vpop.f32.mrf.mxu0
    %2888 = vdwg.mxu0
    %2891 = vrot.lane.b32.xlu0 %v2387, 8
    %v2892 = vpop.permute.xlu0 %2891
    %2893 = vrot.lane.b32.xlu0 %v2436, 8
    %v2894 = vpop.permute.xlu0 %2893
    %2899 = vrot.lane.b32.xlu0 %v2612, 16
    %v2900 = vpop.permute.xlu0 %2899
    %2901 = vrot.lane.b32.xlu0 %v2660, 16
    %v2902 = vpop.permute.xlu0 %2901
    %2907 = vrot.lane.b32.xlu0 %v2836, 24
    %v2908 = vpop.permute.xlu0 %2907
    %2909 = vrot.lane.b32.xlu0 %v2884, 24
    %v2910 = vpop.permute.xlu0 %2909
    %v2913 = vsel %vm532, %v2160, %v2892
    %v2914 = vsel %vm532, %v2206, %v2894
    %v2915 = vsel %vm1462, %v2913, %v2900
    %v2916 = vsel %vm1462, %v2914, %v2902
    %v2917 = vsel %vm1465, %v2915, %v2908
    %v2918 = vsel %vm1465, %v2916, %v2910
    %v2919 = vpack.c.bf16 %v2918, %v2917
    %s2920 = scalar_lea.vmem [#allocation14], 16
    %v2921 = vld [vmem:[%s2920] sm:$0xf]
    %v2922 = vld [vmem:[%s2920 + $0x4] sm:$0xf]
    %v2923 = vld [vmem:[%s2920 + $0x8] sm:$0xf]
    %v2924 = vld [vmem:[%s2920 + $0xc] sm:$0xf]
    %s2925 = scalar_lea.vmem [#allocation16], 1
    %v2926 = vld [vmem:[%s2925] sm:$0x1]
    %v2928 = vlaneseq
    %v2929 = vshrl.u32 %v2928, 7
    %v2930 = vsub.s32 0, %v2929
    %v2931 = vrot.slane %v2926, %v2930
    %v2937 = vunpack.c.l.b16 %v2921
    %v2938 = vunpack.c.l.b16 %v2922
    %v2939 = vunpack.c.l.b16 %v2923
    %v2940 = vunpack.c.l.b16 %v2924
    %v2941 = vpack.c.b16 %v2938, %v2937
    %v2942 = vpack.c.b16 %v2940, %v2939
    %v2946 = vsel %vm286, %v2919, 0
    %2948 = vmatprep.subr.bf16.mxu0 0
    %2949 = vmatpush1.bf16.msra.mxu0 0
    %2950 = vmatprep.subr.bf16.mxu0 0
    %2951 = vmatpush1.bf16.msra.mxu0 0
    %2952 = vmatprep.subr.bf16.mxu0 0
    %2953 = vmatpush1.bf16.msra.mxu0 0
    %2954 = vmatprep.subr.bf16.mxu0 0
    %2955 = vmatpush1.bf16.msra.mxu0 0
    %2956 = vmatprep.subr.bf16.mxu0 0
    %2957 = vmatpush1.bf16.msra.mxu0 0
    %2958 = vmatprep.subr.bf16.mxu0 0
    %2959 = vmatpush1.bf16.msra.mxu0 0
    %2960 = vmatprep.subr.bf16.mxu0 0
    %2961 = vmatpush1.bf16.msra.mxu0 %v2942
    %2962 = vmatprep.subr.bf16.mxu0 0
    %2963 = vmatpush1.bf16.msra.mxu0 %v2941
    %2964 = vmatprep.subr.bf16.mxu0 0
    %2965 = vmatpush2.bf16.msra.mxu0 0
    %2966 = vmatprep.subr.bf16.mxu0 0
    %2967 = vmatpush2.bf16.msra.mxu0 0
    %2968 = vmatprep.subr.bf16.mxu0 0
    %2969 = vmatpush2.bf16.msra.mxu0 0
    %2970 = vmatprep.subr.bf16.mxu0 0
    %2971 = vmatpush2.bf16.msra.mxu0 0
    %2972 = vmatprep.subr.bf16.mxu0 0
    %2973 = vmatpush2.bf16.msra.mxu0 0
    %2974 = vmatprep.subr.bf16.mxu0 0
    %2975 = vmatpush2.bf16.msra.mxu0 0
    %2976 = vmatprep.subr.bf16.mxu0 0
    %2977 = vmatpush2.bf16.msra.mxu0 0
    %2978 = vmatprep.subr.bf16.mxu0 0
    %2979 = vmatpush2.bf16.msra.mxu0 0
    %2980 = vmatprep.mubr.bf16.mxu0 0
    %2981 = vmatmul.mubr.bf16.gmra.mxu0 %v2946
    %v2982 = vpop.f32.mrf.mxu0
    %v2983 = vadd.f32 %v2931, %v2982
    %v2984 = vpop.f32.mrf.mxu0
    %v2985 = vpop.f32.mrf.mxu0
    %v2986 = vadd.f32 %v2931, %v2985
    %v2987 = vpop.f32.mrf.mxu0
    %2988 = vdwg.mxu0
    %v2989 = vadd.f32 %v2983, %v1789
    %v2990 = vadd.f32 %v2986, %v1790
    %s2991 = scalar_lea.vmem [#allocation17], 1
    %v2992 = vld [vmem:[%s2991] sm:$0x1]
    %s2993 = scalar_lea.vmem [#allocation19], 1
    %v2994 = vld [vmem:[%s2993] sm:$0x1]
    %v2995 = vsel %vm286, %v2989, 0.0
    %2996 = vadd.xlane.f32.xlu0 %v2995
    %v2997 = vpop.xlane.xlu0 %2996
    %v2998 = vsel %vm286, %v2990, 0.0
    %2999 = vadd.xlane.f32.xlu0 %v2998
    %v3000 = vpop.xlane.xlu0 %2999
    %v3001 = vmul.f32 %v2997, %v293
    %v3002 = vmul.f32 %v3000, %v293
    %v3003 = vsub.f32 %v2989, %v3001
    %v3004 = vsub.f32 %v2990, %v3002
    %v3005 = vmul.f32 %v3003, %v3003
    %v3006 = vmul.f32 %v3004, %v3004
    %v3007 = vsel %vm286, %v3005, 0.0
    %3008 = vadd.xlane.f32.xlu0 %v3007
    %v3009 = vpop.xlane.xlu0 %3008
    %v3010 = vsel %vm286, %v3006, 0.0
    %3011 = vadd.xlane.f32.xlu0 %v3010
    %v3012 = vpop.xlane.xlu0 %3011
    %v3013 = vmul.f32 %v3009, %v293
    %v3014 = vmul.f32 %v3012, %v293
    %v3015 = vadd.f32 %v3013, 1e-12
    %v3016 = vadd.f32 %v3014, 1e-12
    %v3017 = vrsqrt.pop %v3015
    %v3018 = vrsqrt.pop %v3016
    %v3019 = vmul.f32 %v3003, %v3017
    %v3020 = vmul.f32 %v3004, %v3018
    %v3022 = vlaneseq
    %v3023 = vshrl.u32 %v3022, 7
    %v3024 = vsub.s32 0, %v3023
    %v3025 = vrot.slane %v2992, %v3024
    %v3027 = vmul.f32 %v3019, %v3025
    %v3028 = vmul.f32 %v3020, %v3025
    %v3030 = vlaneseq
    %v3031 = vshrl.u32 %v3030, 7
    %v3032 = vsub.s32 0, %v3031
    %v3033 = vrot.slane %v2994, %v3032
    %v3035 = vadd.f32 %v3027, %v3033
    %v3036 = vadd.f32 %v3028, %v3033
    %v3037 = vpack.c.bf16 %v3036, %v3035
    %s3038 = scalar_lea.vmem [#allocation20], 16
    %v3039 = vld [vmem:[%s3038] sm:$0xf]
    %v3040 = vld [vmem:[%s3038 + $0x4] sm:$0xf]
    %v3041 = vld [vmem:[%s3038 + $0x8] sm:$0xf]
    %v3042 = vld [vmem:[%s3038 + $0xc] sm:$0xf]
    %s3043 = scalar_lea.vmem [#allocation22], 1
    %v3044 = vld [vmem:[%s3043] sm:$0x1]
    %v3046 = vlaneseq
    %v3047 = vshrl.u32 %v3046, 7
    %v3048 = vsub.s32 0, %v3047
    %v3049 = vrot.slane %v3044, %v3048
    %v3055 = vunpack.c.l.b16 %v3039
    %v3056 = vunpack.c.l.b16 %v3040
    %v3057 = vunpack.c.l.b16 %v3041
    %v3058 = vunpack.c.l.b16 %v3042
    %v3059 = vpack.c.b16 %v3056, %v3055
    %v3060 = vpack.c.b16 %v3058, %v3057
    %v3064 = vsel %vm286, %v3037, 0
    %3066 = vmatprep.subr.bf16.mxu0 0
    %3067 = vmatpush1.bf16.msra.mxu0 0
    %3068 = vmatprep.subr.bf16.mxu0 0
    %3069 = vmatpush1.bf16.msra.mxu0 0
    %3070 = vmatprep.subr.bf16.mxu0 0
    %3071 = vmatpush1.bf16.msra.mxu0 0
    %3072 = vmatprep.subr.bf16.mxu0 0
    %3073 = vmatpush1.bf16.msra.mxu0 0
    %3074 = vmatprep.subr.bf16.mxu0 0
    %3075 = vmatpush1.bf16.msra.mxu0 0
    %3076 = vmatprep.subr.bf16.mxu0 0
    %3077 = vmatpush1.bf16.msra.mxu0 0
    %3078 = vmatprep.subr.bf16.mxu0 0
    %3079 = vmatpush1.bf16.msra.mxu0 %v3060
    %3080 = vmatprep.subr.bf16.mxu0 0
    %3081 = vmatpush1.bf16.msra.mxu0 %v3059
    %3082 = vmatprep.subr.bf16.mxu0 0
    %3083 = vmatpush2.bf16.msra.mxu0 0
    %3084 = vmatprep.subr.bf16.mxu0 0
    %3085 = vmatpush2.bf16.msra.mxu0 0
    %3086 = vmatprep.subr.bf16.mxu0 0
    %3087 = vmatpush2.bf16.msra.mxu0 0
    %3088 = vmatprep.subr.bf16.mxu0 0
    %3089 = vmatpush2.bf16.msra.mxu0 0
    %3090 = vmatprep.subr.bf16.mxu0 0
    %3091 = vmatpush2.bf16.msra.mxu0 0
    %3092 = vmatprep.subr.bf16.mxu0 0
    %3093 = vmatpush2.bf16.msra.mxu0 0
    %3094 = vmatprep.subr.bf16.mxu0 0
    %3095 = vmatpush2.bf16.msra.mxu0 0
    %3096 = vmatprep.subr.bf16.mxu0 0
    %3097 = vmatpush2.bf16.msra.mxu0 0
    %3098 = vmatprep.mubr.bf16.mxu0 0
    %3099 = vmatmul.mubr.bf16.gmra.mxu0 %v3064
    %v3100 = vpop.f32.mrf.mxu0
    %v3101 = vadd.f32 %v3049, %v3100
    %v3102 = vpop.f32.mrf.mxu0
    %v3103 = vpop.f32.mrf.mxu0
    %v3104 = vadd.f32 %v3049, %v3103
    %v3105 = vpop.f32.mrf.mxu0
    %3106 = vdwg.mxu0
    %v3107 = vmul.f32 %v3101, 0.5
    %v3108 = vmul.f32 %v3104, 0.5
    %v3109 = vmul.f32 %v3101, 0.70710677
    %v3110 = vmul.f32 %v3104, 0.70710677
    %v3111 = verf.f32.pop %v3109
    %v3112 = verf.f32.pop %v3110
    %v3113 = vadd.f32 %v3111, 1.0
    %v3114 = vadd.f32 %v3112, 1.0
    %v3115 = vmul.f32 %v3107, %v3113
    %v3116 = vmul.f32 %v3108, %v3114
    %v3117 = vpack.c.bf16 %v3116, %v3115
    %s3118 = scalar_lea.vmem %s16, 32
    %v3119 = vld [vmem:[%s3118] sm:$0xf]
    %v3120 = vld [vmem:[%s3118 + $0x4] sm:$0xf]
    %v3121 = vld [vmem:[%s3118 + $0x8] sm:$0xf]
    %v3122 = vld [vmem:[%s3118 + $0xc] sm:$0xf]
    %v3123 = vld [vmem:[%s3118 + $0x10] sm:$0xf]
    %v3124 = vld [vmem:[%s3118 + $0x14] sm:$0xf]
    %v3125 = vld [vmem:[%s3118 + $0x18] sm:$0xf]
    %v3126 = vld [vmem:[%s3118 + $0x1c] sm:$0xf]
    %s3127 = scalar_lea.vmem [#allocation23], 1
    %v3128 = vld [vmem:[%s3127] sm:$0x1]
    %v3130 = vlaneseq
    %v3131 = vshrl.u32 %v3130, 7
    %v3132 = vsub.s32 0, %v3131
    %v3133 = vrot.slane %v3128, %v3132
    %v3143 = vunpack.c.l.b16 %v3119
    %v3144 = vunpack.c.l.b16 %v3120
    %v3145 = vunpack.c.l.b16 %v3121
    %v3146 = vunpack.c.l.b16 %v3122
    %v3147 = vunpack.c.l.b16 %v3123
    %v3148 = vunpack.c.l.b16 %v3124
    %v3149 = vunpack.c.l.b16 %v3125
    %v3150 = vunpack.c.l.b16 %v3126
    %v3151 = vpack.c.b16 %v3144, %v3143
    %v3152 = vpack.c.b16 %v3146, %v3145
    %v3153 = vpack.c.b16 %v3148, %v3147
    %v3154 = vpack.c.b16 %v3150, %v3149
    %v3160 = vsel %vm1700, %v3117, 0
    %3162 = vmatprep.subr.bf16.mxu0 0
    %3163 = vmatpush1.bf16.msra.mxu0 0
    %3164 = vmatprep.subr.bf16.mxu0 0
    %3165 = vmatpush1.bf16.msra.mxu0 0
    %3166 = vmatprep.subr.bf16.mxu0 0
    %3167 = vmatpush1.bf16.msra.mxu0 0
    %3168 = vmatprep.subr.bf16.mxu0 0
    %3169 = vmatpush1.bf16.msra.mxu0 0
    %3170 = vmatprep.subr.bf16.mxu0 0
    %3171 = vmatpush1.bf16.msra.mxu0 %v3154
    %3172 = vmatprep.subr.bf16.mxu0 0
    %3173 = vmatpush1.bf16.msra.mxu0 %v3153
    %3174 = vmatprep.subr.bf16.mxu0 0
    %3175 = vmatpush1.bf16.msra.mxu0 %v3152
    %3176 = vmatprep.subr.bf16.mxu0 0
    %3177 = vmatpush1.bf16.msra.mxu0 %v3151
    %3178 = vmatprep.subr.bf16.mxu0 0
    %3179 = vmatpush2.bf16.msra.mxu0 0
    %3180 = vmatprep.subr.bf16.mxu0 0
    %3181 = vmatpush2.bf16.msra.mxu0 0
    %3182 = vmatprep.subr.bf16.mxu0 0
    %3183 = vmatpush2.bf16.msra.mxu0 0
    %3184 = vmatprep.subr.bf16.mxu0 0
    %3185 = vmatpush2.bf16.msra.mxu0 0
    %3186 = vmatprep.subr.bf16.mxu0 0
    %3187 = vmatpush2.bf16.msra.mxu0 0
    %3188 = vmatprep.subr.bf16.mxu0 0
    %3189 = vmatpush2.bf16.msra.mxu0 0
    %3190 = vmatprep.subr.bf16.mxu0 0
    %3191 = vmatpush2.bf16.msra.mxu0 0
    %3192 = vmatprep.subr.bf16.mxu0 0
    %3193 = vmatpush2.bf16.msra.mxu0 0
    %3194 = vmatprep.mubr.bf16.mxu0 0
    %3195 = vmatmul.mubr.bf16.gmra.mxu0 %v3160
    %v3196 = vpop.f32.mrf.mxu0
    %v3197 = vadd.f32 %v3133, %v3196
    %v3198 = vpop.f32.mrf.mxu0
    %v3199 = vpop.f32.mrf.mxu0
    %v3200 = vadd.f32 %v3133, %v3199
    %v3201 = vpop.f32.mrf.mxu0
    %3202 = vdwg.mxu0
    %v3203 = vadd.f32 %v3197, %v3035
    %v3204 = vadd.f32 %v3200, %v3036
    %s3205 = scalar_lea.vmem [#allocation25], 1
    %v3206 = vld [vmem:[%s3205] sm:$0x1]
    %s3207 = scalar_lea.vmem %s19, 1
    %v3208 = vld [vmem:[%s3207] sm:$0x1]
    %v3209 = vsel %vm286, %v3203, 0.0
    %3210 = vadd.xlane.f32.xlu0 %v3209
    %v3211 = vpop.xlane.xlu0 %3210
    %v3212 = vsel %vm286, %v3204, 0.0
    %3213 = vadd.xlane.f32.xlu0 %v3212
    %v3214 = vpop.xlane.xlu0 %3213
    %v3215 = vmul.f32 %v3211, %v293
    %v3216 = vmul.f32 %v3214, %v293
    %v3217 = vsub.f32 %v3203, %v3215
    %v3218 = vsub.f32 %v3204, %v3216
    %v3219 = vmul.f32 %v3217, %v3217
    %v3220 = vmul.f32 %v3218, %v3218
    %v3221 = vsel %vm286, %v3219, 0.0
    %3222 = vadd.xlane.f32.xlu0 %v3221
    %v3223 = vpop.xlane.xlu0 %3222
    %v3224 = vsel %vm286, %v3220, 0.0
    %3225 = vadd.xlane.f32.xlu0 %v3224
    %v3226 = vpop.xlane.xlu0 %3225
    %v3227 = vmul.f32 %v3223, %v293
    %v3228 = vmul.f32 %v3226, %v293
    %v3229 = vadd.f32 %v3227, 1e-12
    %v3230 = vadd.f32 %v3228, 1e-12
    %v3231 = vrsqrt.pop %v3229
    %v3232 = vrsqrt.pop %v3230
    %v3233 = vmul.f32 %v3217, %v3231
    %v3234 = vmul.f32 %v3218, %v3232
    %v3236 = vlaneseq
    %v3237 = vshrl.u32 %v3236, 7
    %v3238 = vsub.s32 0, %v3237
    %v3239 = vrot.slane %v3206, %v3238
    %v3241 = vmul.f32 %v3233, %v3239
    %v3242 = vmul.f32 %v3234, %v3239
    %v3244 = vlaneseq
    %v3245 = vshrl.u32 %v3244, 7
    %v3246 = vsub.s32 0, %v3245
    %v3247 = vrot.slane %v3208, %v3246
    %v3249 = vadd.f32 %v3241, %v3247
    %v3250 = vadd.f32 %v3242, %v3247
    %v3251 = vpack.c.bf16 %v3249, %v3249
    %v3252 = vpack.c.bf16 %v3250, %v3250
    %v3253 = vld [vmem:[%s20] sm:$0xf]
    %v3254 = vld [vmem:[%s20 + $0x4] sm:$0xf]
    %v3255 = vld [vmem:[%s20 + $0x8] sm:$0xf]
    %v3256 = vld [vmem:[%s20 + $0xc] sm:$0xf]
    %v3257 = vld [vmem:[%s21] sm:$0x1]
    %v3259 = vlaneseq
    %v3260 = vshrl.u32 %v3259, 7
    %v3261 = vsub.s32 0, %v3260
    %v3262 = vrot.slane %v3257, %v3261
    %v3266 = vunpack.c.l.b16 %v3251
    %v3267 = vunpack.c.l.b16 %v3252
    %v3268 = vrot.slane %v3267, 7
    %vm3269 = vcmask 1041409
    %v3270 = vsel %vm3269, %v3268, %v3266
    %v3271 = vpack.c.b16 %v3270, %v3270
    %v3276 = vunpack.c.l.b16 %v3253
    %v3277 = vunpack.c.l.b16 %v3254
    %v3278 = vunpack.c.l.b16 %v3255
    %v3279 = vunpack.c.l.b16 %v3256
    %v3280 = vpack.c.b16 %v3277, %v3276
    %v3281 = vpack.c.b16 %v3279, %v3278
    %v3285 = vsel %vm286, %v3271, 0
    %3287 = vmatprep.subr.bf16.mxu0 0
    %3288 = vmatpush1.bf16.msra.mxu0 0
    %3289 = vmatprep.subr.bf16.mxu0 0
    %3290 = vmatpush1.bf16.msra.mxu0 0
    %3291 = vmatprep.subr.bf16.mxu0 0
    %3292 = vmatpush1.bf16.msra.mxu0 0
    %3293 = vmatprep.subr.bf16.mxu0 0
    %3294 = vmatpush1.bf16.msra.mxu0 0
    %3295 = vmatprep.subr.bf16.mxu0 0
    %3296 = vmatpush1.bf16.msra.mxu0 0
    %3297 = vmatprep.subr.bf16.mxu0 0
    %3298 = vmatpush1.bf16.msra.mxu0 0
    %3299 = vmatprep.subr.bf16.mxu0 0
    %3300 = vmatpush1.bf16.msra.mxu0 %v3281
    %3301 = vmatprep.subr.bf16.mxu0 0
    %3302 = vmatpush1.bf16.msra.mxu0 %v3280
    %3303 = vmatprep.subr.bf16.mxu0 0
    %3304 = vmatpush2.bf16.msra.mxu0 0
    %3305 = vmatprep.subr.bf16.mxu0 0
    %3306 = vmatpush2.bf16.msra.mxu0 0
    %3307 = vmatprep.subr.bf16.mxu0 0
    %3308 = vmatpush2.bf16.msra.mxu0 0
    %3309 = vmatprep.subr.bf16.mxu0 0
    %3310 = vmatpush2.bf16.msra.mxu0 0
    %3311 = vmatprep.subr.bf16.mxu0 0
    %3312 = vmatpush2.bf16.msra.mxu0 0
    %3313 = vmatprep.subr.bf16.mxu0 0
    %3314 = vmatpush2.bf16.msra.mxu0 0
    %3315 = vmatprep.subr.bf16.mxu0 0
    %3316 = vmatpush2.bf16.msra.mxu0 0
    %3317 = vmatprep.subr.bf16.mxu0 0
    %3318 = vmatpush2.bf16.msra.mxu0 0
    %3319 = vmatprep.mubr.bf16.mxu0 0
    %3320 = vmatmul.mubr.bf16.gmra.mxu0 %v3285
    %v3321 = vpop.f32.mrf.mxu0
    %v3322 = vadd.f32 %v3262, %v3321
    %v3323 = vpop.f32.mrf.mxu0
    %v3324 = vpop.f32.mrf.mxu0
    %v3325 = vpop.f32.mrf.mxu0
    %3326 = vdwg.mxu0
    %v3327 = vtanh.pop %v3322
    %v3328 = vpack.c.bf16 %v3327, %v3327
    %v3329 = vld [vmem:[%s22] sm:$0xf]
    %v3330 = vld [vmem:[%s22 + $0x4] sm:$0xf]
    %v3331 = vld [vmem:[%s22 + $0x8] sm:$0xf]
    %v3332 = vld [vmem:[%s22 + $0xc] sm:$0xf]
    %v3333 = vld [vmem:[%s23] sm:$0x1]
    %v3335 = vlaneseq
    %v3336 = vshrl.u32 %v3335, 7
    %v3337 = vsub.s32 0, %v3336
    %v3338 = vrot.slane %v3333, %v3337
    %v3344 = vunpack.c.l.b16 %v3329
    %v3345 = vunpack.c.l.b16 %v3330
    %v3346 = vunpack.c.l.b16 %v3331
    %v3347 = vunpack.c.l.b16 %v3332
    %v3348 = vpack.c.b16 %v3345, %v3344
    %v3349 = vpack.c.b16 %v3347, %v3346
    %v3353 = vsel %vm286, %v3328, 0
    %3355 = vmatprep.subr.bf16.mxu0 0
    %3356 = vmatpush1.bf16.msra.mxu0 0
    %3357 = vmatprep.subr.bf16.mxu0 0
    %3358 = vmatpush1.bf16.msra.mxu0 0
    %3359 = vmatprep.subr.bf16.mxu0 0
    %3360 = vmatpush1.bf16.msra.mxu0 0
    %3361 = vmatprep.subr.bf16.mxu0 0
    %3362 = vmatpush1.bf16.msra.mxu0 0
    %3363 = vmatprep.subr.bf16.mxu0 0
    %3364 = vmatpush1.bf16.msra.mxu0 0
    %3365 = vmatprep.subr.bf16.mxu0 0
    %3366 = vmatpush1.bf16.msra.mxu0 0
    %3367 = vmatprep.subr.bf16.mxu0 0
    %3368 = vmatpush1.bf16.msra.mxu0 %v3349
    %3369 = vmatprep.subr.bf16.mxu0 0
    %3370 = vmatpush1.bf16.msra.mxu0 %v3348
    %3371 = vmatprep.subr.bf16.mxu0 0
    %3372 = vmatpush2.bf16.msra.mxu0 0
    %3373 = vmatprep.subr.bf16.mxu0 0
    %3374 = vmatpush2.bf16.msra.mxu0 0
    %3375 = vmatprep.subr.bf16.mxu0 0
    %3376 = vmatpush2.bf16.msra.mxu0 0
    %3377 = vmatprep.subr.bf16.mxu0 0
    %3378 = vmatpush2.bf16.msra.mxu0 0
    %3379 = vmatprep.subr.bf16.mxu0 0
    %3380 = vmatpush2.bf16.msra.mxu0 0
    %3381 = vmatprep.subr.bf16.mxu0 0
    %3382 = vmatpush2.bf16.msra.mxu0 0
    %3383 = vmatprep.subr.bf16.mxu0 0
    %3384 = vmatpush2.bf16.msra.mxu0 0
    %3385 = vmatprep.subr.bf16.mxu0 0
    %3386 = vmatpush2.bf16.msra.mxu0 0
    %3387 = vmatprep.mubr.bf16.mxu0 0
    %3388 = vmatmul.mubr.bf16.gmra.mxu0 %v3353
    %v3389 = vpop.f32.mrf.mxu0
    %v3390 = vadd.f32 %v3338, %v3389
    %v3391 = vpop.f32.mrf.mxu0
    %v3392 = vpop.f32.mrf.mxu0
    %v3393 = vpop.f32.mrf.mxu0
    %3394 = vdwg.mxu0
    %vm3395 = vcmask 17408
    %3396 = vst.msk [vmem:[#allocation26] sm:$0x3] %vm3395, %v3390
    %v3397 = vlaneseq
    %v3398 = vand.u32 %v3397, 127
    %v3399 = vsel %vm3395, %v3390, -inf
    %3400 = vmax.xlane.f32.xlu0 %v3399
    %v3401 = vpop.xlane.xlu0 %3400
    %vm3402 = vcmp.ge.f32.partialorder %v3390, %v3401
    %v3403 = vsel %vm3402, %v3398, 2147483647
    %v3404 = vsel %vm3395, %v3403, 2147483647
    %v3405 = vand.u32 %v3404, 65535
    %v3406 = vshra.s32 %v3404, 16
    %v3407 = vcvt.s32.f32 %v3405
    %v3408 = vcvt.s32.f32 %v3406
    %3409 = vmin.xlane.f32.xlu0 %v3408
    %v3410 = vpop.xlane.xlu0 %3409
    %vm3411 = vcmp.eq.f32.partialorder %v3408, %v3410
    %v3412 = vsel %vm3411, %v3407, inf
    %3413 = vmin.xlane.f32.xlu0 %v3412
    %v3414 = vpop.xlane.xlu0 %3413
    %v3415 = vcvt.f32.s32 %v3414
    %v3416 = vcvt.f32.s32 %v3410
    %v3417 = vshll.u32 %v3416, 16
    %v3418 = vadd.s32 %v3417, %v3415
    %vm3419 = vcmask 1024
    %3420 = vst.msk [vmem:[%s25] sm:$0x3] %vm3419, %v3418
    // Predicated region
    $region158: #{tpu_custom_call.1} parent=1 // pred_check
      _
    $region159: #{tpu_custom_call.1} parent=1 // pred_check_branch
      %3422 = sbr.rel (0) target = $region161
    $region160: #{tpu_custom_call.1} parent=1 // pred_region
      %s3424 = ssub.s32 32, 32
      %3425 = vsyncadd [#allocation4], %s3424
      %s3427 = sshll.u32 [#allocation26], 4
      %s3428 = int_to_ptr.vmem [resolvable:$true] %s3427
      %3430 = dma.vmem_to_hbm [thread:$0]  %s3428, 32, %s24, [#allocation4]
    $region161: #{tpu_custom_call.1} parent=1 // pred_fallthru
      _
    // Predicated region
    $region162: #{tpu_custom_call.1} parent=1 // pred_check
      _
    $region163: #{tpu_custom_call.1} parent=1 // pred_check_branch
      %3432 = sbr.rel (0) target = $region165
    $region164: #{tpu_custom_call.1} parent=1 // pred_region
      _
    $region165: #{tpu_custom_call.1} parent=1 // pred_fallthru
      _
    // Predicated region
    $region166: #{tpu_custom_call.1} parent=1 // pred_check
      _
    $region167: #{tpu_custom_call.1} parent=1 // pred_check_branch
      %3434 = sbr.rel (0) target = $region169
    $region168: #{tpu_custom_call.1} parent=1 // pred_region
      %3435 = dma.done [#allocation4], 32
    $region169: #{tpu_custom_call.1} parent=1 // pred_fallthru
      _
    // Predicated region
    $region170: #{tpu_custom_call.1} parent=1 // pred_check
      _
    $region171: #{tpu_custom_call.1} parent=1 // pred_check_branch
      %3437 = sbr.rel (0) target = $region173
    $region172: #{tpu_custom_call.1} parent=1 // pred_region
      _
    $region173: #{tpu_custom_call.1} parent=1 // pred_fallthru
      _
    %3438 = vsyncpa [#allocation3], 1
    %3439 = vsyncpa [#allocation6], 1
    %3440 = vsyncpa [#allocation9], 1
    %3441 = vsyncpa [#allocation12], 1
    %3442 = vsyncpa [#allocation15], 1
    %3443 = vsyncpa [#allocation18], 1
    %3444 = vsyncpa [#allocation21], 1
    %3445 = vsyncpa [#allocation24], 1
    %3446 = vsyncpa [#allocation4], 1

</llo_original>
